<compile_context>
chip_gen: v5e
topology: v5e:2x2
jax: 0.10.0
libtpu: 0.0.40
codegen_flags: <defaults>
</compile_context>

<pallas_src>
import functools
import numpy as np
import jax
import jax.numpy as jnp
from jax.experimental import pallas as pl
from jax.experimental.pallas import tpu as pltpu

# ---------------- config (small, consistent with the module) ----------------
LATENT_DIM = 32
CHANNELS = 1
IMG_SIZE = 16
IMG_SHAPE = (CHANNELS, IMG_SIZE, IMG_SIZE)
IMG_FLAT = int(np.prod(IMG_SHAPE))        # 256
HIDDEN = (128, 256, 512, 1024)
BN_EPS = 0.8                              # nn.BatchNorm1d(out_feat, 0.8) -> eps=0.8
LRELU_SLOPE = 0.2
BATCH = 8

# --- packed vector-parameter layout: every offset is a multiple of 128 ------
_VEC_SIZES = [
    ("b1", HIDDEN[0]),
    ("b2", HIDDEN[1]), ("g2", HIDDEN[1]), ("be2", HIDDEN[1]),
    ("b3", HIDDEN[2]), ("g3", HIDDEN[2]), ("be3", HIDDEN[2]),
    ("b4", HIDDEN[3]), ("g4", HIDDEN[3]), ("be4", HIDDEN[3]),
    ("b5", IMG_FLAT),
]
_VEC_OFFSETS = {}
_off = 0
for _name, _sz in _VEC_SIZES:
    _VEC_OFFSETS[_name] = (_off, _off + _sz)
    _off += _sz
VEC_TOTAL = _off  # 5760 = 45 * 128  -> all static slices are lane-aligned


def _leaky_relu(x):
    return jnp.where(x > 0, x, LRELU_SLOPE * x)


def _vec(vec_ref, name):
    lo, hi = _VEC_OFFSETS[name]
    return vec_ref[:, lo:hi]          # static, 128-aligned slice -> (1, feat)


def generator_kernel(z_ref,
                     w1_ref, w2_ref, w3_ref, w4_ref, w5_ref,
                     vec_ref,
                     out_ref,
                     *, n_valid):
    """Fused MLP generator: 5 bf16 matmuls + 3 batch-norms + activations.

    n_valid (static Python int) is the real batch size; rows [n_valid:] of
    the padded batch are excluded from BatchNorm statistics.
    """
    b_pad = z_ref.shape[0]

    def matmul(x_f32, w_ref, bias_f32):
        # bf16 operands on the MXU, f32 accumulation, f32 bias add.
        y = jnp.dot(x_f32.astype(jnp.bfloat16), w_ref[...],
                    preferred_element_type=jnp.float32)
        return y + bias_f32

    def batch_stats(h):
        if n_valid == b_pad:
            mean = jnp.mean(h, axis=0, keepdims=True)
            var = jnp.mean((h - mean) * (h - mean), axis=0, keepdims=True)
        else:
            row = jax.lax.broadcasted_iota(jnp.int32, (b_pad, 1), 0)
            mask = (row < n_valid).astype(jnp.float32)
            inv_n = 1.0 / float(n_valid)
            mean = jnp.sum(h * mask, axis=0, keepdims=True) * inv_n
            diff = (h - mean) * mask
            var = jnp.sum(diff * diff, axis=0, keepdims=True) * inv_n
        return mean, var

    x = z_ref[...].astype(jnp.float32)

    # --- block 1: Linear + LeakyReLU (no BN) ---
    h = _leaky_relu(matmul(x, w1_ref, _vec(vec_ref, "b1")))

    # --- blocks 2-4: Linear + BatchNorm1d (batch stats, biased var) + LeakyReLU ---
    def bn_block(h, w_ref, b, g, be):
        h = matmul(h, w_ref, b)
        mean, var = batch_stats(h)
        h = (h - mean) * jax.lax.rsqrt(var + BN_EPS)
        return _leaky_relu(h * g + be)

    h = bn_block(h, w2_ref, _vec(vec_ref, "b2"), _vec(vec_ref, "g2"), _vec(vec_ref, "be2"))
    h = bn_block(h, w3_ref, _vec(vec_ref, "b3"), _vec(vec_ref, "g3"), _vec(vec_ref, "be3"))
    h = bn_block(h, w4_ref, _vec(vec_ref, "b4"), _vec(vec_ref, "g4"), _vec(vec_ref, "be4"))

    # --- output head: Linear + Tanh (f32) ---
    out_ref[...] = jnp.tanh(matmul(h, w5_ref, _vec(vec_ref, "b5")))


def init_params(key):
    """PyTorch-style Linear init U(-1/sqrt(fan_in), 1/sqrt(fan_in)).
    Weights pre-transposed to (in, out) and stored as bf16; the 12 small
    bias / gamma / beta vectors are packed into one (1, VEC_TOTAL) f32 array."""
    dims = (LATENT_DIM,) + HIDDEN + (IMG_FLAT,)
    params = {}
    vecs = {}
    for i in range(5):
        fan_in, fan_out = dims[i], dims[i + 1]
        key, kw, kb = jax.random.split(key, 3)
        bound = 1.0 / np.sqrt(fan_in)
        w = jax.random.uniform(kw, (fan_in, fan_out), jnp.float32, -bound, bound)
        params[f"w{i+1}"] = w.astype(jnp.bfloat16)
        vecs[f"b{i+1}"] = jax.random.uniform(kb, (fan_out,), jnp.float32, -bound, bound)
    for i, dim in zip((2, 3, 4), HIDDEN[1:]):
        vecs[f"g{i}"] = jnp.ones((dim,), jnp.float32)
        vecs[f"be{i}"] = jnp.zeros((dim,), jnp.float32)
    params["vec"] = jnp.concatenate(
        [vecs[name] for name, _ in _VEC_SIZES]).reshape(1, VEC_TOTAL)
    return params


def generator_forward(z, params):
    """z: (B, latent_dim) float32 -> img: (B, C, H, W) float32 (NCHW)."""
    B = z.shape[0]
    b_pad = max(8, ((B + 7) // 8) * 8)           # sublane-align the batch
    if b_pad != B:
        z = jnp.pad(z, ((0, b_pad - B), (0, 0)))

    vmem = pl.BlockSpec(memory_space=pltpu.MemorySpace.VMEM)
    kernel = functools.partial(generator_kernel, n_valid=B)

    # Total footprint: ~1.9 MB bf16 weights + <1 MB activations -> one
    # grid-less call with everything VMEM-resident; default scoped VMEM
    # limits are more than enough on v5e/v6e/v7x.
    flat = pl.pallas_call(
        kernel,
        out_shape=jax.ShapeDtypeStruct((b_pad, IMG_FLAT), jnp.float32),
        in_specs=[vmem] * 7,
        out_specs=vmem,
    )(z,
      params["w1"], params["w2"], params["w3"], params["w4"], params["w5"],
      params["vec"])

    return flat[:B].reshape(B, *IMG_SHAPE)


if __name__ == "__main__":
    key = jax.random.PRNGKey(0)
    key_p, key_z = jax.random.split(key)
    params = init_params(key_p)
    z = jax.random.normal(key_z, (BATCH, LATENT_DIM), dtype=jnp.float32)

    img = generator_forward(z, params)
    jax.block_until_ready(img)

    assert img.shape == (BATCH, CHANNELS, IMG_SIZE, IMG_SIZE), img.shape
    assert img.dtype == jnp.float32
    assert bool(jnp.all(jnp.isfinite(img)))
    assert bool(jnp.all(jnp.abs(img) <= 1.0))   # tanh range
    print("KERNEL_OK")
</pallas_src>

<mosaic_0001>
module attributes {stable_mosaic.version = 11 : i64} {
  func.func @generator_kernel(%arg0: memref<8x32xf32, #tpu.memory_space<vmem>>, %arg1: memref<32x128xbf16, #tpu.memory_space<vmem>>, %arg2: memref<128x256xbf16, #tpu.memory_space<vmem>>, %arg3: memref<256x512xbf16, #tpu.memory_space<vmem>>, %arg4: memref<512x1024xbf16, #tpu.memory_space<vmem>>, %arg5: memref<1024x256xbf16, #tpu.memory_space<vmem>>, %arg6: memref<1x5760xf32, #tpu.memory_space<vmem>>, %arg7: memref<8x256xf32, #tpu.memory_space<vmem>>) attributes {dimension_semantics = [], scalar_prefetch = 0 : i64, scratch_operands = 0 : i64, tpu.core_type = #tpu.core_type<tc>} {
    %c0 = arith.constant 0 : index
    %c0_0 = arith.constant 0 : index
    %0 = vector.load %arg0[%c0, %c0_0] : memref<8x32xf32, #tpu.memory_space<vmem>>, vector<8x32xf32>
    %c0_1 = arith.constant 0 : index
    %c0_2 = arith.constant 0 : index
    %1 = vector.load %arg6[%c0_1, %c0_2] : memref<1x5760xf32, #tpu.memory_space<vmem>>, vector<1x128xf32>
    %2 = arith.truncf %0 : vector<8x32xf32> to vector<8x32xbf16>
    %c0_3 = arith.constant 0 : index
    %c0_4 = arith.constant 0 : index
    %3 = vector.load %arg1[%c0_3, %c0_4] : memref<32x128xbf16, #tpu.memory_space<vmem>>, vector<32x128xbf16>
    %cst = arith.constant dense<0.000000e+00> : vector<8x128xf32>
    %4 = tpu.matmul %2, %3, %cst {dimension_numbers = #tpu.dot_dimension_numbers<[1], [0], [0], [1], [0, 0, 1, 1], [], []>} : vector<8x32xbf16>, vector<32x128xbf16>, vector<8x128xf32> -> vector<8x128xf32>
    %5 = vector.broadcast %1 : vector<1x128xf32> to vector<8x128xf32>
    %6 = arith.addf %4, %5 : vector<8x128xf32>
    %cst_5 = arith.constant 0.000000e+00 : f32
    %7 = vector.broadcast %cst_5 : f32 to vector<8x128xf32>
    %8 = arith.cmpf ogt, %6, %7 : vector<8x128xf32>
    %cst_6 = arith.constant 2.000000e-01 : f32
    %9 = vector.broadcast %cst_6 : f32 to vector<8x128xf32>
    %10 = arith.mulf %9, %6 : vector<8x128xf32>
    %11 = arith.select %8, %6, %10 : vector<8x128xi1>, vector<8x128xf32>
    %c0_7 = arith.constant 0 : index
    %c128 = arith.constant 128 : index
    %12 = vector.load %arg6[%c0_7, %c128] : memref<1x5760xf32, #tpu.memory_space<vmem>>, vector<1x256xf32>
    %c0_8 = arith.constant 0 : index
    %c384 = arith.constant 384 : index
    %13 = vector.load %arg6[%c0_8, %c384] : memref<1x5760xf32, #tpu.memory_space<vmem>>, vector<1x256xf32>
    %c0_9 = arith.constant 0 : index
    %c640 = arith.constant 640 : index
    %14 = vector.load %arg6[%c0_9, %c640] : memref<1x5760xf32, #tpu.memory_space<vmem>>, vector<1x256xf32>
    %15 = arith.truncf %11 : vector<8x128xf32> to vector<8x128xbf16>
    %c0_10 = arith.constant 0 : index
    %c0_11 = arith.constant 0 : index
    %16 = vector.load %arg2[%c0_10, %c0_11] : memref<128x256xbf16, #tpu.memory_space<vmem>>, vector<128x256xbf16>
    %cst_12 = arith.constant dense<0.000000e+00> : vector<8x256xf32>
    %17 = tpu.matmul %15, %16, %cst_12 {dimension_numbers = #tpu.dot_dimension_numbers<[1], [0], [0], [1], [0, 0, 1, 1], [], []>} : vector<8x128xbf16>, vector<128x256xbf16>, vector<8x256xf32> -> vector<8x256xf32>
    %18 = vector.broadcast %12 : vector<1x256xf32> to vector<8x256xf32>
    %19 = arith.addf %17, %18 : vector<8x256xf32>
    %cst_13 = arith.constant dense<0.000000e+00> : vector<256xf32>
    %20 = vector.multi_reduction <add>, %19, %cst_13 [0] : vector<8x256xf32> to vector<256xf32>
    %21 = vector.shape_cast %20 : vector<256xf32> to vector<1x256xf32>
    %cst_14 = arith.constant 8.000000e+00 : f32
    %22 = vector.broadcast %cst_14 : f32 to vector<1x256xf32>
    %23 = arith.divf %21, %22 : vector<1x256xf32>
    %24 = vector.broadcast %23 : vector<1x256xf32> to vector<8x256xf32>
    %25 = arith.subf %19, %24 : vector<8x256xf32>
    %26 = vector.broadcast %23 : vector<1x256xf32> to vector<8x256xf32>
    %27 = arith.subf %19, %26 : vector<8x256xf32>
    %28 = arith.mulf %25, %27 : vector<8x256xf32>
    %cst_15 = arith.constant dense<0.000000e+00> : vector<256xf32>
    %29 = vector.multi_reduction <add>, %28, %cst_15 [0] : vector<8x256xf32> to vector<256xf32>
    %30 = vector.shape_cast %29 : vector<256xf32> to vector<1x256xf32>
    %cst_16 = arith.constant 8.000000e+00 : f32
    %31 = vector.broadcast %cst_16 : f32 to vector<1x256xf32>
    %32 = arith.divf %30, %31 : vector<1x256xf32>
    %33 = vector.broadcast %23 : vector<1x256xf32> to vector<8x256xf32>
    %34 = arith.subf %19, %33 : vector<8x256xf32>
    %cst_17 = arith.constant 8.000000e-01 : f32
    %35 = vector.broadcast %cst_17 : f32 to vector<1x256xf32>
    %36 = arith.addf %32, %35 : vector<1x256xf32>
    %37 = math.rsqrt %36 : vector<1x256xf32>
    %38 = vector.broadcast %37 : vector<1x256xf32> to vector<8x256xf32>
    %39 = arith.mulf %34, %38 : vector<8x256xf32>
    %40 = vector.broadcast %13 : vector<1x256xf32> to vector<8x256xf32>
    %41 = arith.mulf %39, %40 : vector<8x256xf32>
    %42 = vector.broadcast %14 : vector<1x256xf32> to vector<8x256xf32>
    %43 = arith.addf %41, %42 : vector<8x256xf32>
    %cst_18 = arith.constant 0.000000e+00 : f32
    %44 = vector.broadcast %cst_18 : f32 to vector<8x256xf32>
    %45 = arith.cmpf ogt, %43, %44 : vector<8x256xf32>
    %cst_19 = arith.constant 2.000000e-01 : f32
    %46 = vector.broadcast %cst_19 : f32 to vector<8x256xf32>
    %47 = arith.mulf %46, %43 : vector<8x256xf32>
    %48 = arith.select %45, %43, %47 : vector<8x256xi1>, vector<8x256xf32>
    %c0_20 = arith.constant 0 : index
    %c896 = arith.constant 896 : index
    %49 = vector.load %arg6[%c0_20, %c896] : memref<1x5760xf32, #tpu.memory_space<vmem>>, vector<1x512xf32>
    %c0_21 = arith.constant 0 : index
    %c1408 = arith.constant 1408 : index
    %50 = vector.load %arg6[%c0_21, %c1408] : memref<1x5760xf32, #tpu.memory_space<vmem>>, vector<1x512xf32>
    %c0_22 = arith.constant 0 : index
    %c1920 = arith.constant 1920 : index
    %51 = vector.load %arg6[%c0_22, %c1920] : memref<1x5760xf32, #tpu.memory_space<vmem>>, vector<1x512xf32>
    %52 = arith.truncf %48 : vector<8x256xf32> to vector<8x256xbf16>
    %c0_23 = arith.constant 0 : index
    %c0_24 = arith.constant 0 : index
    %53 = vector.load %arg3[%c0_23, %c0_24] : memref<256x512xbf16, #tpu.memory_space<vmem>>, vector<256x512xbf16>
    %cst_25 = arith.constant dense<0.000000e+00> : vector<8x512xf32>
    %54 = tpu.matmul %52, %53, %cst_25 {dimension_numbers = #tpu.dot_dimension_numbers<[1], [0], [0], [1], [0, 0, 1, 1], [], []>} : vector<8x256xbf16>, vector<256x512xbf16>, vector<8x512xf32> -> vector<8x512xf32>
    %55 = vector.broadcast %49 : vector<1x512xf32> to vector<8x512xf32>
    %56 = arith.addf %54, %55 : vector<8x512xf32>
    %cst_26 = arith.constant dense<0.000000e+00> : vector<512xf32>
    %57 = vector.multi_reduction <add>, %56, %cst_26 [0] : vector<8x512xf32> to vector<512xf32>
    %58 = vector.shape_cast %57 : vector<512xf32> to vector<1x512xf32>
    %cst_27 = arith.constant 8.000000e+00 : f32
    %59 = vector.broadcast %cst_27 : f32 to vector<1x512xf32>
    %60 = arith.divf %58, %59 : vector<1x512xf32>
    %61 = vector.broadcast %60 : vector<1x512xf32> to vector<8x512xf32>
    %62 = arith.subf %56, %61 : vector<8x512xf32>
    %63 = vector.broadcast %60 : vector<1x512xf32> to vector<8x512xf32>
    %64 = arith.subf %56, %63 : vector<8x512xf32>
    %65 = arith.mulf %62, %64 : vector<8x512xf32>
    %cst_28 = arith.constant dense<0.000000e+00> : vector<512xf32>
    %66 = vector.multi_reduction <add>, %65, %cst_28 [0] : vector<8x512xf32> to vector<512xf32>
    %67 = vector.shape_cast %66 : vector<512xf32> to vector<1x512xf32>
    %cst_29 = arith.constant 8.000000e+00 : f32
    %68 = vector.broadcast %cst_29 : f32 to vector<1x512xf32>
    %69 = arith.divf %67, %68 : vector<1x512xf32>
    %70 = vector.broadcast %60 : vector<1x512xf32> to vector<8x512xf32>
    %71 = arith.subf %56, %70 : vector<8x512xf32>
    %cst_30 = arith.constant 8.000000e-01 : f32
    %72 = vector.broadcast %cst_30 : f32 to vector<1x512xf32>
    %73 = arith.addf %69, %72 : vector<1x512xf32>
    %74 = math.rsqrt %73 : vector<1x512xf32>
    %75 = vector.broadcast %74 : vector<1x512xf32> to vector<8x512xf32>
    %76 = arith.mulf %71, %75 : vector<8x512xf32>
    %77 = vector.broadcast %50 : vector<1x512xf32> to vector<8x512xf32>
    %78 = arith.mulf %76, %77 : vector<8x512xf32>
    %79 = vector.broadcast %51 : vector<1x512xf32> to vector<8x512xf32>
    %80 = arith.addf %78, %79 : vector<8x512xf32>
    %cst_31 = arith.constant 0.000000e+00 : f32
    %81 = vector.broadcast %cst_31 : f32 to vector<8x512xf32>
    %82 = arith.cmpf ogt, %80, %81 : vector<8x512xf32>
    %cst_32 = arith.constant 2.000000e-01 : f32
    %83 = vector.broadcast %cst_32 : f32 to vector<8x512xf32>
    %84 = arith.mulf %83, %80 : vector<8x512xf32>
    %85 = arith.select %82, %80, %84 : vector<8x512xi1>, vector<8x512xf32>
    %c0_33 = arith.constant 0 : index
    %c2432 = arith.constant 2432 : index
    %86 = vector.load %arg6[%c0_33, %c2432] : memref<1x5760xf32, #tpu.memory_space<vmem>>, vector<1x1024xf32>
    %c0_34 = arith.constant 0 : index
    %c3456 = arith.constant 3456 : index
    %87 = vector.load %arg6[%c0_34, %c3456] : memref<1x5760xf32, #tpu.memory_space<vmem>>, vector<1x1024xf32>
    %c0_35 = arith.constant 0 : index
    %c4480 = arith.constant 4480 : index
    %88 = vector.load %arg6[%c0_35, %c4480] : memref<1x5760xf32, #tpu.memory_space<vmem>>, vector<1x1024xf32>
    %89 = arith.truncf %85 : vector<8x512xf32> to vector<8x512xbf16>
    %c0_36 = arith.constant 0 : index
    %c0_37 = arith.constant 0 : index
    %90 = vector.load %arg4[%c0_36, %c0_37] : memref<512x1024xbf16, #tpu.memory_space<vmem>>, vector<512x1024xbf16>
    %cst_38 = arith.constant dense<0.000000e+00> : vector<8x1024xf32>
    %91 = tpu.matmul %89, %90, %cst_38 {dimension_numbers = #tpu.dot_dimension_numbers<[1], [0], [0], [1], [0, 0, 1, 1], [], []>} : vector<8x512xbf16>, vector<512x1024xbf16>, vector<8x1024xf32> -> vector<8x1024xf32>
    %92 = vector.broadcast %86 : vector<1x1024xf32> to vector<8x1024xf32>
    %93 = arith.addf %91, %92 : vector<8x1024xf32>
    %cst_39 = arith.constant dense<0.000000e+00> : vector<1024xf32>
    %94 = vector.multi_reduction <add>, %93, %cst_39 [0] : vector<8x1024xf32> to vector<1024xf32>
    %95 = vector.shape_cast %94 : vector<1024xf32> to vector<1x1024xf32>
    %cst_40 = arith.constant 8.000000e+00 : f32
    %96 = vector.broadcast %cst_40 : f32 to vector<1x1024xf32>
    %97 = arith.divf %95, %96 : vector<1x1024xf32>
    %98 = vector.broadcast %97 : vector<1x1024xf32> to vector<8x1024xf32>
    %99 = arith.subf %93, %98 : vector<8x1024xf32>
    %100 = vector.broadcast %97 : vector<1x1024xf32> to vector<8x1024xf32>
    %101 = arith.subf %93, %100 : vector<8x1024xf32>
    %102 = arith.mulf %99, %101 : vector<8x1024xf32>
    %cst_41 = arith.constant dense<0.000000e+00> : vector<1024xf32>
    %103 = vector.multi_reduction <add>, %102, %cst_41 [0] : vector<8x1024xf32> to vector<1024xf32>
    %104 = vector.shape_cast %103 : vector<1024xf32> to vector<1x1024xf32>
    %cst_42 = arith.constant 8.000000e+00 : f32
    %105 = vector.broadcast %cst_42 : f32 to vector<1x1024xf32>
    %106 = arith.divf %104, %105 : vector<1x1024xf32>
    %107 = vector.broadcast %97 : vector<1x1024xf32> to vector<8x1024xf32>
    %108 = arith.subf %93, %107 : vector<8x1024xf32>
    %cst_43 = arith.constant 8.000000e-01 : f32
    %109 = vector.broadcast %cst_43 : f32 to vector<1x1024xf32>
    %110 = arith.addf %106, %109 : vector<1x1024xf32>
    %111 = math.rsqrt %110 : vector<1x1024xf32>
    %112 = vector.broadcast %111 : vector<1x1024xf32> to vector<8x1024xf32>
    %113 = arith.mulf %108, %112 : vector<8x1024xf32>
    %114 = vector.broadcast %87 : vector<1x1024xf32> to vector<8x1024xf32>
    %115 = arith.mulf %113, %114 : vector<8x1024xf32>
    %116 = vector.broadcast %88 : vector<1x1024xf32> to vector<8x1024xf32>
    %117 = arith.addf %115, %116 : vector<8x1024xf32>
    %cst_44 = arith.constant 0.000000e+00 : f32
    %118 = vector.broadcast %cst_44 : f32 to vector<8x1024xf32>
    %119 = arith.cmpf ogt, %117, %118 : vector<8x1024xf32>
    %cst_45 = arith.constant 2.000000e-01 : f32
    %120 = vector.broadcast %cst_45 : f32 to vector<8x1024xf32>
    %121 = arith.mulf %120, %117 : vector<8x1024xf32>
    %122 = arith.select %119, %117, %121 : vector<8x1024xi1>, vector<8x1024xf32>
    %c0_46 = arith.constant 0 : index
    %c5504 = arith.constant 5504 : index
    %123 = vector.load %arg6[%c0_46, %c5504] : memref<1x5760xf32, #tpu.memory_space<vmem>>, vector<1x256xf32>
    %124 = arith.truncf %122 : vector<8x1024xf32> to vector<8x1024xbf16>
    %c0_47 = arith.constant 0 : index
    %c0_48 = arith.constant 0 : index
    %125 = vector.load %arg5[%c0_47, %c0_48] : memref<1024x256xbf16, #tpu.memory_space<vmem>>, vector<1024x256xbf16>
    %cst_49 = arith.constant dense<0.000000e+00> : vector<8x256xf32>
    %126 = tpu.matmul %124, %125, %cst_49 {dimension_numbers = #tpu.dot_dimension_numbers<[1], [0], [0], [1], [0, 0, 1, 1], [], []>} : vector<8x1024xbf16>, vector<1024x256xbf16>, vector<8x256xf32> -> vector<8x256xf32>
    %127 = vector.broadcast %123 : vector<1x256xf32> to vector<8x256xf32>
    %128 = arith.addf %126, %127 : vector<8x256xf32>
    %129 = math.tanh %128 : vector<8x256xf32>
    %c0_50 = arith.constant 0 : index
    %c0_51 = arith.constant 0 : index
    %130 = vector.load %arg7[%c0_50, %c0_51] : memref<8x256xf32, #tpu.memory_space<vmem>>, vector<8x256xf32>
    tpu.vector_store %arg7[%c0_50, %c0_51], %129 {strides = array<i32>} : memref<8x256xf32, #tpu.memory_space<vmem>>, vector<8x256xf32>,
    return
  }
}

</mosaic_0001>

<llo_original>
// kernel: tpu_custom_call.1
$region0: #{tpu_custom_call.1}
  #allocation0 [shape = 'u32[]', space=smem, size = 0x4, offset = 0x4, fixed_abs, tag = 'smem constant byte address 0x4 - core index']
  #allocation1 [shape = 'u32[72,128]{1,0:T(1,128)}', space=vmem, size = 0x9000, scoped, tag = 'internal scratch']
  %s0 = inlined_call_operand.hbm [shape: f32[8,32], index: 0, kind: input, shape index: {}]
  %s1 = inlined_call_operand.hbm [shape: bf16[32,128], index: 1, kind: input, shape index: {}]
  %s2 = inlined_call_operand.hbm [shape: bf16[128,256], index: 2, kind: input, shape index: {}]
  %s3 = inlined_call_operand.hbm [shape: bf16[256,512], index: 3, kind: input, shape index: {}]
  %s4 = inlined_call_operand.hbm [shape: bf16[512,1024], index: 4, kind: input, shape index: {}]
  %s5 = inlined_call_operand.hbm [shape: bf16[1024,256], index: 5, kind: input, shape index: {}]
  %s6 = inlined_call_operand.hbm [shape: f32[1,5760], index: 6, kind: input, shape index: {}]
  %s7 = inlined_call_operand.hbm [shape: f32[8,256], index: 7, kind: output, shape index: {}]
  %s8 = sld [smem:[#allocation0]]
  $region66: #{tpu_custom_call.1} parent=0
    _
  %s10 = ssub.s32 1, %s8
  %s11 = scalar_select 0, %s10, %s8
  $region1: #{tpu_custom_call.1} parent=0
    #allocation2 [shape = 'u8[4096]{0}', space=vmem, size = 0x1000, scoped, tag = 'input window, operand 0, single buffered']
    #allocation3 [shape = 's32[1]{0}', space=sflag, size = 0x4, scoped, tag = 'scoped memory for tpu_custom_call.1']
    #allocation4 [shape = 's32[1]{0}', space=sflag, size = 0x4, scoped, tag = 'scoped memory for tpu_custom_call.1']
    #allocation5 [shape = 'u8[8192]{0}', space=vmem, size = 0x2000, scoped, tag = 'input window, operand 1, single buffered']
    #allocation6 [shape = 's32[1]{0}', space=sflag, size = 0x4, scoped, tag = 'scoped memory for tpu_custom_call.1']
    #allocation7 [shape = 'u8[65536]{0}', space=vmem, size = 0x10000, scoped, tag = 'input window, operand 2, single buffered']
    #allocation8 [shape = 'u8[262144]{0}', space=vmem, size = 0x40000, scoped, tag = 'input window, operand 3, single buffered']
    #allocation9 [shape = 's32[1]{0}', space=sflag, size = 0x4, scoped, tag = 'scoped memory for tpu_custom_call.1']
    #allocation10 [shape = 'u8[1048576]{0}', space=vmem, size = 0x100000, scoped, tag = 'input window, operand 4, single buffered']
    #allocation11 [shape = 'u8[524288]{0}', space=vmem, size = 0x80000, scoped, tag = 'input window, operand 5, single buffered']
    #allocation12 [shape = 's32[1]{0}', space=sflag, size = 0x4, scoped, tag = 'scoped memory for tpu_custom_call.1']
    #allocation13 [shape = 'u8[23040]{0}', space=vmem, size = 0x5c00, scoped, tag = 'input window, operand 6, single buffered']
    #allocation14 [shape = 'u8[8192]{0}', space=vmem, size = 0x2000, scoped, tag = 'output window, operand 0, single buffered']
    %12 = vsyncpa [#allocation3], 0
    %13 = vsyncpa [#allocation6], 0
    %14 = vsyncpa [#allocation9], 0
    %15 = vsyncpa [#allocation12], 0
    %16 = vsyncpa [#allocation4], 0
    // Predicated region
    $region2: #{tpu_custom_call.1} parent=1 // pred_check
      _
    $region3: #{tpu_custom_call.1} parent=1 // pred_check_branch
      %18 = sbr.rel (0) target = $region5
    $region4: #{tpu_custom_call.1} parent=1 // pred_region
      %20 = vsyncadd [#allocation3], 0
      %s22 = sshll.u32 %s0, 4
      %s23 = int_to_ptr.hbm [resolvable:$true] %s22
      %s24 = sshll.u32 [#allocation2], 4
      %s25 = int_to_ptr.vmem [resolvable:$true] %s24
      %27 = dma.hbm_to_vmem [thread:$0]  %s23, 128, %s25, [#allocation3]
    $region5: #{tpu_custom_call.1} parent=1 // pred_fallthru
      _
    // Predicated region
    $region6: #{tpu_custom_call.1} parent=1 // pred_check
      _
    $region7: #{tpu_custom_call.1} parent=1 // pred_check_branch
      %29 = sbr.rel (0) target = $region9
    $region8: #{tpu_custom_call.1} parent=1 // pred_region
      %31 = vsyncadd [#allocation6], 0
      %s32 = sshll.u32 %s1, 4
      %s33 = int_to_ptr.hbm [resolvable:$true] %s32
      %s34 = sshll.u32 [#allocation5], 4
      %s35 = int_to_ptr.vmem [resolvable:$true] %s34
      %40 = dma.hbm_to_vmem [thread:$0]  %s33, 256, %s35, [#allocation6], 64, 64, 4
    $region9: #{tpu_custom_call.1} parent=1 // pred_fallthru
      _
    // Predicated region
    $region10: #{tpu_custom_call.1} parent=1 // pred_check
      _
    $region11: #{tpu_custom_call.1} parent=1 // pred_check_branch
      %42 = sbr.rel (0) target = $region13
    $region12: #{tpu_custom_call.1} parent=1 // pred_region
      %44 = vsyncadd [#allocation6], 0
      %s45 = sshll.u32 %s2, 4
      %s46 = int_to_ptr.hbm [resolvable:$true] %s45
      %s47 = sshll.u32 [#allocation7], 4
      %s48 = int_to_ptr.vmem [resolvable:$true] %s47
      %53 = dma.hbm_to_vmem [thread:$0]  %s46, 2048, %s48, [#allocation6], 128, 128, 8
    $region13: #{tpu_custom_call.1} parent=1 // pred_fallthru
      _
    // Predicated region
    $region14: #{tpu_custom_call.1} parent=1 // pred_check
      _
    $region15: #{tpu_custom_call.1} parent=1 // pred_check_branch
      %55 = sbr.rel (0) target = $region17
    $region16: #{tpu_custom_call.1} parent=1 // pred_region
      %57 = vsyncadd [#allocation9], 0
      %s58 = sshll.u32 %s3, 4
      %s59 = int_to_ptr.hbm [resolvable:$true] %s58
      %s60 = sshll.u32 [#allocation8], 4
      %s61 = int_to_ptr.vmem [resolvable:$true] %s60
      %66 = dma.hbm_to_vmem [thread:$0]  %s59, 8192, %s61, [#allocation9], 256, 256, 16
    $region17: #{tpu_custom_call.1} parent=1 // pred_fallthru
      _
    // Predicated region
    $region18: #{tpu_custom_call.1} parent=1 // pred_check
      _
    $region19: #{tpu_custom_call.1} parent=1 // pred_check_branch
      %68 = sbr.rel (0) target = $region21
    $region20: #{tpu_custom_call.1} parent=1 // pred_region
      %70 = vsyncadd [#allocation9], 0
      %s71 = sshll.u32 %s4, 4
      %s72 = int_to_ptr.hbm [resolvable:$true] %s71
      %s73 = sshll.u32 [#allocation10], 4
      %s74 = int_to_ptr.vmem [resolvable:$true] %s73
      %79 = dma.hbm_to_vmem [thread:$0]  %s72, 32768, %s74, [#allocation9], 512, 512, 32
    $region21: #{tpu_custom_call.1} parent=1 // pred_fallthru
      _
    // Predicated region
    $region22: #{tpu_custom_call.1} parent=1 // pred_check
      _
    $region23: #{tpu_custom_call.1} parent=1 // pred_check_branch
      %81 = sbr.rel (0) target = $region25
    $region24: #{tpu_custom_call.1} parent=1 // pred_region
      %83 = vsyncadd [#allocation12], 0
      %s84 = sshll.u32 %s5, 4
      %s85 = int_to_ptr.hbm [resolvable:$true] %s84
      %s86 = sshll.u32 [#allocation11], 4
      %s87 = int_to_ptr.vmem [resolvable:$true] %s86
      %92 = dma.hbm_to_vmem [thread:$0]  %s85, 16384, %s87, [#allocation12], 128, 128, 8
    $region25: #{tpu_custom_call.1} parent=1 // pred_fallthru
      _
    // Predicated region
    $region26: #{tpu_custom_call.1} parent=1 // pred_check
      _
    $region27: #{tpu_custom_call.1} parent=1 // pred_check_branch
      %94 = sbr.rel (0) target = $region29
    $region28: #{tpu_custom_call.1} parent=1 // pred_region
      %96 = vsyncadd [#allocation12], 0
      %s98 = sshll.u32 %s6, 4
      %s99 = int_to_ptr.hbm [resolvable:$true] %s98
      %s100 = sshll.u32 [#allocation13], 4
      %s101 = int_to_ptr.vmem [resolvable:$true] %s100
      %103 = dma.hbm_to_vmem [thread:$0]  %s99, 720, %s101, [#allocation12]
    $region29: #{tpu_custom_call.1} parent=1 // pred_fallthru
      _
    // Predicated region
    $region30: #{tpu_custom_call.1} parent=1 // pred_check
      _
    $region31: #{tpu_custom_call.1} parent=1 // pred_check_branch
      %105 = sbr.rel (0) target = $region33
    $region32: #{tpu_custom_call.1} parent=1 // pred_region
      %107 = dma.done [#allocation3], 128
    $region33: #{tpu_custom_call.1} parent=1 // pred_fallthru
      _
    // Predicated region
    $region34: #{tpu_custom_call.1} parent=1 // pred_check
      _
    $region35: #{tpu_custom_call.1} parent=1 // pred_check_branch
      %109 = sbr.rel (0) target = $region37
    $region36: #{tpu_custom_call.1} parent=1 // pred_region
      %111 = dma.done [#allocation6], 256
    $region37: #{tpu_custom_call.1} parent=1 // pred_fallthru
      _
    // Predicated region
    $region38: #{tpu_custom_call.1} parent=1 // pred_check
      _
    $region39: #{tpu_custom_call.1} parent=1 // pred_check_branch
      %113 = sbr.rel (0) target = $region41
    $region40: #{tpu_custom_call.1} parent=1 // pred_region
      %115 = dma.done [#allocation6], 2048
    $region41: #{tpu_custom_call.1} parent=1 // pred_fallthru
      _
    // Predicated region
    $region42: #{tpu_custom_call.1} parent=1 // pred_check
      _
    $region43: #{tpu_custom_call.1} parent=1 // pred_check_branch
      %117 = sbr.rel (0) target = $region45
    $region44: #{tpu_custom_call.1} parent=1 // pred_region
      %119 = dma.done [#allocation9], 8192
    $region45: #{tpu_custom_call.1} parent=1 // pred_fallthru
      _
    // Predicated region
    $region46: #{tpu_custom_call.1} parent=1 // pred_check
      _
    $region47: #{tpu_custom_call.1} parent=1 // pred_check_branch
      %121 = sbr.rel (0) target = $region49
    $region48: #{tpu_custom_call.1} parent=1 // pred_region
      %123 = dma.done [#allocation9], 32768
    $region49: #{tpu_custom_call.1} parent=1 // pred_fallthru
      _
    // Predicated region
    $region50: #{tpu_custom_call.1} parent=1 // pred_check
      _
    $region51: #{tpu_custom_call.1} parent=1 // pred_check_branch
      %125 = sbr.rel (0) target = $region53
    $region52: #{tpu_custom_call.1} parent=1 // pred_region
      %127 = dma.done [#allocation12], 16384
    $region53: #{tpu_custom_call.1} parent=1 // pred_fallthru
      _
    // Predicated region
    $region54: #{tpu_custom_call.1} parent=1 // pred_check
      _
    $region55: #{tpu_custom_call.1} parent=1 // pred_check_branch
      %129 = sbr.rel (0) target = $region57
    $region56: #{tpu_custom_call.1} parent=1 // pred_region
      %131 = dma.done [#allocation12], 720
    $region57: #{tpu_custom_call.1} parent=1 // pred_fallthru
      _
    %v133 = vld [vmem:[#allocation2] sm:$0xff]
    %v134 = vld [vmem:[#allocation13] sm:$0x1]
    %v135 = vpack.c.bf16 %v133, %v133
    %v136 = vld [vmem:[#allocation5] sm:$0xf]
    %v137 = vld [vmem:[#allocation5 + $0x4] sm:$0xf]
    %v138 = vld [vmem:[#allocation5 + $0x8] sm:$0xf]
    %v139 = vld [vmem:[#allocation5 + $0xc] sm:$0xf]
    %v141 = vperm.slane %v134, 0
    %v147 = vunpack.c.l.b16 %v136
    %v148 = vunpack.c.l.b16 %v137
    %v149 = vunpack.c.l.b16 %v138
    %v150 = vunpack.c.l.b16 %v139
    %v151 = vpack.c.b16 %v148, %v147
    %v152 = vpack.c.b16 %v150, %v149
    %vm155 = vcmask 261120
    %v157 = vsel %vm155, %v135, 0
    %159 = vmatpush.bf16.msra.mxu0 0
    %160 = vmatpush.bf16.msra.mxu0 0
    %161 = vmatpush.bf16.msra.mxu0 0
    %162 = vmatpush.bf16.msra.mxu0 0
    %163 = vmatpush.bf16.msra.mxu0 0
    %164 = vmatpush.bf16.msra.mxu0 0
    %165 = vmatpush.bf16.msra.mxu0 %v152
    %166 = vmatpush.bf16.msra.mxu0 %v151
    %167 = vmatmul.bf16.gmra.mxu0 %v157
    %v168 = vpop.f32.mrf.mxu0
    %v169 = vadd.f32 %v141, %v168
    %v170 = vpop.f32.mrf.mxu0
    %171 = vdwg.mxu0
    %vm172 = vcmp.gt.f32.partialorder %v169, 0.0
    %v173 = vmul.f32 %v169, 0.2
    %v174 = vsel %vm172, %v169, %v173
    %v175 = vld [vmem:[#allocation13 + $0x1] sm:$0x3]
    %v176 = vld [vmem:[#allocation13 + $0x3] sm:$0x3]
    %v177 = vld [vmem:[#allocation13 + $0x5] sm:$0x3]
    %v178 = vpack.c.bf16 %v174, %v174
    %v179 = vld [vmem:[#allocation7] sm:$0xff]
    %v180 = vld [vmem:[#allocation7 + $0x8] sm:$0xff]
    %v181 = vld [vmem:[#allocation7 + $0x10] sm:$0xff]
    %v182 = vld [vmem:[#allocation7 + $0x18] sm:$0xff]
    %v183 = vld [vmem:[#allocation7 + $0x20] sm:$0xff]
    %v184 = vld [vmem:[#allocation7 + $0x28] sm:$0xff]
    %v185 = vld [vmem:[#allocation7 + $0x30] sm:$0xff]
    %v186 = vld [vmem:[#allocation7 + $0x38] sm:$0xff]
    %v187 = vld [vmem:[#allocation7 + $0x40] sm:$0xff]
    %v188 = vld [vmem:[#allocation7 + $0x48] sm:$0xff]
    %v189 = vld [vmem:[#allocation7 + $0x50] sm:$0xff]
    %v190 = vld [vmem:[#allocation7 + $0x58] sm:$0xff]
    %v191 = vld [vmem:[#allocation7 + $0x60] sm:$0xff]
    %v192 = vld [vmem:[#allocation7 + $0x68] sm:$0xff]
    %v193 = vld [vmem:[#allocation7 + $0x70] sm:$0xff]
    %v194 = vld [vmem:[#allocation7 + $0x78] sm:$0xff]
    %v196 = vperm.slane %v175, 0
    %v197 = vperm.slane %v175, 1
    %v216 = vunpack.c.l.b16 %v179
    %v217 = vunpack.c.h.b16 %v179
    %v218 = vunpack.c.l.b16 %v180
    %v219 = vunpack.c.h.b16 %v180
    %v220 = vunpack.c.l.b16 %v181
    %v221 = vunpack.c.h.b16 %v181
    %v222 = vunpack.c.l.b16 %v182
    %v223 = vunpack.c.h.b16 %v182
    %v224 = vunpack.c.l.b16 %v183
    %v225 = vunpack.c.h.b16 %v183
    %v226 = vunpack.c.l.b16 %v184
    %v227 = vunpack.c.h.b16 %v184
    %v228 = vunpack.c.l.b16 %v185
    %v229 = vunpack.c.h.b16 %v185
    %v230 = vunpack.c.l.b16 %v186
    %v231 = vunpack.c.h.b16 %v186
    %v232 = vunpack.c.l.b16 %v187
    %v233 = vunpack.c.h.b16 %v187
    %v234 = vunpack.c.l.b16 %v188
    %v235 = vunpack.c.h.b16 %v188
    %v236 = vunpack.c.l.b16 %v189
    %v237 = vunpack.c.h.b16 %v189
    %v238 = vunpack.c.l.b16 %v190
    %v239 = vunpack.c.h.b16 %v190
    %v240 = vunpack.c.l.b16 %v191
    %v241 = vunpack.c.h.b16 %v191
    %v242 = vunpack.c.l.b16 %v192
    %v243 = vunpack.c.h.b16 %v192
    %v244 = vunpack.c.l.b16 %v193
    %v245 = vunpack.c.h.b16 %v193
    %v246 = vunpack.c.l.b16 %v194
    %v247 = vunpack.c.h.b16 %v194
    %v248 = vpack.c.b16 %v218, %v216
    %v249 = vpack.c.b16 %v219, %v217
    %v250 = vpack.c.b16 %v222, %v220
    %v251 = vpack.c.b16 %v223, %v221
    %v252 = vpack.c.b16 %v226, %v224
    %v253 = vpack.c.b16 %v227, %v225
    %v254 = vpack.c.b16 %v230, %v228
    %v255 = vpack.c.b16 %v231, %v229
    %v256 = vpack.c.b16 %v234, %v232
    %v257 = vpack.c.b16 %v235, %v233
    %v258 = vpack.c.b16 %v238, %v236
    %v259 = vpack.c.b16 %v239, %v237
    %v260 = vpack.c.b16 %v242, %v240
    %v261 = vpack.c.b16 %v243, %v241
    %v262 = vpack.c.b16 %v246, %v244
    %v263 = vpack.c.b16 %v247, %v245
    %280 = vmatpush.bf16.msra.mxu0 %v262
    %281 = vmatpush.bf16.msra.mxu0 %v260
    %282 = vmatpush.bf16.msra.mxu0 %v258
    %283 = vmatpush.bf16.msra.mxu0 %v256
    %284 = vmatpush.bf16.msra.mxu0 %v254
    %285 = vmatpush.bf16.msra.mxu0 %v252
    %286 = vmatpush.bf16.msra.mxu0 %v250
    %287 = vmatpush.bf16.msra.mxu0 %v248
    %288 = vmatmul.bf16.gmra.mxu0 %v178
    %v289 = vpop.f32.mrf.mxu0
    %v290 = vadd.f32 %v196, %v289
    %v291 = vpop.f32.mrf.mxu0
    %292 = vdwg.mxu0
    %293 = vmatpush.bf16.msra.mxu0 %v263
    %294 = vmatpush.bf16.msra.mxu0 %v261
    %295 = vmatpush.bf16.msra.mxu0 %v259
    %296 = vmatpush.bf16.msra.mxu0 %v257
    %297 = vmatpush.bf16.msra.mxu0 %v255
    %298 = vmatpush.bf16.msra.mxu0 %v253
    %299 = vmatpush.bf16.msra.mxu0 %v251
    %300 = vmatpush.bf16.msra.mxu0 %v249
    %301 = vmatmul.bf16.gmra.mxu0 %v178
    %v302 = vpop.f32.mrf.mxu0
    %v303 = vadd.f32 %v197, %v302
    %v304 = vpop.f32.mrf.mxu0
    %305 = vdwg.mxu0
    %v306 = vrot.slane %v290, 4
    %v307 = vadd.f32 %v290, %v306
    %v308 = vrot.slane %v307, 2
    %v309 = vadd.f32 %v307, %v308
    %v310 = vrot.slane %v309, 1
    %v311 = vadd.f32 %v309, %v310
    %v312 = vrot.slane %v303, 4
    %v313 = vadd.f32 %v303, %v312
    %v314 = vrot.slane %v313, 2
    %v315 = vadd.f32 %v313, %v314
    %v316 = vrot.slane %v315, 1
    %v317 = vadd.f32 %v315, %v316
    %v318 = vrcp.pop 8.0
    %v319 = vmul.f32 8.0, %v318
    %v320 = vsub.f32 1.0, %v319
    %v321 = vmul.f32 %v318, %v320
    %v322 = vadd.f32 %v318, %v321
    %vm323 = vweird.f32 %v318
    %v324 = vsel %vm323, %v318, %v322
    %v325 = vmul.f32 %v311, %v324
    %v326 = vmul.f32 %v317, %v324
    %v327 = vsub.f32 %v290, %v325
    %v328 = vsub.f32 %v303, %v326
    %v329 = vmul.f32 %v327, %v327
    %v330 = vmul.f32 %v328, %v328
    %v331 = vrot.slane %v329, 4
    %v332 = vadd.f32 %v329, %v331
    %v333 = vrot.slane %v332, 2
    %v334 = vadd.f32 %v332, %v333
    %v335 = vrot.slane %v334, 1
    %v336 = vadd.f32 %v334, %v335
    %v337 = vrot.slane %v330, 4
    %v338 = vadd.f32 %v330, %v337
    %v339 = vrot.slane %v338, 2
    %v340 = vadd.f32 %v338, %v339
    %v341 = vrot.slane %v340, 1
    %v342 = vadd.f32 %v340, %v341
    %v343 = vmul.f32 %v336, %v324
    %v344 = vmul.f32 %v342, %v324
    %v345 = vadd.f32 %v343, 0.8
    %v346 = vadd.f32 %v344, 0.8
    %v347 = vrsqrt.pop %v345
    %v348 = vmul.f32 %v347, %v345
    %v349 = vmul.f32 %v348, %v347
    %v350 = vmul.f32 0.5, %v349
    %v351 = vsub.f32 1.5, %v350
    %v352 = vmul.f32 %v347, %v351
    %vm353 = vweird.f32 %v345
    %vm354 = vweird.f32 %v347
    %vm355 = vmor %vm353, %vm354
    %v356 = vsel %vm355, %v347, %v352
    %v357 = vrsqrt.pop %v346
    %v358 = vmul.f32 %v357, %v346
    %v359 = vmul.f32 %v358, %v357
    %v360 = vmul.f32 0.5, %v359
    %v361 = vsub.f32 1.5, %v360
    %v362 = vmul.f32 %v357, %v361
    %vm363 = vweird.f32 %v346
    %vm364 = vweird.f32 %v357
    %vm365 = vmor %vm363, %vm364
    %v366 = vsel %vm365, %v357, %v362
    %v367 = vmul.f32 %v327, %v356
    %v368 = vmul.f32 %v328, %v366
    %v370 = vperm.slane %v176, 0
    %v371 = vperm.slane %v176, 1
    %v374 = vmul.f32 %v367, %v370
    %v375 = vmul.f32 %v368, %v371
    %v377 = vperm.slane %v177, 0
    %v378 = vperm.slane %v177, 1
    %v381 = vadd.f32 %v374, %v377
    %v382 = vadd.f32 %v375, %v378
    %vm383 = vcmp.gt.f32.partialorder %v381, 0.0
    %vm384 = vcmp.gt.f32.partialorder %v382, 0.0
    %v385 = vmul.f32 %v381, 0.2
    %v386 = vmul.f32 %v382, 0.2
    %v387 = vsel %vm383, %v381, %v385
    %v388 = vsel %vm384, %v382, %v386
    %v389 = vld [vmem:[#allocation13 + $0x7] sm:$0xf]
    %v390 = vld [vmem:[#allocation13 + $0xb] sm:$0xf]
    %v391 = vld [vmem:[#allocation13 + $0xf] sm:$0xf]
    %v392 = vpack.c.bf16 %v387, %v387
    %v393 = vpack.c.bf16 %v388, %v388
    %v394 = vld [vmem:[#allocation8] sm:$0xff]
    %v395 = vld [vmem:[#allocation8 + $0x8] sm:$0xff]
    %v396 = vld [vmem:[#allocation8 + $0x10] sm:$0xff]
    %v397 = vld [vmem:[#allocation8 + $0x18] sm:$0xff]
    %v398 = vld [vmem:[#allocation8 + $0x20] sm:$0xff]
    %v399 = vld [vmem:[#allocation8 + $0x28] sm:$0xff]
    %v400 = vld [vmem:[#allocation8 + $0x30] sm:$0xff]
    %v401 = vld [vmem:[#allocation8 + $0x38] sm:$0xff]
    %v402 = vld [vmem:[#allocation8 + $0x40] sm:$0xff]
    %v403 = vld [vmem:[#allocation8 + $0x48] sm:$0xff]
    %v404 = vld [vmem:[#allocation8 + $0x50] sm:$0xff]
    %v405 = vld [vmem:[#allocation8 + $0x58] sm:$0xff]
    %v406 = vld [vmem:[#allocation8 + $0x60] sm:$0xff]
    %v407 = vld [vmem:[#allocation8 + $0x68] sm:$0xff]
    %v408 = vld [vmem:[#allocation8 + $0x70] sm:$0xff]
    %v409 = vld [vmem:[#allocation8 + $0x78] sm:$0xff]
    %v410 = vld [vmem:[#allocation8 + $0x80] sm:$0xff]
    %v411 = vld [vmem:[#allocation8 + $0x88] sm:$0xff]
    %v412 = vld [vmem:[#allocation8 + $0x90] sm:$0xff]
    %v413 = vld [vmem:[#allocation8 + $0x98] sm:$0xff]
    %v414 = vld [vmem:[#allocation8 + $0xa0] sm:$0xff]
    %v415 = vld [vmem:[#allocation8 + $0xa8] sm:$0xff]
    %v416 = vld [vmem:[#allocation8 + $0xb0] sm:$0xff]
    %v417 = vld [vmem:[#allocation8 + $0xb8] sm:$0xff]
    %v418 = vld [vmem:[#allocation8 + $0xc0] sm:$0xff]
    %v419 = vld [vmem:[#allocation8 + $0xc8] sm:$0xff]
    %v420 = vld [vmem:[#allocation8 + $0xd0] sm:$0xff]
    %v421 = vld [vmem:[#allocation8 + $0xd8] sm:$0xff]
    %v422 = vld [vmem:[#allocation8 + $0xe0] sm:$0xff]
    %v423 = vld [vmem:[#allocation8 + $0xe8] sm:$0xff]
    %v424 = vld [vmem:[#allocation8 + $0xf0] sm:$0xff]
    %v425 = vld [vmem:[#allocation8 + $0xf8] sm:$0xff]
    %v426 = vld [vmem:[#allocation8 + $0x100] sm:$0xff]
    %v427 = vld [vmem:[#allocation8 + $0x108] sm:$0xff]
    %v428 = vld [vmem:[#allocation8 + $0x110] sm:$0xff]
    %v429 = vld [vmem:[#allocation8 + $0x118] sm:$0xff]
    %v430 = vld [vmem:[#allocation8 + $0x120] sm:$0xff]
    %v431 = vld [vmem:[#allocation8 + $0x128] sm:$0xff]
    %v432 = vld [vmem:[#allocation8 + $0x130] sm:$0xff]
    %v433 = vld [vmem:[#allocation8 + $0x138] sm:$0xff]
    %v434 = vld [vmem:[#allocation8 + $0x140] sm:$0xff]
    %v435 = vld [vmem:[#allocation8 + $0x148] sm:$0xff]
    %v436 = vld [vmem:[#allocation8 + $0x150] sm:$0xff]
    %v437 = vld [vmem:[#allocation8 + $0x158] sm:$0xff]
    %v438 = vld [vmem:[#allocation8 + $0x160] sm:$0xff]
    %v439 = vld [vmem:[#allocation8 + $0x168] sm:$0xff]
    %v440 = vld [vmem:[#allocation8 + $0x170] sm:$0xff]
    %v441 = vld [vmem:[#allocation8 + $0x178] sm:$0xff]
    %v442 = vld [vmem:[#allocation8 + $0x180] sm:$0xff]
    %v443 = vld [vmem:[#allocation8 + $0x188] sm:$0xff]
    %v444 = vld [vmem:[#allocation8 + $0x190] sm:$0xff]
    %v445 = vld [vmem:[#allocation8 + $0x198] sm:$0xff]
    %v446 = vld [vmem:[#allocation8 + $0x1a0] sm:$0xff]
    %v447 = vld [vmem:[#allocation8 + $0x1a8] sm:$0xff]
    %v448 = vld [vmem:[#allocation8 + $0x1b0] sm:$0xff]
    %v449 = vld [vmem:[#allocation8 + $0x1b8] sm:$0xff]
    %v450 = vld [vmem:[#allocation8 + $0x1c0] sm:$0xff]
    %v451 = vld [vmem:[#allocation8 + $0x1c8] sm:$0xff]
    %v452 = vld [vmem:[#allocation8 + $0x1d0] sm:$0xff]
    %v453 = vld [vmem:[#allocation8 + $0x1d8] sm:$0xff]
    %v454 = vld [vmem:[#allocation8 + $0x1e0] sm:$0xff]
    %v455 = vld [vmem:[#allocation8 + $0x1e8] sm:$0xff]
    %v456 = vld [vmem:[#allocation8 + $0x1f0] sm:$0xff]
    %v457 = vld [vmem:[#allocation8 + $0x1f8] sm:$0xff]
    %v459 = vperm.slane %v389, 0
    %v460 = vperm.slane %v389, 1
    %v461 = vperm.slane %v389, 2
    %v462 = vperm.slane %v389, 3
    %v531 = vunpack.c.l.b16 %v394
    %v532 = vunpack.c.h.b16 %v394
    %v533 = vunpack.c.l.b16 %v395
    %v534 = vunpack.c.h.b16 %v395
    %v535 = vunpack.c.l.b16 %v396
    %v536 = vunpack.c.h.b16 %v396
    %v537 = vunpack.c.l.b16 %v397
    %v538 = vunpack.c.h.b16 %v397
    %v539 = vunpack.c.l.b16 %v398
    %v540 = vunpack.c.h.b16 %v398
    %v541 = vunpack.c.l.b16 %v399
    %v542 = vunpack.c.h.b16 %v399
    %v543 = vunpack.c.l.b16 %v400
    %v544 = vunpack.c.h.b16 %v400
    %v545 = vunpack.c.l.b16 %v401
    %v546 = vunpack.c.h.b16 %v401
    %v547 = vunpack.c.l.b16 %v402
    %v548 = vunpack.c.h.b16 %v402
    %v549 = vunpack.c.l.b16 %v403
    %v550 = vunpack.c.h.b16 %v403
    %v551 = vunpack.c.l.b16 %v404
    %v552 = vunpack.c.h.b16 %v404
    %v553 = vunpack.c.l.b16 %v405
    %v554 = vunpack.c.h.b16 %v405
    %v555 = vunpack.c.l.b16 %v406
    %v556 = vunpack.c.h.b16 %v406
    %v557 = vunpack.c.l.b16 %v407
    %v558 = vunpack.c.h.b16 %v407
    %v559 = vunpack.c.l.b16 %v408
    %v560 = vunpack.c.h.b16 %v408
    %v561 = vunpack.c.l.b16 %v409
    %v562 = vunpack.c.h.b16 %v409
    %v563 = vunpack.c.l.b16 %v410
    %v564 = vunpack.c.h.b16 %v410
    %v565 = vunpack.c.l.b16 %v411
    %v566 = vunpack.c.h.b16 %v411
    %v567 = vunpack.c.l.b16 %v412
    %v568 = vunpack.c.h.b16 %v412
    %v569 = vunpack.c.l.b16 %v413
    %v570 = vunpack.c.h.b16 %v413
    %v571 = vunpack.c.l.b16 %v414
    %v572 = vunpack.c.h.b16 %v414
    %v573 = vunpack.c.l.b16 %v415
    %v574 = vunpack.c.h.b16 %v415
    %v575 = vunpack.c.l.b16 %v416
    %v576 = vunpack.c.h.b16 %v416
    %v577 = vunpack.c.l.b16 %v417
    %v578 = vunpack.c.h.b16 %v417
    %v579 = vunpack.c.l.b16 %v418
    %v580 = vunpack.c.h.b16 %v418
    %v581 = vunpack.c.l.b16 %v419
    %v582 = vunpack.c.h.b16 %v419
    %v583 = vunpack.c.l.b16 %v420
    %v584 = vunpack.c.h.b16 %v420
    %v585 = vunpack.c.l.b16 %v421
    %v586 = vunpack.c.h.b16 %v421
    %v587 = vunpack.c.l.b16 %v422
    %v588 = vunpack.c.h.b16 %v422
    %v589 = vunpack.c.l.b16 %v423
    %v590 = vunpack.c.h.b16 %v423
    %v591 = vunpack.c.l.b16 %v424
    %v592 = vunpack.c.h.b16 %v424
    %v593 = vunpack.c.l.b16 %v425
    %v594 = vunpack.c.h.b16 %v425
    %v595 = vunpack.c.l.b16 %v426
    %v596 = vunpack.c.h.b16 %v426
    %v597 = vunpack.c.l.b16 %v427
    %v598 = vunpack.c.h.b16 %v427
    %v599 = vunpack.c.l.b16 %v428
    %v600 = vunpack.c.h.b16 %v428
    %v601 = vunpack.c.l.b16 %v429
    %v602 = vunpack.c.h.b16 %v429
    %v603 = vunpack.c.l.b16 %v430
    %v604 = vunpack.c.h.b16 %v430
    %v605 = vunpack.c.l.b16 %v431
    %v606 = vunpack.c.h.b16 %v431
    %v607 = vunpack.c.l.b16 %v432
    %v608 = vunpack.c.h.b16 %v432
    %v609 = vunpack.c.l.b16 %v433
    %v610 = vunpack.c.h.b16 %v433
    %v611 = vunpack.c.l.b16 %v434
    %v612 = vunpack.c.h.b16 %v434
    %v613 = vunpack.c.l.b16 %v435
    %v614 = vunpack.c.h.b16 %v435
    %v615 = vunpack.c.l.b16 %v436
    %v616 = vunpack.c.h.b16 %v436
    %v617 = vunpack.c.l.b16 %v437
    %v618 = vunpack.c.h.b16 %v437
    %v619 = vunpack.c.l.b16 %v438
    %v620 = vunpack.c.h.b16 %v438
    %v621 = vunpack.c.l.b16 %v439
    %v622 = vunpack.c.h.b16 %v439
    %v623 = vunpack.c.l.b16 %v440
    %v624 = vunpack.c.h.b16 %v440
    %v625 = vunpack.c.l.b16 %v441
    %v626 = vunpack.c.h.b16 %v441
    %v627 = vunpack.c.l.b16 %v442
    %v628 = vunpack.c.h.b16 %v442
    %v629 = vunpack.c.l.b16 %v443
    %v630 = vunpack.c.h.b16 %v443
    %v631 = vunpack.c.l.b16 %v444
    %v632 = vunpack.c.h.b16 %v444
    %v633 = vunpack.c.l.b16 %v445
    %v634 = vunpack.c.h.b16 %v445
    %v635 = vunpack.c.l.b16 %v446
    %v636 = vunpack.c.h.b16 %v446
    %v637 = vunpack.c.l.b16 %v447
    %v638 = vunpack.c.h.b16 %v447
    %v639 = vunpack.c.l.b16 %v448
    %v640 = vunpack.c.h.b16 %v448
    %v641 = vunpack.c.l.b16 %v449
    %v642 = vunpack.c.h.b16 %v449
    %v643 = vunpack.c.l.b16 %v450
    %v644 = vunpack.c.h.b16 %v450
    %v645 = vunpack.c.l.b16 %v451
    %v646 = vunpack.c.h.b16 %v451
    %v647 = vunpack.c.l.b16 %v452
    %v648 = vunpack.c.h.b16 %v452
    %v649 = vunpack.c.l.b16 %v453
    %v650 = vunpack.c.h.b16 %v453
    %v651 = vunpack.c.l.b16 %v454
    %v652 = vunpack.c.h.b16 %v454
    %v653 = vunpack.c.l.b16 %v455
    %v654 = vunpack.c.h.b16 %v455
    %v655 = vunpack.c.l.b16 %v456
    %v656 = vunpack.c.h.b16 %v456
    %v657 = vunpack.c.l.b16 %v457
    %v658 = vunpack.c.h.b16 %v457
    %v659 = vpack.c.b16 %v535, %v531
    %v660 = vpack.c.b16 %v536, %v532
    %v661 = vpack.c.b16 %v537, %v533
    %v662 = vpack.c.b16 %v538, %v534
    %v663 = vpack.c.b16 %v543, %v539
    %v664 = vpack.c.b16 %v544, %v540
    %v665 = vpack.c.b16 %v545, %v541
    %v666 = vpack.c.b16 %v546, %v542
    %v667 = vpack.c.b16 %v551, %v547
    %v668 = vpack.c.b16 %v552, %v548
    %v669 = vpack.c.b16 %v553, %v549
    %v670 = vpack.c.b16 %v554, %v550
    %v671 = vpack.c.b16 %v559, %v555
    %v672 = vpack.c.b16 %v560, %v556
    %v673 = vpack.c.b16 %v561, %v557
    %v674 = vpack.c.b16 %v562, %v558
    %v675 = vpack.c.b16 %v567, %v563
    %v676 = vpack.c.b16 %v568, %v564
    %v677 = vpack.c.b16 %v569, %v565
    %v678 = vpack.c.b16 %v570, %v566
    %v679 = vpack.c.b16 %v575, %v571
    %v680 = vpack.c.b16 %v576, %v572
    %v681 = vpack.c.b16 %v577, %v573
    %v682 = vpack.c.b16 %v578, %v574
    %v683 = vpack.c.b16 %v583, %v579
    %v684 = vpack.c.b16 %v584, %v580
    %v685 = vpack.c.b16 %v585, %v581
    %v686 = vpack.c.b16 %v586, %v582
    %v687 = vpack.c.b16 %v591, %v587
    %v688 = vpack.c.b16 %v592, %v588
    %v689 = vpack.c.b16 %v593, %v589
    %v690 = vpack.c.b16 %v594, %v590
    %v691 = vpack.c.b16 %v599, %v595
    %v692 = vpack.c.b16 %v600, %v596
    %v693 = vpack.c.b16 %v601, %v597
    %v694 = vpack.c.b16 %v602, %v598
    %v695 = vpack.c.b16 %v607, %v603
    %v696 = vpack.c.b16 %v608, %v604
    %v697 = vpack.c.b16 %v609, %v605
    %v698 = vpack.c.b16 %v610, %v606
    %v699 = vpack.c.b16 %v615, %v611
    %v700 = vpack.c.b16 %v616, %v612
    %v701 = vpack.c.b16 %v617, %v613
    %v702 = vpack.c.b16 %v618, %v614
    %v703 = vpack.c.b16 %v623, %v619
    %v704 = vpack.c.b16 %v624, %v620
    %v705 = vpack.c.b16 %v625, %v621
    %v706 = vpack.c.b16 %v626, %v622
    %v707 = vpack.c.b16 %v631, %v627
    %v708 = vpack.c.b16 %v632, %v628
    %v709 = vpack.c.b16 %v633, %v629
    %v710 = vpack.c.b16 %v634, %v630
    %v711 = vpack.c.b16 %v639, %v635
    %v712 = vpack.c.b16 %v640, %v636
    %v713 = vpack.c.b16 %v641, %v637
    %v714 = vpack.c.b16 %v642, %v638
    %v715 = vpack.c.b16 %v647, %v643
    %v716 = vpack.c.b16 %v648, %v644
    %v717 = vpack.c.b16 %v649, %v645
    %v718 = vpack.c.b16 %v650, %v646
    %v719 = vpack.c.b16 %v655, %v651
    %v720 = vpack.c.b16 %v656, %v652
    %v721 = vpack.c.b16 %v657, %v653
    %v722 = vpack.c.b16 %v658, %v654
    %787 = vmatpush.bf16.msra.mxu0 %v687
    %788 = vmatpush.bf16.msra.mxu0 %v683
    %789 = vmatpush.bf16.msra.mxu0 %v679
    %790 = vmatpush.bf16.msra.mxu0 %v675
    %791 = vmatpush.bf16.msra.mxu0 %v671
    %792 = vmatpush.bf16.msra.mxu0 %v667
    %793 = vmatpush.bf16.msra.mxu0 %v663
    %794 = vmatpush.bf16.msra.mxu0 %v659
    %795 = vmatmul.bf16.gmra.mxu0 %v392
    %v796 = vpop.f32.mrf.mxu0
    %v797 = vadd.f32 %v459, %v796
    %v798 = vpop.f32.mrf.mxu0
    %799 = vdwg.mxu0
    %800 = vmatpush.bf16.msra.mxu0 %v719
    %801 = vmatpush.bf16.msra.mxu0 %v715
    %802 = vmatpush.bf16.msra.mxu0 %v711
    %803 = vmatpush.bf16.msra.mxu0 %v707
    %804 = vmatpush.bf16.msra.mxu0 %v703
    %805 = vmatpush.bf16.msra.mxu0 %v699
    %806 = vmatpush.bf16.msra.mxu0 %v695
    %807 = vmatpush.bf16.msra.mxu0 %v691
    %808 = vmatmul.bf16.gmra.mxu0 %v393
    %v809 = vpop.f32.mrf.mxu0
    %v810 = vadd.f32 %v797, %v809
    %v811 = vpop.f32.mrf.mxu0
    %812 = vdwg.mxu0
    %813 = vmatpush.bf16.msra.mxu0 %v688
    %814 = vmatpush.bf16.msra.mxu0 %v684
    %815 = vmatpush.bf16.msra.mxu0 %v680
    %816 = vmatpush.bf16.msra.mxu0 %v676
    %817 = vmatpush.bf16.msra.mxu0 %v672
    %818 = vmatpush.bf16.msra.mxu0 %v668
    %819 = vmatpush.bf16.msra.mxu0 %v664
    %820 = vmatpush.bf16.msra.mxu0 %v660
    %821 = vmatmul.bf16.gmra.mxu0 %v392
    %v822 = vpop.f32.mrf.mxu0
    %v823 = vadd.f32 %v460, %v822
    %v824 = vpop.f32.mrf.mxu0
    %825 = vdwg.mxu0
    %826 = vmatpush.bf16.msra.mxu0 %v720
    %827 = vmatpush.bf16.msra.mxu0 %v716
    %828 = vmatpush.bf16.msra.mxu0 %v712
    %829 = vmatpush.bf16.msra.mxu0 %v708
    %830 = vmatpush.bf16.msra.mxu0 %v704
    %831 = vmatpush.bf16.msra.mxu0 %v700
    %832 = vmatpush.bf16.msra.mxu0 %v696
    %833 = vmatpush.bf16.msra.mxu0 %v692
    %834 = vmatmul.bf16.gmra.mxu0 %v393
    %v835 = vpop.f32.mrf.mxu0
    %v836 = vadd.f32 %v823, %v835
    %v837 = vpop.f32.mrf.mxu0
    %838 = vdwg.mxu0
    %839 = vmatpush.bf16.msra.mxu0 %v689
    %840 = vmatpush.bf16.msra.mxu0 %v685
    %841 = vmatpush.bf16.msra.mxu0 %v681
    %842 = vmatpush.bf16.msra.mxu0 %v677
    %843 = vmatpush.bf16.msra.mxu0 %v673
    %844 = vmatpush.bf16.msra.mxu0 %v669
    %845 = vmatpush.bf16.msra.mxu0 %v665
    %846 = vmatpush.bf16.msra.mxu0 %v661
    %847 = vmatmul.bf16.gmra.mxu0 %v392
    %v848 = vpop.f32.mrf.mxu0
    %v849 = vadd.f32 %v461, %v848
    %v850 = vpop.f32.mrf.mxu0
    %851 = vdwg.mxu0
    %852 = vmatpush.bf16.msra.mxu0 %v721
    %853 = vmatpush.bf16.msra.mxu0 %v717
    %854 = vmatpush.bf16.msra.mxu0 %v713
    %855 = vmatpush.bf16.msra.mxu0 %v709
    %856 = vmatpush.bf16.msra.mxu0 %v705
    %857 = vmatpush.bf16.msra.mxu0 %v701
    %858 = vmatpush.bf16.msra.mxu0 %v697
    %859 = vmatpush.bf16.msra.mxu0 %v693
    %860 = vmatmul.bf16.gmra.mxu0 %v393
    %v861 = vpop.f32.mrf.mxu0
    %v862 = vadd.f32 %v849, %v861
    %v863 = vpop.f32.mrf.mxu0
    %864 = vdwg.mxu0
    %865 = vmatpush.bf16.msra.mxu0 %v690
    %866 = vmatpush.bf16.msra.mxu0 %v686
    %867 = vmatpush.bf16.msra.mxu0 %v682
    %868 = vmatpush.bf16.msra.mxu0 %v678
    %869 = vmatpush.bf16.msra.mxu0 %v674
    %870 = vmatpush.bf16.msra.mxu0 %v670
    %871 = vmatpush.bf16.msra.mxu0 %v666
    %872 = vmatpush.bf16.msra.mxu0 %v662
    %873 = vmatmul.bf16.gmra.mxu0 %v392
    %v874 = vpop.f32.mrf.mxu0
    %v875 = vadd.f32 %v462, %v874
    %v876 = vpop.f32.mrf.mxu0
    %877 = vdwg.mxu0
    %878 = vmatpush.bf16.msra.mxu0 %v722
    %879 = vmatpush.bf16.msra.mxu0 %v718
    %880 = vmatpush.bf16.msra.mxu0 %v714
    %881 = vmatpush.bf16.msra.mxu0 %v710
    %882 = vmatpush.bf16.msra.mxu0 %v706
    %883 = vmatpush.bf16.msra.mxu0 %v702
    %884 = vmatpush.bf16.msra.mxu0 %v698
    %885 = vmatpush.bf16.msra.mxu0 %v694
    %886 = vmatmul.bf16.gmra.mxu0 %v393
    %v887 = vpop.f32.mrf.mxu0
    %v888 = vadd.f32 %v875, %v887
    %v889 = vpop.f32.mrf.mxu0
    %890 = vdwg.mxu0
    %v891 = vrot.slane %v810, 4
    %v892 = vadd.f32 %v810, %v891
    %v893 = vrot.slane %v892, 2
    %v894 = vadd.f32 %v892, %v893
    %v895 = vrot.slane %v894, 1
    %v896 = vadd.f32 %v894, %v895
    %v897 = vrot.slane %v836, 4
    %v898 = vadd.f32 %v836, %v897
    %v899 = vrot.slane %v898, 2
    %v900 = vadd.f32 %v898, %v899
    %v901 = vrot.slane %v900, 1
    %v902 = vadd.f32 %v900, %v901
    %v903 = vrot.slane %v862, 4
    %v904 = vadd.f32 %v862, %v903
    %v905 = vrot.slane %v904, 2
    %v906 = vadd.f32 %v904, %v905
    %v907 = vrot.slane %v906, 1
    %v908 = vadd.f32 %v906, %v907
    %v909 = vrot.slane %v888, 4
    %v910 = vadd.f32 %v888, %v909
    %v911 = vrot.slane %v910, 2
    %v912 = vadd.f32 %v910, %v911
    %v913 = vrot.slane %v912, 1
    %v914 = vadd.f32 %v912, %v913
    %v915 = vmul.f32 %v896, %v324
    %v916 = vmul.f32 %v902, %v324
    %v917 = vmul.f32 %v908, %v324
    %v918 = vmul.f32 %v914, %v324
    %v919 = vsub.f32 %v810, %v915
    %v920 = vsub.f32 %v836, %v916
    %v921 = vsub.f32 %v862, %v917
    %v922 = vsub.f32 %v888, %v918
    %v923 = vmul.f32 %v919, %v919
    %v924 = vmul.f32 %v920, %v920
    %v925 = vmul.f32 %v921, %v921
    %v926 = vmul.f32 %v922, %v922
    %v927 = vrot.slane %v923, 4
    %v928 = vadd.f32 %v923, %v927
    %v929 = vrot.slane %v928, 2
    %v930 = vadd.f32 %v928, %v929
    %v931 = vrot.slane %v930, 1
    %v932 = vadd.f32 %v930, %v931
    %v933 = vrot.slane %v924, 4
    %v934 = vadd.f32 %v924, %v933
    %v935 = vrot.slane %v934, 2
    %v936 = vadd.f32 %v934, %v935
    %v937 = vrot.slane %v936, 1
    %v938 = vadd.f32 %v936, %v937
    %v939 = vrot.slane %v925, 4
    %v940 = vadd.f32 %v925, %v939
    %v941 = vrot.slane %v940, 2
    %v942 = vadd.f32 %v940, %v941
    %v943 = vrot.slane %v942, 1
    %v944 = vadd.f32 %v942, %v943
    %v945 = vrot.slane %v926, 4
    %v946 = vadd.f32 %v926, %v945
    %v947 = vrot.slane %v946, 2
    %v948 = vadd.f32 %v946, %v947
    %v949 = vrot.slane %v948, 1
    %v950 = vadd.f32 %v948, %v949
    %v951 = vmul.f32 %v932, %v324
    %v952 = vmul.f32 %v938, %v324
    %v953 = vmul.f32 %v944, %v324
    %v954 = vmul.f32 %v950, %v324
    %v955 = vadd.f32 %v951, 0.8
    %v956 = vadd.f32 %v952, 0.8
    %v957 = vadd.f32 %v953, 0.8
    %v958 = vadd.f32 %v954, 0.8
    %v959 = vrsqrt.pop %v955
    %v960 = vmul.f32 %v959, %v955
    %v961 = vmul.f32 %v960, %v959
    %v962 = vmul.f32 0.5, %v961
    %v963 = vsub.f32 1.5, %v962
    %v964 = vmul.f32 %v959, %v963
    %vm965 = vweird.f32 %v955
    %vm966 = vweird.f32 %v959
    %vm967 = vmor %vm965, %vm966
    %v968 = vsel %vm967, %v959, %v964
    %v969 = vrsqrt.pop %v956
    %v970 = vmul.f32 %v969, %v956
    %v971 = vmul.f32 %v970, %v969
    %v972 = vmul.f32 0.5, %v971
    %v973 = vsub.f32 1.5, %v972
    %v974 = vmul.f32 %v969, %v973
    %vm975 = vweird.f32 %v956
    %vm976 = vweird.f32 %v969
    %vm977 = vmor %vm975, %vm976
    %v978 = vsel %vm977, %v969, %v974
    %v979 = vrsqrt.pop %v957
    %v980 = vmul.f32 %v979, %v957
    %v981 = vmul.f32 %v980, %v979
    %v982 = vmul.f32 0.5, %v981
    %v983 = vsub.f32 1.5, %v982
    %v984 = vmul.f32 %v979, %v983
    %vm985 = vweird.f32 %v957
    %vm986 = vweird.f32 %v979
    %vm987 = vmor %vm985, %vm986
    %v988 = vsel %vm987, %v979, %v984
    %v989 = vrsqrt.pop %v958
    %v990 = vmul.f32 %v989, %v958
    %v991 = vmul.f32 %v990, %v989
    %v992 = vmul.f32 0.5, %v991
    %v993 = vsub.f32 1.5, %v992
    %v994 = vmul.f32 %v989, %v993
    %vm995 = vweird.f32 %v958
    %vm996 = vweird.f32 %v989
    %vm997 = vmor %vm995, %vm996
    %v998 = vsel %vm997, %v989, %v994
    %v999 = vmul.f32 %v919, %v968
    %v1000 = vmul.f32 %v920, %v978
    %v1001 = vmul.f32 %v921, %v988
    %v1002 = vmul.f32 %v922, %v998
    %v1004 = vperm.slane %v390, 0
    %v1005 = vperm.slane %v390, 1
    %v1006 = vperm.slane %v390, 2
    %v1007 = vperm.slane %v390, 3
    %v1012 = vmul.f32 %v999, %v1004
    %v1013 = vmul.f32 %v1000, %v1005
    %v1014 = vmul.f32 %v1001, %v1006
    %v1015 = vmul.f32 %v1002, %v1007
    %v1017 = vperm.slane %v391, 0
    %v1018 = vperm.slane %v391, 1
    %v1019 = vperm.slane %v391, 2
    %v1020 = vperm.slane %v391, 3
    %v1025 = vadd.f32 %v1012, %v1017
    %v1026 = vadd.f32 %v1013, %v1018
    %v1027 = vadd.f32 %v1014, %v1019
    %v1028 = vadd.f32 %v1015, %v1020
    %vm1029 = vcmp.gt.f32.partialorder %v1025, 0.0
    %vm1030 = vcmp.gt.f32.partialorder %v1026, 0.0
    %vm1031 = vcmp.gt.f32.partialorder %v1027, 0.0
    %vm1032 = vcmp.gt.f32.partialorder %v1028, 0.0
    %v1033 = vmul.f32 %v1025, 0.2
    %v1034 = vmul.f32 %v1026, 0.2
    %v1035 = vmul.f32 %v1027, 0.2
    %v1036 = vmul.f32 %v1028, 0.2
    %v1037 = vsel %vm1029, %v1025, %v1033
    %v1038 = vsel %vm1030, %v1026, %v1034
    %v1039 = vsel %vm1031, %v1027, %v1035
    %v1040 = vsel %vm1032, %v1028, %v1036
    %v1041 = vld [vmem:[#allocation13 + $0x13] sm:$0xff]
    %v1042 = vld [vmem:[#allocation13 + $0x1b] sm:$0xff]
    %v1043 = vld [vmem:[#allocation13 + $0x23] sm:$0xff]
    %v1044 = vpack.c.bf16 %v1037, %v1037
    %v1045 = vpack.c.bf16 %v1038, %v1038
    %v1046 = vpack.c.bf16 %v1039, %v1039
    %v1047 = vpack.c.bf16 %v1040, %v1040
    %v1048 = vld [vmem:[#allocation10] sm:$0xff]
    %v1049 = vld [vmem:[#allocation10 + $0x8] sm:$0xff]
    %v1050 = vld [vmem:[#allocation10 + $0x10] sm:$0xff]
    %v1051 = vld [vmem:[#allocation10 + $0x18] sm:$0xff]
    %v1052 = vld [vmem:[#allocation10 + $0x20] sm:$0xff]
    %v1053 = vld [vmem:[#allocation10 + $0x28] sm:$0xff]
    %v1054 = vld [vmem:[#allocation10 + $0x30] sm:$0xff]
    %v1055 = vld [vmem:[#allocation10 + $0x38] sm:$0xff]
    %v1056 = vld [vmem:[#allocation10 + $0x40] sm:$0xff]
    %v1057 = vld [vmem:[#allocation10 + $0x48] sm:$0xff]
    %v1058 = vld [vmem:[#allocation10 + $0x50] sm:$0xff]
    %v1059 = vld [vmem:[#allocation10 + $0x58] sm:$0xff]
    %v1060 = vld [vmem:[#allocation10 + $0x60] sm:$0xff]
    %v1061 = vld [vmem:[#allocation10 + $0x68] sm:$0xff]
    %v1062 = vld [vmem:[#allocation10 + $0x70] sm:$0xff]
    %v1063 = vld [vmem:[#allocation10 + $0x78] sm:$0xff]
    %v1064 = vld [vmem:[#allocation10 + $0x80] sm:$0xff]
    %v1065 = vld [vmem:[#allocation10 + $0x88] sm:$0xff]
    %v1066 = vld [vmem:[#allocation10 + $0x90] sm:$0xff]
    %v1067 = vld [vmem:[#allocation10 + $0x98] sm:$0xff]
    %v1068 = vld [vmem:[#allocation10 + $0xa0] sm:$0xff]
    %v1069 = vld [vmem:[#allocation10 + $0xa8] sm:$0xff]
    %v1070 = vld [vmem:[#allocation10 + $0xb0] sm:$0xff]
    %v1071 = vld [vmem:[#allocation10 + $0xb8] sm:$0xff]
    %v1072 = vld [vmem:[#allocation10 + $0xc0] sm:$0xff]
    %v1073 = vld [vmem:[#allocation10 + $0xc8] sm:$0xff]
    %v1074 = vld [vmem:[#allocation10 + $0xd0] sm:$0xff]
    %v1075 = vld [vmem:[#allocation10 + $0xd8] sm:$0xff]
    %v1076 = vld [vmem:[#allocation10 + $0xe0] sm:$0xff]
    %v1077 = vld [vmem:[#allocation10 + $0xe8] sm:$0xff]
    %v1078 = vld [vmem:[#allocation10 + $0xf0] sm:$0xff]
    %v1079 = vld [vmem:[#allocation10 + $0xf8] sm:$0xff]
    %v1080 = vld [vmem:[#allocation10 + $0x100] sm:$0xff]
    %v1081 = vld [vmem:[#allocation10 + $0x108] sm:$0xff]
    %v1082 = vld [vmem:[#allocation10 + $0x110] sm:$0xff]
    %v1083 = vld [vmem:[#allocation10 + $0x118] sm:$0xff]
    %v1084 = vld [vmem:[#allocation10 + $0x120] sm:$0xff]
    %v1085 = vld [vmem:[#allocation10 + $0x128] sm:$0xff]
    %v1086 = vld [vmem:[#allocation10 + $0x130] sm:$0xff]
    %v1087 = vld [vmem:[#allocation10 + $0x138] sm:$0xff]
    %v1088 = vld [vmem:[#allocation10 + $0x140] sm:$0xff]
    %v1089 = vld [vmem:[#allocation10 + $0x148] sm:$0xff]
    %v1090 = vld [vmem:[#allocation10 + $0x150] sm:$0xff]
    %v1091 = vld [vmem:[#allocation10 + $0x158] sm:$0xff]
    %v1092 = vld [vmem:[#allocation10 + $0x160] sm:$0xff]
    %v1093 = vld [vmem:[#allocation10 + $0x168] sm:$0xff]
    %v1094 = vld [vmem:[#allocation10 + $0x170] sm:$0xff]
    %v1095 = vld [vmem:[#allocation10 + $0x178] sm:$0xff]
    %v1096 = vld [vmem:[#allocation10 + $0x180] sm:$0xff]
    %v1097 = vld [vmem:[#allocation10 + $0x188] sm:$0xff]
    %v1098 = vld [vmem:[#allocation10 + $0x190] sm:$0xff]
    %v1099 = vld [vmem:[#allocation10 + $0x198] sm:$0xff]
    %v1100 = vld [vmem:[#allocation10 + $0x1a0] sm:$0xff]
    %v1101 = vld [vmem:[#allocation10 + $0x1a8] sm:$0xff]
    %v1102 = vld [vmem:[#allocation10 + $0x1b0] sm:$0xff]
    %v1103 = vld [vmem:[#allocation10 + $0x1b8] sm:$0xff]
    %v1104 = vld [vmem:[#allocation10 + $0x1c0] sm:$0xff]
    %v1105 = vld [vmem:[#allocation10 + $0x1c8] sm:$0xff]
    %v1106 = vld [vmem:[#allocation10 + $0x1d0] sm:$0xff]
    %v1107 = vld [vmem:[#allocation10 + $0x1d8] sm:$0xff]
    %v1108 = vld [vmem:[#allocation10 + $0x1e0] sm:$0xff]
    %v1109 = vld [vmem:[#allocation10 + $0x1e8] sm:$0xff]
    %v1110 = vld [vmem:[#allocation10 + $0x1f0] sm:$0xff]
    %v1111 = vld [vmem:[#allocation10 + $0x1f8] sm:$0xff]
    %v1112 = vld [vmem:[#allocation10 + $0x200] sm:$0xff]
    %v1113 = vld [vmem:[#allocation10 + $0x208] sm:$0xff]
    %v1114 = vld [vmem:[#allocation10 + $0x210] sm:$0xff]
    %v1115 = vld [vmem:[#allocation10 + $0x218] sm:$0xff]
    %v1116 = vld [vmem:[#allocation10 + $0x220] sm:$0xff]
    %v1117 = vld [vmem:[#allocation10 + $0x228] sm:$0xff]
    %v1118 = vld [vmem:[#allocation10 + $0x230] sm:$0xff]
    %v1119 = vld [vmem:[#allocation10 + $0x238] sm:$0xff]
    %v1120 = vld [vmem:[#allocation10 + $0x240] sm:$0xff]
    %v1121 = vld [vmem:[#allocation10 + $0x248] sm:$0xff]
    %v1122 = vld [vmem:[#allocation10 + $0x250] sm:$0xff]
    %v1123 = vld [vmem:[#allocation10 + $0x258] sm:$0xff]
    %v1124 = vld [vmem:[#allocation10 + $0x260] sm:$0xff]
    %v1125 = vld [vmem:[#allocation10 + $0x268] sm:$0xff]
    %v1126 = vld [vmem:[#allocation10 + $0x270] sm:$0xff]
    %v1127 = vld [vmem:[#allocation10 + $0x278] sm:$0xff]
    %v1128 = vld [vmem:[#allocation10 + $0x280] sm:$0xff]
    %v1129 = vld [vmem:[#allocation10 + $0x288] sm:$0xff]
    %v1130 = vld [vmem:[#allocation10 + $0x290] sm:$0xff]
    %v1131 = vld [vmem:[#allocation10 + $0x298] sm:$0xff]
    %v1132 = vld [vmem:[#allocation10 + $0x2a0] sm:$0xff]
    %v1133 = vld [vmem:[#allocation10 + $0x2a8] sm:$0xff]
    %v1134 = vld [vmem:[#allocation10 + $0x2b0] sm:$0xff]
    %v1135 = vld [vmem:[#allocation10 + $0x2b8] sm:$0xff]
    %v1136 = vld [vmem:[#allocation10 + $0x2c0] sm:$0xff]
    %v1137 = vld [vmem:[#allocation10 + $0x2c8] sm:$0xff]
    %v1138 = vld [vmem:[#allocation10 + $0x2d0] sm:$0xff]
    %v1139 = vld [vmem:[#allocation10 + $0x2d8] sm:$0xff]
    %v1140 = vld [vmem:[#allocation10 + $0x2e0] sm:$0xff]
    %v1141 = vld [vmem:[#allocation10 + $0x2e8] sm:$0xff]
    %v1142 = vld [vmem:[#allocation10 + $0x2f0] sm:$0xff]
    %v1143 = vld [vmem:[#allocation10 + $0x2f8] sm:$0xff]
    %v1144 = vld [vmem:[#allocation10 + $0x300] sm:$0xff]
    %v1145 = vld [vmem:[#allocation10 + $0x308] sm:$0xff]
    %v1146 = vld [vmem:[#allocation10 + $0x310] sm:$0xff]
    %v1147 = vld [vmem:[#allocation10 + $0x318] sm:$0xff]
    %v1148 = vld [vmem:[#allocation10 + $0x320] sm:$0xff]
    %v1149 = vld [vmem:[#allocation10 + $0x328] sm:$0xff]
    %v1150 = vld [vmem:[#allocation10 + $0x330] sm:$0xff]
    %v1151 = vld [vmem:[#allocation10 + $0x338] sm:$0xff]
    %v1152 = vld [vmem:[#allocation10 + $0x340] sm:$0xff]
    %v1153 = vld [vmem:[#allocation10 + $0x348] sm:$0xff]
    %v1154 = vld [vmem:[#allocation10 + $0x350] sm:$0xff]
    %v1155 = vld [vmem:[#allocation10 + $0x358] sm:$0xff]
    %v1156 = vld [vmem:[#allocation10 + $0x360] sm:$0xff]
    %v1157 = vld [vmem:[#allocation10 + $0x368] sm:$0xff]
    %v1158 = vld [vmem:[#allocation10 + $0x370] sm:$0xff]
    %v1159 = vld [vmem:[#allocation10 + $0x378] sm:$0xff]
    %v1160 = vld [vmem:[#allocation10 + $0x380] sm:$0xff]
    %v1161 = vld [vmem:[#allocation10 + $0x388] sm:$0xff]
    %v1162 = vld [vmem:[#allocation10 + $0x390] sm:$0xff]
    %v1163 = vld [vmem:[#allocation10 + $0x398] sm:$0xff]
    %v1164 = vld [vmem:[#allocation10 + $0x3a0] sm:$0xff]
    %v1165 = vld [vmem:[#allocation10 + $0x3a8] sm:$0xff]
    %v1166 = vld [vmem:[#allocation10 + $0x3b0] sm:$0xff]
    %v1167 = vld [vmem:[#allocation10 + $0x3b8] sm:$0xff]
    %v1168 = vld [vmem:[#allocation10 + $0x3c0] sm:$0xff]
    %v1169 = vld [vmem:[#allocation10 + $0x3c8] sm:$0xff]
    %v1170 = vld [vmem:[#allocation10 + $0x3d0] sm:$0xff]
    %v1171 = vld [vmem:[#allocation10 + $0x3d8] sm:$0xff]
    %v1172 = vld [vmem:[#allocation10 + $0x3e0] sm:$0xff]
    %v1173 = vld [vmem:[#allocation10 + $0x3e8] sm:$0xff]
    %v1174 = vld [vmem:[#allocation10 + $0x3f0] sm:$0xff]
    %v1175 = vld [vmem:[#allocation10 + $0x3f8] sm:$0xff]
    %v1176 = vld [vmem:[#allocation10 + $0x400] sm:$0xff]
    %v1177 = vld [vmem:[#allocation10 + $0x408] sm:$0xff]
    %v1178 = vld [vmem:[#allocation10 + $0x410] sm:$0xff]
    %v1179 = vld [vmem:[#allocation10 + $0x418] sm:$0xff]
    %v1180 = vld [vmem:[#allocation10 + $0x420] sm:$0xff]
    %v1181 = vld [vmem:[#allocation10 + $0x428] sm:$0xff]
    %v1182 = vld [vmem:[#allocation10 + $0x430] sm:$0xff]
    %v1183 = vld [vmem:[#allocation10 + $0x438] sm:$0xff]
    %v1184 = vld [vmem:[#allocation10 + $0x440] sm:$0xff]
    %v1185 = vld [vmem:[#allocation10 + $0x448] sm:$0xff]
    %v1186 = vld [vmem:[#allocation10 + $0x450] sm:$0xff]
    %v1187 = vld [vmem:[#allocation10 + $0x458] sm:$0xff]
    %v1188 = vld [vmem:[#allocation10 + $0x460] sm:$0xff]
    %v1189 = vld [vmem:[#allocation10 + $0x468] sm:$0xff]
    %v1190 = vld [vmem:[#allocation10 + $0x470] sm:$0xff]
    %v1191 = vld [vmem:[#allocation10 + $0x478] sm:$0xff]
    %v1192 = vld [vmem:[#allocation10 + $0x480] sm:$0xff]
    %v1193 = vld [vmem:[#allocation10 + $0x488] sm:$0xff]
    %v1194 = vld [vmem:[#allocation10 + $0x490] sm:$0xff]
    %v1195 = vld [vmem:[#allocation10 + $0x498] sm:$0xff]
    %v1196 = vld [vmem:[#allocation10 + $0x4a0] sm:$0xff]
    %v1197 = vld [vmem:[#allocation10 + $0x4a8] sm:$0xff]
    %v1198 = vld [vmem:[#allocation10 + $0x4b0] sm:$0xff]
    %v1199 = vld [vmem:[#allocation10 + $0x4b8] sm:$0xff]
    %v1200 = vld [vmem:[#allocation10 + $0x4c0] sm:$0xff]
    %v1201 = vld [vmem:[#allocation10 + $0x4c8] sm:$0xff]
    %v1202 = vld [vmem:[#allocation10 + $0x4d0] sm:$0xff]
    %v1203 = vld [vmem:[#allocation10 + $0x4d8] sm:$0xff]
    %v1204 = vld [vmem:[#allocation10 + $0x4e0] sm:$0xff]
    %v1205 = vld [vmem:[#allocation10 + $0x4e8] sm:$0xff]
    %v1206 = vld [vmem:[#allocation10 + $0x4f0] sm:$0xff]
    %v1207 = vld [vmem:[#allocation10 + $0x4f8] sm:$0xff]
    %v1208 = vld [vmem:[#allocation10 + $0x500] sm:$0xff]
    %v1209 = vld [vmem:[#allocation10 + $0x508] sm:$0xff]
    %v1210 = vld [vmem:[#allocation10 + $0x510] sm:$0xff]
    %v1211 = vld [vmem:[#allocation10 + $0x518] sm:$0xff]
    %v1212 = vld [vmem:[#allocation10 + $0x520] sm:$0xff]
    %v1213 = vld [vmem:[#allocation10 + $0x528] sm:$0xff]
    %v1214 = vld [vmem:[#allocation10 + $0x530] sm:$0xff]
    %v1215 = vld [vmem:[#allocation10 + $0x538] sm:$0xff]
    %v1216 = vld [vmem:[#allocation10 + $0x540] sm:$0xff]
    %v1217 = vld [vmem:[#allocation10 + $0x548] sm:$0xff]
    %v1218 = vld [vmem:[#allocation10 + $0x550] sm:$0xff]
    %v1219 = vld [vmem:[#allocation10 + $0x558] sm:$0xff]
    %v1220 = vld [vmem:[#allocation10 + $0x560] sm:$0xff]
    %v1221 = vld [vmem:[#allocation10 + $0x568] sm:$0xff]
    %v1222 = vld [vmem:[#allocation10 + $0x570] sm:$0xff]
    %v1223 = vld [vmem:[#allocation10 + $0x578] sm:$0xff]
    %v1224 = vld [vmem:[#allocation10 + $0x580] sm:$0xff]
    %v1225 = vld [vmem:[#allocation10 + $0x588] sm:$0xff]
    %v1226 = vld [vmem:[#allocation10 + $0x590] sm:$0xff]
    %v1227 = vld [vmem:[#allocation10 + $0x598] sm:$0xff]
    %v1228 = vld [vmem:[#allocation10 + $0x5a0] sm:$0xff]
    %v1229 = vld [vmem:[#allocation10 + $0x5a8] sm:$0xff]
    %v1230 = vld [vmem:[#allocation10 + $0x5b0] sm:$0xff]
    %v1231 = vld [vmem:[#allocation10 + $0x5b8] sm:$0xff]
    %v1232 = vld [vmem:[#allocation10 + $0x5c0] sm:$0xff]
    %v1233 = vld [vmem:[#allocation10 + $0x5c8] sm:$0xff]
    %v1234 = vld [vmem:[#allocation10 + $0x5d0] sm:$0xff]
    %v1235 = vld [vmem:[#allocation10 + $0x5d8] sm:$0xff]
    %v1236 = vld [vmem:[#allocation10 + $0x5e0] sm:$0xff]
    %v1237 = vld [vmem:[#allocation10 + $0x5e8] sm:$0xff]
    %v1238 = vld [vmem:[#allocation10 + $0x5f0] sm:$0xff]
    %v1239 = vld [vmem:[#allocation10 + $0x5f8] sm:$0xff]
    %v1240 = vld [vmem:[#allocation10 + $0x600] sm:$0xff]
    %v1241 = vld [vmem:[#allocation10 + $0x608] sm:$0xff]
    %v1242 = vld [vmem:[#allocation10 + $0x610] sm:$0xff]
    %v1243 = vld [vmem:[#allocation10 + $0x618] sm:$0xff]
    %v1244 = vld [vmem:[#allocation10 + $0x620] sm:$0xff]
    %v1245 = vld [vmem:[#allocation10 + $0x628] sm:$0xff]
    %v1246 = vld [vmem:[#allocation10 + $0x630] sm:$0xff]
    %v1247 = vld [vmem:[#allocation10 + $0x638] sm:$0xff]
    %v1248 = vld [vmem:[#allocation10 + $0x640] sm:$0xff]
    %v1249 = vld [vmem:[#allocation10 + $0x648] sm:$0xff]
    %v1250 = vld [vmem:[#allocation10 + $0x650] sm:$0xff]
    %v1251 = vld [vmem:[#allocation10 + $0x658] sm:$0xff]
    %v1252 = vld [vmem:[#allocation10 + $0x660] sm:$0xff]
    %v1253 = vld [vmem:[#allocation10 + $0x668] sm:$0xff]
    %v1254 = vld [vmem:[#allocation10 + $0x670] sm:$0xff]
    %v1255 = vld [vmem:[#allocation10 + $0x678] sm:$0xff]
    %v1256 = vld [vmem:[#allocation10 + $0x680] sm:$0xff]
    %v1257 = vld [vmem:[#allocation10 + $0x688] sm:$0xff]
    %v1258 = vld [vmem:[#allocation10 + $0x690] sm:$0xff]
    %v1259 = vld [vmem:[#allocation10 + $0x698] sm:$0xff]
    %v1260 = vld [vmem:[#allocation10 + $0x6a0] sm:$0xff]
    %v1261 = vld [vmem:[#allocation10 + $0x6a8] sm:$0xff]
    %v1262 = vld [vmem:[#allocation10 + $0x6b0] sm:$0xff]
    %v1263 = vld [vmem:[#allocation10 + $0x6b8] sm:$0xff]
    %v1264 = vld [vmem:[#allocation10 + $0x6c0] sm:$0xff]
    %v1265 = vld [vmem:[#allocation10 + $0x6c8] sm:$0xff]
    %v1266 = vld [vmem:[#allocation10 + $0x6d0] sm:$0xff]
    %v1267 = vld [vmem:[#allocation10 + $0x6d8] sm:$0xff]
    %v1268 = vld [vmem:[#allocation10 + $0x6e0] sm:$0xff]
    %v1269 = vld [vmem:[#allocation10 + $0x6e8] sm:$0xff]
    %v1270 = vld [vmem:[#allocation10 + $0x6f0] sm:$0xff]
    %v1271 = vld [vmem:[#allocation10 + $0x6f8] sm:$0xff]
    %v1272 = vld [vmem:[#allocation10 + $0x700] sm:$0xff]
    %v1273 = vld [vmem:[#allocation10 + $0x708] sm:$0xff]
    %v1274 = vld [vmem:[#allocation10 + $0x710] sm:$0xff]
    %v1275 = vld [vmem:[#allocation10 + $0x718] sm:$0xff]
    %v1276 = vld [vmem:[#allocation10 + $0x720] sm:$0xff]
    %v1277 = vld [vmem:[#allocation10 + $0x728] sm:$0xff]
    %v1278 = vld [vmem:[#allocation10 + $0x730] sm:$0xff]
    %v1279 = vld [vmem:[#allocation10 + $0x738] sm:$0xff]
    %v1280 = vld [vmem:[#allocation10 + $0x740] sm:$0xff]
    %v1281 = vld [vmem:[#allocation10 + $0x748] sm:$0xff]
    %v1282 = vld [vmem:[#allocation10 + $0x750] sm:$0xff]
    %v1283 = vld [vmem:[#allocation10 + $0x758] sm:$0xff]
    %v1284 = vld [vmem:[#allocation10 + $0x760] sm:$0xff]
    %v1285 = vld [vmem:[#allocation10 + $0x768] sm:$0xff]
    %v1286 = vld [vmem:[#allocation10 + $0x770] sm:$0xff]
    %v1287 = vld [vmem:[#allocation10 + $0x778] sm:$0xff]
    %v1288 = vld [vmem:[#allocation10 + $0x780] sm:$0xff]
    %v1289 = vld [vmem:[#allocation10 + $0x788] sm:$0xff]
    %v1290 = vld [vmem:[#allocation10 + $0x790] sm:$0xff]
    %v1291 = vld [vmem:[#allocation10 + $0x798] sm:$0xff]
    %v1292 = vld [vmem:[#allocation10 + $0x7a0] sm:$0xff]
    %v1293 = vld [vmem:[#allocation10 + $0x7a8] sm:$0xff]
    %v1294 = vld [vmem:[#allocation10 + $0x7b0] sm:$0xff]
    %v1295 = vld [vmem:[#allocation10 + $0x7b8] sm:$0xff]
    %v1296 = vld [vmem:[#allocation10 + $0x7c0] sm:$0xff]
    %v1297 = vld [vmem:[#allocation10 + $0x7c8] sm:$0xff]
    %v1298 = vld [vmem:[#allocation10 + $0x7d0] sm:$0xff]
    %v1299 = vld [vmem:[#allocation10 + $0x7d8] sm:$0xff]
    %v1300 = vld [vmem:[#allocation10 + $0x7e0] sm:$0xff]
    %v1301 = vld [vmem:[#allocation10 + $0x7e8] sm:$0xff]
    %v1302 = vld [vmem:[#allocation10 + $0x7f0] sm:$0xff]
    %v1303 = vld [vmem:[#allocation10 + $0x7f8] sm:$0xff]
    %v1305 = vperm.slane %v1041, 0
    %v1306 = vperm.slane %v1041, 1
    %v1307 = vperm.slane %v1041, 2
    %v1308 = vperm.slane %v1041, 3
    %v1309 = vperm.slane %v1041, 4
    %v1310 = vperm.slane %v1041, 5
    %v1311 = vperm.slane %v1041, 6
    %v1312 = vperm.slane %v1041, 7
    %v1577 = vunpack.c.l.b16 %v1048
    %v1578 = vunpack.c.h.b16 %v1048
    %v1579 = vunpack.c.l.b16 %v1049
    %v1580 = vunpack.c.h.b16 %v1049
    %v1581 = vunpack.c.l.b16 %v1050
    %v1582 = vunpack.c.h.b16 %v1050
    %v1583 = vunpack.c.l.b16 %v1051
    %v1584 = vunpack.c.h.b16 %v1051
    %v1585 = vunpack.c.l.b16 %v1052
    %v1586 = vunpack.c.h.b16 %v1052
    %v1587 = vunpack.c.l.b16 %v1053
    %v1588 = vunpack.c.h.b16 %v1053
    %v1589 = vunpack.c.l.b16 %v1054
    %v1590 = vunpack.c.h.b16 %v1054
    %v1591 = vunpack.c.l.b16 %v1055
    %v1592 = vunpack.c.h.b16 %v1055
    %v1593 = vunpack.c.l.b16 %v1056
    %v1594 = vunpack.c.h.b16 %v1056
    %v1595 = vunpack.c.l.b16 %v1057
    %v1596 = vunpack.c.h.b16 %v1057
    %v1597 = vunpack.c.l.b16 %v1058
    %v1598 = vunpack.c.h.b16 %v1058
    %v1599 = vunpack.c.l.b16 %v1059
    %v1600 = vunpack.c.h.b16 %v1059
    %v1601 = vunpack.c.l.b16 %v1060
    %v1602 = vunpack.c.h.b16 %v1060
    %v1603 = vunpack.c.l.b16 %v1061
    %v1604 = vunpack.c.h.b16 %v1061
    %v1605 = vunpack.c.l.b16 %v1062
    %v1606 = vunpack.c.h.b16 %v1062
    %v1607 = vunpack.c.l.b16 %v1063
    %v1608 = vunpack.c.h.b16 %v1063
    %v1609 = vunpack.c.l.b16 %v1064
    %v1610 = vunpack.c.h.b16 %v1064
    %v1611 = vunpack.c.l.b16 %v1065
    %v1612 = vunpack.c.h.b16 %v1065
    %v1613 = vunpack.c.l.b16 %v1066
    %v1614 = vunpack.c.h.b16 %v1066
    %v1615 = vunpack.c.l.b16 %v1067
    %v1616 = vunpack.c.h.b16 %v1067
    %v1617 = vunpack.c.l.b16 %v1068
    %v1618 = vunpack.c.h.b16 %v1068
    %v1619 = vunpack.c.l.b16 %v1069
    %v1620 = vunpack.c.h.b16 %v1069
    %v1621 = vunpack.c.l.b16 %v1070
    %v1622 = vunpack.c.h.b16 %v1070
    %v1623 = vunpack.c.l.b16 %v1071
    %v1624 = vunpack.c.h.b16 %v1071
    %v1625 = vunpack.c.l.b16 %v1072
    %v1626 = vunpack.c.h.b16 %v1072
    %v1627 = vunpack.c.l.b16 %v1073
    %v1628 = vunpack.c.h.b16 %v1073
    %v1629 = vunpack.c.l.b16 %v1074
    %v1630 = vunpack.c.h.b16 %v1074
    %v1631 = vunpack.c.l.b16 %v1075
    %v1632 = vunpack.c.h.b16 %v1075
    %v1633 = vunpack.c.l.b16 %v1076
    %v1634 = vunpack.c.h.b16 %v1076
    %v1635 = vunpack.c.l.b16 %v1077
    %v1636 = vunpack.c.h.b16 %v1077
    %v1637 = vunpack.c.l.b16 %v1078
    %v1638 = vunpack.c.h.b16 %v1078
    %v1639 = vunpack.c.l.b16 %v1079
    %v1640 = vunpack.c.h.b16 %v1079
    %v1641 = vunpack.c.l.b16 %v1080
    %v1642 = vunpack.c.h.b16 %v1080
    %v1643 = vunpack.c.l.b16 %v1081
    %v1644 = vunpack.c.h.b16 %v1081
    %v1645 = vunpack.c.l.b16 %v1082
    %v1646 = vunpack.c.h.b16 %v1082
    %v1647 = vunpack.c.l.b16 %v1083
    %v1648 = vunpack.c.h.b16 %v1083
    %v1649 = vunpack.c.l.b16 %v1084
    %v1650 = vunpack.c.h.b16 %v1084
    %v1651 = vunpack.c.l.b16 %v1085
    %v1652 = vunpack.c.h.b16 %v1085
    %v1653 = vunpack.c.l.b16 %v1086
    %v1654 = vunpack.c.h.b16 %v1086
    %v1655 = vunpack.c.l.b16 %v1087
    %v1656 = vunpack.c.h.b16 %v1087
    %v1657 = vunpack.c.l.b16 %v1088
    %v1658 = vunpack.c.h.b16 %v1088
    %v1659 = vunpack.c.l.b16 %v1089
    %v1660 = vunpack.c.h.b16 %v1089
    %v1661 = vunpack.c.l.b16 %v1090
    %v1662 = vunpack.c.h.b16 %v1090
    %v1663 = vunpack.c.l.b16 %v1091
    %v1664 = vunpack.c.h.b16 %v1091
    %v1665 = vunpack.c.l.b16 %v1092
    %v1666 = vunpack.c.h.b16 %v1092
    %v1667 = vunpack.c.l.b16 %v1093
    %v1668 = vunpack.c.h.b16 %v1093
    %v1669 = vunpack.c.l.b16 %v1094
    %v1670 = vunpack.c.h.b16 %v1094
    %v1671 = vunpack.c.l.b16 %v1095
    %v1672 = vunpack.c.h.b16 %v1095
    %v1673 = vunpack.c.l.b16 %v1096
    %v1674 = vunpack.c.h.b16 %v1096
    %v1675 = vunpack.c.l.b16 %v1097
    %v1676 = vunpack.c.h.b16 %v1097
    %v1677 = vunpack.c.l.b16 %v1098
    %v1678 = vunpack.c.h.b16 %v1098
    %v1679 = vunpack.c.l.b16 %v1099
    %v1680 = vunpack.c.h.b16 %v1099
    %v1681 = vunpack.c.l.b16 %v1100
    %v1682 = vunpack.c.h.b16 %v1100
    %v1683 = vunpack.c.l.b16 %v1101
    %v1684 = vunpack.c.h.b16 %v1101
    %v1685 = vunpack.c.l.b16 %v1102
    %v1686 = vunpack.c.h.b16 %v1102
    %v1687 = vunpack.c.l.b16 %v1103
    %v1688 = vunpack.c.h.b16 %v1103
    %v1689 = vunpack.c.l.b16 %v1104
    %v1690 = vunpack.c.h.b16 %v1104
    %v1691 = vunpack.c.l.b16 %v1105
    %v1692 = vunpack.c.h.b16 %v1105
    %v1693 = vunpack.c.l.b16 %v1106
    %v1694 = vunpack.c.h.b16 %v1106
    %v1695 = vunpack.c.l.b16 %v1107
    %v1696 = vunpack.c.h.b16 %v1107
    %v1697 = vunpack.c.l.b16 %v1108
    %v1698 = vunpack.c.h.b16 %v1108
    %v1699 = vunpack.c.l.b16 %v1109
    %v1700 = vunpack.c.h.b16 %v1109
    %v1701 = vunpack.c.l.b16 %v1110
    %v1702 = vunpack.c.h.b16 %v1110
    %v1703 = vunpack.c.l.b16 %v1111
    %v1704 = vunpack.c.h.b16 %v1111
    %v1705 = vunpack.c.l.b16 %v1112
    %v1706 = vunpack.c.h.b16 %v1112
    %v1707 = vunpack.c.l.b16 %v1113
    %v1708 = vunpack.c.h.b16 %v1113
    %v1709 = vunpack.c.l.b16 %v1114
    %v1710 = vunpack.c.h.b16 %v1114
    %v1711 = vunpack.c.l.b16 %v1115
    %v1712 = vunpack.c.h.b16 %v1115
    %v1713 = vunpack.c.l.b16 %v1116
    %v1714 = vunpack.c.h.b16 %v1116
    %v1715 = vunpack.c.l.b16 %v1117
    %v1716 = vunpack.c.h.b16 %v1117
    %v1717 = vunpack.c.l.b16 %v1118
    %v1718 = vunpack.c.h.b16 %v1118
    %v1719 = vunpack.c.l.b16 %v1119
    %v1720 = vunpack.c.h.b16 %v1119
    %v1721 = vunpack.c.l.b16 %v1120
    %v1722 = vunpack.c.h.b16 %v1120
    %v1723 = vunpack.c.l.b16 %v1121
    %v1724 = vunpack.c.h.b16 %v1121
    %v1725 = vunpack.c.l.b16 %v1122
    %v1726 = vunpack.c.h.b16 %v1122
    %v1727 = vunpack.c.l.b16 %v1123
    %v1728 = vunpack.c.h.b16 %v1123
    %v1729 = vunpack.c.l.b16 %v1124
    %v1730 = vunpack.c.h.b16 %v1124
    %v1731 = vunpack.c.l.b16 %v1125
    %v1732 = vunpack.c.h.b16 %v1125
    %v1733 = vunpack.c.l.b16 %v1126
    %v1734 = vunpack.c.h.b16 %v1126
    %v1735 = vunpack.c.l.b16 %v1127
    %v1736 = vunpack.c.h.b16 %v1127
    %v1737 = vunpack.c.l.b16 %v1128
    %v1738 = vunpack.c.h.b16 %v1128
    %v1739 = vunpack.c.l.b16 %v1129
    %v1740 = vunpack.c.h.b16 %v1129
    %v1741 = vunpack.c.l.b16 %v1130
    %v1742 = vunpack.c.h.b16 %v1130
    %v1743 = vunpack.c.l.b16 %v1131
    %v1744 = vunpack.c.h.b16 %v1131
    %v1745 = vunpack.c.l.b16 %v1132
    %v1746 = vunpack.c.h.b16 %v1132
    %v1747 = vunpack.c.l.b16 %v1133
    %v1748 = vunpack.c.h.b16 %v1133
    %v1749 = vunpack.c.l.b16 %v1134
    %v1750 = vunpack.c.h.b16 %v1134
    %v1751 = vunpack.c.l.b16 %v1135
    %v1752 = vunpack.c.h.b16 %v1135
    %v1753 = vunpack.c.l.b16 %v1136
    %v1754 = vunpack.c.h.b16 %v1136
    %v1755 = vunpack.c.l.b16 %v1137
    %v1756 = vunpack.c.h.b16 %v1137
    %v1757 = vunpack.c.l.b16 %v1138
    %v1758 = vunpack.c.h.b16 %v1138
    %v1759 = vunpack.c.l.b16 %v1139
    %v1760 = vunpack.c.h.b16 %v1139
    %v1761 = vunpack.c.l.b16 %v1140
    %v1762 = vunpack.c.h.b16 %v1140
    %v1763 = vunpack.c.l.b16 %v1141
    %v1764 = vunpack.c.h.b16 %v1141
    %v1765 = vunpack.c.l.b16 %v1142
    %v1766 = vunpack.c.h.b16 %v1142
    %v1767 = vunpack.c.l.b16 %v1143
    %v1768 = vunpack.c.h.b16 %v1143
    %v1769 = vunpack.c.l.b16 %v1144
    %v1770 = vunpack.c.h.b16 %v1144
    %v1771 = vunpack.c.l.b16 %v1145
    %v1772 = vunpack.c.h.b16 %v1145
    %v1773 = vunpack.c.l.b16 %v1146
    %v1774 = vunpack.c.h.b16 %v1146
    %v1775 = vunpack.c.l.b16 %v1147
    %v1776 = vunpack.c.h.b16 %v1147
    %v1777 = vunpack.c.l.b16 %v1148
    %v1778 = vunpack.c.h.b16 %v1148
    %v1779 = vunpack.c.l.b16 %v1149
    %v1780 = vunpack.c.h.b16 %v1149
    %v1781 = vunpack.c.l.b16 %v1150
    %v1782 = vunpack.c.h.b16 %v1150
    %v1783 = vunpack.c.l.b16 %v1151
    %v1784 = vunpack.c.h.b16 %v1151
    %v1785 = vunpack.c.l.b16 %v1152
    %v1786 = vunpack.c.h.b16 %v1152
    %v1787 = vunpack.c.l.b16 %v1153
    %v1788 = vunpack.c.h.b16 %v1153
    %v1789 = vunpack.c.l.b16 %v1154
    %v1790 = vunpack.c.h.b16 %v1154
    %v1791 = vunpack.c.l.b16 %v1155
    %v1792 = vunpack.c.h.b16 %v1155
    %v1793 = vunpack.c.l.b16 %v1156
    %v1794 = vunpack.c.h.b16 %v1156
    %v1795 = vunpack.c.l.b16 %v1157
    %v1796 = vunpack.c.h.b16 %v1157
    %v1797 = vunpack.c.l.b16 %v1158
    %v1798 = vunpack.c.h.b16 %v1158
    %v1799 = vunpack.c.l.b16 %v1159
    %v1800 = vunpack.c.h.b16 %v1159
    %v1801 = vunpack.c.l.b16 %v1160
    %v1802 = vunpack.c.h.b16 %v1160
    %v1803 = vunpack.c.l.b16 %v1161
    %v1804 = vunpack.c.h.b16 %v1161
    %v1805 = vunpack.c.l.b16 %v1162
    %v1806 = vunpack.c.h.b16 %v1162
    %v1807 = vunpack.c.l.b16 %v1163
    %v1808 = vunpack.c.h.b16 %v1163
    %v1809 = vunpack.c.l.b16 %v1164
    %v1810 = vunpack.c.h.b16 %v1164
    %v1811 = vunpack.c.l.b16 %v1165
    %v1812 = vunpack.c.h.b16 %v1165
    %v1813 = vunpack.c.l.b16 %v1166
    %v1814 = vunpack.c.h.b16 %v1166
    %v1815 = vunpack.c.l.b16 %v1167
    %v1816 = vunpack.c.h.b16 %v1167
    %v1817 = vunpack.c.l.b16 %v1168
    %v1818 = vunpack.c.h.b16 %v1168
    %v1819 = vunpack.c.l.b16 %v1169
    %v1820 = vunpack.c.h.b16 %v1169
    %v1821 = vunpack.c.l.b16 %v1170
    %v1822 = vunpack.c.h.b16 %v1170
    %v1823 = vunpack.c.l.b16 %v1171
    %v1824 = vunpack.c.h.b16 %v1171
    %v1825 = vunpack.c.l.b16 %v1172
    %v1826 = vunpack.c.h.b16 %v1172
    %v1827 = vunpack.c.l.b16 %v1173
    %v1828 = vunpack.c.h.b16 %v1173
    %v1829 = vunpack.c.l.b16 %v1174
    %v1830 = vunpack.c.h.b16 %v1174
    %v1831 = vunpack.c.l.b16 %v1175
    %v1832 = vunpack.c.h.b16 %v1175
    %v1833 = vunpack.c.l.b16 %v1176
    %v1834 = vunpack.c.h.b16 %v1176
    %v1835 = vunpack.c.l.b16 %v1177
    %v1836 = vunpack.c.h.b16 %v1177
    %v1837 = vunpack.c.l.b16 %v1178
    %v1838 = vunpack.c.h.b16 %v1178
    %v1839 = vunpack.c.l.b16 %v1179
    %v1840 = vunpack.c.h.b16 %v1179
    %v1841 = vunpack.c.l.b16 %v1180
    %v1842 = vunpack.c.h.b16 %v1180
    %v1843 = vunpack.c.l.b16 %v1181
    %v1844 = vunpack.c.h.b16 %v1181
    %v1845 = vunpack.c.l.b16 %v1182
    %v1846 = vunpack.c.h.b16 %v1182
    %v1847 = vunpack.c.l.b16 %v1183
    %v1848 = vunpack.c.h.b16 %v1183
    %v1849 = vunpack.c.l.b16 %v1184
    %v1850 = vunpack.c.h.b16 %v1184
    %v1851 = vunpack.c.l.b16 %v1185
    %v1852 = vunpack.c.h.b16 %v1185
    %v1853 = vunpack.c.l.b16 %v1186
    %v1854 = vunpack.c.h.b16 %v1186
    %v1855 = vunpack.c.l.b16 %v1187
    %v1856 = vunpack.c.h.b16 %v1187
    %v1857 = vunpack.c.l.b16 %v1188
    %v1858 = vunpack.c.h.b16 %v1188
    %v1859 = vunpack.c.l.b16 %v1189
    %v1860 = vunpack.c.h.b16 %v1189
    %v1861 = vunpack.c.l.b16 %v1190
    %v1862 = vunpack.c.h.b16 %v1190
    %v1863 = vunpack.c.l.b16 %v1191
    %v1864 = vunpack.c.h.b16 %v1191
    %v1865 = vunpack.c.l.b16 %v1192
    %v1866 = vunpack.c.h.b16 %v1192
    %v1867 = vunpack.c.l.b16 %v1193
    %v1868 = vunpack.c.h.b16 %v1193
    %v1869 = vunpack.c.l.b16 %v1194
    %v1870 = vunpack.c.h.b16 %v1194
    %v1871 = vunpack.c.l.b16 %v1195
    %v1872 = vunpack.c.h.b16 %v1195
    %v1873 = vunpack.c.l.b16 %v1196
    %v1874 = vunpack.c.h.b16 %v1196
    %v1875 = vunpack.c.l.b16 %v1197
    %v1876 = vunpack.c.h.b16 %v1197
    %v1877 = vunpack.c.l.b16 %v1198
    %v1878 = vunpack.c.h.b16 %v1198
    %v1879 = vunpack.c.l.b16 %v1199
    %v1880 = vunpack.c.h.b16 %v1199
    %v1881 = vunpack.c.l.b16 %v1200
    %v1882 = vunpack.c.h.b16 %v1200
    %v1883 = vunpack.c.l.b16 %v1201
    %v1884 = vunpack.c.h.b16 %v1201
    %v1885 = vunpack.c.l.b16 %v1202
    %v1886 = vunpack.c.h.b16 %v1202
    %v1887 = vunpack.c.l.b16 %v1203
    %v1888 = vunpack.c.h.b16 %v1203
    %v1889 = vunpack.c.l.b16 %v1204
    %v1890 = vunpack.c.h.b16 %v1204
    %v1891 = vunpack.c.l.b16 %v1205
    %v1892 = vunpack.c.h.b16 %v1205
    %v1893 = vunpack.c.l.b16 %v1206
    %v1894 = vunpack.c.h.b16 %v1206
    %v1895 = vunpack.c.l.b16 %v1207
    %v1896 = vunpack.c.h.b16 %v1207
    %v1897 = vunpack.c.l.b16 %v1208
    %v1898 = vunpack.c.h.b16 %v1208
    %v1899 = vunpack.c.l.b16 %v1209
    %v1900 = vunpack.c.h.b16 %v1209
    %v1901 = vunpack.c.l.b16 %v1210
    %v1902 = vunpack.c.h.b16 %v1210
    %v1903 = vunpack.c.l.b16 %v1211
    %v1904 = vunpack.c.h.b16 %v1211
    %v1905 = vunpack.c.l.b16 %v1212
    %v1906 = vunpack.c.h.b16 %v1212
    %v1907 = vunpack.c.l.b16 %v1213
    %v1908 = vunpack.c.h.b16 %v1213
    %v1909 = vunpack.c.l.b16 %v1214
    %v1910 = vunpack.c.h.b16 %v1214
    %v1911 = vunpack.c.l.b16 %v1215
    %v1912 = vunpack.c.h.b16 %v1215
    %v1913 = vunpack.c.l.b16 %v1216
    %v1914 = vunpack.c.h.b16 %v1216
    %v1915 = vunpack.c.l.b16 %v1217
    %v1916 = vunpack.c.h.b16 %v1217
    %v1917 = vunpack.c.l.b16 %v1218
    %v1918 = vunpack.c.h.b16 %v1218
    %v1919 = vunpack.c.l.b16 %v1219
    %v1920 = vunpack.c.h.b16 %v1219
    %v1921 = vunpack.c.l.b16 %v1220
    %v1922 = vunpack.c.h.b16 %v1220
    %v1923 = vunpack.c.l.b16 %v1221
    %v1924 = vunpack.c.h.b16 %v1221
    %v1925 = vunpack.c.l.b16 %v1222
    %v1926 = vunpack.c.h.b16 %v1222
    %v1927 = vunpack.c.l.b16 %v1223
    %v1928 = vunpack.c.h.b16 %v1223
    %v1929 = vunpack.c.l.b16 %v1224
    %v1930 = vunpack.c.h.b16 %v1224
    %v1931 = vunpack.c.l.b16 %v1225
    %v1932 = vunpack.c.h.b16 %v1225
    %v1933 = vunpack.c.l.b16 %v1226
    %v1934 = vunpack.c.h.b16 %v1226
    %v1935 = vunpack.c.l.b16 %v1227
    %v1936 = vunpack.c.h.b16 %v1227
    %v1937 = vunpack.c.l.b16 %v1228
    %v1938 = vunpack.c.h.b16 %v1228
    %v1939 = vunpack.c.l.b16 %v1229
    %v1940 = vunpack.c.h.b16 %v1229
    %v1941 = vunpack.c.l.b16 %v1230
    %v1942 = vunpack.c.h.b16 %v1230
    %v1943 = vunpack.c.l.b16 %v1231
    %v1944 = vunpack.c.h.b16 %v1231
    %v1945 = vunpack.c.l.b16 %v1232
    %v1946 = vunpack.c.h.b16 %v1232
    %v1947 = vunpack.c.l.b16 %v1233
    %v1948 = vunpack.c.h.b16 %v1233
    %v1949 = vunpack.c.l.b16 %v1234
    %v1950 = vunpack.c.h.b16 %v1234
    %v1951 = vunpack.c.l.b16 %v1235
    %v1952 = vunpack.c.h.b16 %v1235
    %v1953 = vunpack.c.l.b16 %v1236
    %v1954 = vunpack.c.h.b16 %v1236
    %v1955 = vunpack.c.l.b16 %v1237
    %v1956 = vunpack.c.h.b16 %v1237
    %v1957 = vunpack.c.l.b16 %v1238
    %v1958 = vunpack.c.h.b16 %v1238
    %v1959 = vunpack.c.l.b16 %v1239
    %v1960 = vunpack.c.h.b16 %v1239
    %v1961 = vunpack.c.l.b16 %v1240
    %v1962 = vunpack.c.h.b16 %v1240
    %v1963 = vunpack.c.l.b16 %v1241
    %v1964 = vunpack.c.h.b16 %v1241
    %v1965 = vunpack.c.l.b16 %v1242
    %v1966 = vunpack.c.h.b16 %v1242
    %v1967 = vunpack.c.l.b16 %v1243
    %v1968 = vunpack.c.h.b16 %v1243
    %v1969 = vunpack.c.l.b16 %v1244
    %v1970 = vunpack.c.h.b16 %v1244
    %v1971 = vunpack.c.l.b16 %v1245
    %v1972 = vunpack.c.h.b16 %v1245
    %v1973 = vunpack.c.l.b16 %v1246
    %v1974 = vunpack.c.h.b16 %v1246
    %v1975 = vunpack.c.l.b16 %v1247
    %v1976 = vunpack.c.h.b16 %v1247
    %v1977 = vunpack.c.l.b16 %v1248
    %v1978 = vunpack.c.h.b16 %v1248
    %v1979 = vunpack.c.l.b16 %v1249
    %v1980 = vunpack.c.h.b16 %v1249
    %v1981 = vunpack.c.l.b16 %v1250
    %v1982 = vunpack.c.h.b16 %v1250
    %v1983 = vunpack.c.l.b16 %v1251
    %v1984 = vunpack.c.h.b16 %v1251
    %v1985 = vunpack.c.l.b16 %v1252
    %v1986 = vunpack.c.h.b16 %v1252
    %v1987 = vunpack.c.l.b16 %v1253
    %v1988 = vunpack.c.h.b16 %v1253
    %v1989 = vunpack.c.l.b16 %v1254
    %v1990 = vunpack.c.h.b16 %v1254
    %v1991 = vunpack.c.l.b16 %v1255
    %v1992 = vunpack.c.h.b16 %v1255
    %v1993 = vunpack.c.l.b16 %v1256
    %v1994 = vunpack.c.h.b16 %v1256
    %v1995 = vunpack.c.l.b16 %v1257
    %v1996 = vunpack.c.h.b16 %v1257
    %v1997 = vunpack.c.l.b16 %v1258
    %v1998 = vunpack.c.h.b16 %v1258
    %v1999 = vunpack.c.l.b16 %v1259
    %v2000 = vunpack.c.h.b16 %v1259
    %v2001 = vunpack.c.l.b16 %v1260
    %v2002 = vunpack.c.h.b16 %v1260
    %v2003 = vunpack.c.l.b16 %v1261
    %v2004 = vunpack.c.h.b16 %v1261
    %v2005 = vunpack.c.l.b16 %v1262
    %v2006 = vunpack.c.h.b16 %v1262
    %v2007 = vunpack.c.l.b16 %v1263
    %v2008 = vunpack.c.h.b16 %v1263
    %v2009 = vunpack.c.l.b16 %v1264
    %v2010 = vunpack.c.h.b16 %v1264
    %v2011 = vunpack.c.l.b16 %v1265
    %v2012 = vunpack.c.h.b16 %v1265
    %v2013 = vunpack.c.l.b16 %v1266
    %v2014 = vunpack.c.h.b16 %v1266
    %v2015 = vunpack.c.l.b16 %v1267
    %v2016 = vunpack.c.h.b16 %v1267
    %v2017 = vunpack.c.l.b16 %v1268
    %v2018 = vunpack.c.h.b16 %v1268
    %v2019 = vunpack.c.l.b16 %v1269
    %v2020 = vunpack.c.h.b16 %v1269
    %v2021 = vunpack.c.l.b16 %v1270
    %v2022 = vunpack.c.h.b16 %v1270
    %v2023 = vunpack.c.l.b16 %v1271
    %v2024 = vunpack.c.h.b16 %v1271
    %v2025 = vunpack.c.l.b16 %v1272
    %v2026 = vunpack.c.h.b16 %v1272
    %v2027 = vunpack.c.l.b16 %v1273
    %v2028 = vunpack.c.h.b16 %v1273
    %v2029 = vunpack.c.l.b16 %v1274
    %v2030 = vunpack.c.h.b16 %v1274
    %v2031 = vunpack.c.l.b16 %v1275
    %v2032 = vunpack.c.h.b16 %v1275
    %v2033 = vunpack.c.l.b16 %v1276
    %v2034 = vunpack.c.h.b16 %v1276
    %v2035 = vunpack.c.l.b16 %v1277
    %v2036 = vunpack.c.h.b16 %v1277
    %v2037 = vunpack.c.l.b16 %v1278
    %v2038 = vunpack.c.h.b16 %v1278
    %v2039 = vunpack.c.l.b16 %v1279
    %v2040 = vunpack.c.h.b16 %v1279
    %v2041 = vunpack.c.l.b16 %v1280
    %v2042 = vunpack.c.h.b16 %v1280
    %v2043 = vunpack.c.l.b16 %v1281
    %v2044 = vunpack.c.h.b16 %v1281
    %v2045 = vunpack.c.l.b16 %v1282
    %v2046 = vunpack.c.h.b16 %v1282
    %v2047 = vunpack.c.l.b16 %v1283
    %v2048 = vunpack.c.h.b16 %v1283
    %v2049 = vunpack.c.l.b16 %v1284
    %v2050 = vunpack.c.h.b16 %v1284
    %v2051 = vunpack.c.l.b16 %v1285
    %v2052 = vunpack.c.h.b16 %v1285
    %v2053 = vunpack.c.l.b16 %v1286
    %v2054 = vunpack.c.h.b16 %v1286
    %v2055 = vunpack.c.l.b16 %v1287
    %v2056 = vunpack.c.h.b16 %v1287
    %v2057 = vunpack.c.l.b16 %v1288
    %v2058 = vunpack.c.h.b16 %v1288
    %v2059 = vunpack.c.l.b16 %v1289
    %v2060 = vunpack.c.h.b16 %v1289
    %v2061 = vunpack.c.l.b16 %v1290
    %v2062 = vunpack.c.h.b16 %v1290
    %v2063 = vunpack.c.l.b16 %v1291
    %v2064 = vunpack.c.h.b16 %v1291
    %v2065 = vunpack.c.l.b16 %v1292
    %v2066 = vunpack.c.h.b16 %v1292
    %v2067 = vunpack.c.l.b16 %v1293
    %v2068 = vunpack.c.h.b16 %v1293
    %v2069 = vunpack.c.l.b16 %v1294
    %v2070 = vunpack.c.h.b16 %v1294
    %v2071 = vunpack.c.l.b16 %v1295
    %v2072 = vunpack.c.h.b16 %v1295
    %v2073 = vunpack.c.l.b16 %v1296
    %v2074 = vunpack.c.h.b16 %v1296
    %v2075 = vunpack.c.l.b16 %v1297
    %v2076 = vunpack.c.h.b16 %v1297
    %v2077 = vunpack.c.l.b16 %v1298
    %v2078 = vunpack.c.h.b16 %v1298
    %v2079 = vunpack.c.l.b16 %v1299
    %v2080 = vunpack.c.h.b16 %v1299
    %v2081 = vunpack.c.l.b16 %v1300
    %v2082 = vunpack.c.h.b16 %v1300
    %v2083 = vunpack.c.l.b16 %v1301
    %v2084 = vunpack.c.h.b16 %v1301
    %v2085 = vunpack.c.l.b16 %v1302
    %v2086 = vunpack.c.h.b16 %v1302
    %v2087 = vunpack.c.l.b16 %v1303
    %v2088 = vunpack.c.h.b16 %v1303
    %v2089 = vpack.c.b16 %v1585, %v1577
    %v2090 = vpack.c.b16 %v1586, %v1578
    %v2091 = vpack.c.b16 %v1587, %v1579
    %v2092 = vpack.c.b16 %v1588, %v1580
    %v2093 = vpack.c.b16 %v1589, %v1581
    %v2094 = vpack.c.b16 %v1590, %v1582
    %v2095 = vpack.c.b16 %v1591, %v1583
    %v2096 = vpack.c.b16 %v1592, %v1584
    %v2097 = vpack.c.b16 %v1601, %v1593
    %v2098 = vpack.c.b16 %v1602, %v1594
    %v2099 = vpack.c.b16 %v1603, %v1595
    %v2100 = vpack.c.b16 %v1604, %v1596
    %v2101 = vpack.c.b16 %v1605, %v1597
    %v2102 = vpack.c.b16 %v1606, %v1598
    %v2103 = vpack.c.b16 %v1607, %v1599
    %v2104 = vpack.c.b16 %v1608, %v1600
    %v2105 = vpack.c.b16 %v1617, %v1609
    %v2106 = vpack.c.b16 %v1618, %v1610
    %v2107 = vpack.c.b16 %v1619, %v1611
    %v2108 = vpack.c.b16 %v1620, %v1612
    %v2109 = vpack.c.b16 %v1621, %v1613
    %v2110 = vpack.c.b16 %v1622, %v1614
    %v2111 = vpack.c.b16 %v1623, %v1615
    %v2112 = vpack.c.b16 %v1624, %v1616
    %v2113 = vpack.c.b16 %v1633, %v1625
    %v2114 = vpack.c.b16 %v1634, %v1626
    %v2115 = vpack.c.b16 %v1635, %v1627
    %v2116 = vpack.c.b16 %v1636, %v1628
    %v2117 = vpack.c.b16 %v1637, %v1629
    %v2118 = vpack.c.b16 %v1638, %v1630
    %v2119 = vpack.c.b16 %v1639, %v1631
    %v2120 = vpack.c.b16 %v1640, %v1632
    %v2121 = vpack.c.b16 %v1649, %v1641
    %v2122 = vpack.c.b16 %v1650, %v1642
    %v2123 = vpack.c.b16 %v1651, %v1643
    %v2124 = vpack.c.b16 %v1652, %v1644
    %v2125 = vpack.c.b16 %v1653, %v1645
    %v2126 = vpack.c.b16 %v1654, %v1646
    %v2127 = vpack.c.b16 %v1655, %v1647
    %v2128 = vpack.c.b16 %v1656, %v1648
    %v2129 = vpack.c.b16 %v1665, %v1657
    %v2130 = vpack.c.b16 %v1666, %v1658
    %v2131 = vpack.c.b16 %v1667, %v1659
    %v2132 = vpack.c.b16 %v1668, %v1660
    %v2133 = vpack.c.b16 %v1669, %v1661
    %v2134 = vpack.c.b16 %v1670, %v1662
    %v2135 = vpack.c.b16 %v1671, %v1663
    %v2136 = vpack.c.b16 %v1672, %v1664
    %v2137 = vpack.c.b16 %v1681, %v1673
    %v2138 = vpack.c.b16 %v1682, %v1674
    %v2139 = vpack.c.b16 %v1683, %v1675
    %v2140 = vpack.c.b16 %v1684, %v1676
    %v2141 = vpack.c.b16 %v1685, %v1677
    %v2142 = vpack.c.b16 %v1686, %v1678
    %v2143 = vpack.c.b16 %v1687, %v1679
    %v2144 = vpack.c.b16 %v1688, %v1680
    %v2145 = vpack.c.b16 %v1697, %v1689
    %v2146 = vpack.c.b16 %v1698, %v1690
    %v2147 = vpack.c.b16 %v1699, %v1691
    %v2148 = vpack.c.b16 %v1700, %v1692
    %v2149 = vpack.c.b16 %v1701, %v1693
    %v2150 = vpack.c.b16 %v1702, %v1694
    %v2151 = vpack.c.b16 %v1703, %v1695
    %v2152 = vpack.c.b16 %v1704, %v1696
    %v2153 = vpack.c.b16 %v1713, %v1705
    %v2154 = vpack.c.b16 %v1714, %v1706
    %v2155 = vpack.c.b16 %v1715, %v1707
    %v2156 = vpack.c.b16 %v1716, %v1708
    %v2157 = vpack.c.b16 %v1717, %v1709
    %v2158 = vpack.c.b16 %v1718, %v1710
    %v2159 = vpack.c.b16 %v1719, %v1711
    %v2160 = vpack.c.b16 %v1720, %v1712
    %v2161 = vpack.c.b16 %v1729, %v1721
    %v2162 = vpack.c.b16 %v1730, %v1722
    %v2163 = vpack.c.b16 %v1731, %v1723
    %v2164 = vpack.c.b16 %v1732, %v1724
    %v2165 = vpack.c.b16 %v1733, %v1725
    %v2166 = vpack.c.b16 %v1734, %v1726
    %v2167 = vpack.c.b16 %v1735, %v1727
    %v2168 = vpack.c.b16 %v1736, %v1728
    %v2169 = vpack.c.b16 %v1745, %v1737
    %v2170 = vpack.c.b16 %v1746, %v1738
    %v2171 = vpack.c.b16 %v1747, %v1739
    %v2172 = vpack.c.b16 %v1748, %v1740
    %v2173 = vpack.c.b16 %v1749, %v1741
    %v2174 = vpack.c.b16 %v1750, %v1742
    %v2175 = vpack.c.b16 %v1751, %v1743
    %v2176 = vpack.c.b16 %v1752, %v1744
    %v2177 = vpack.c.b16 %v1761, %v1753
    %v2178 = vpack.c.b16 %v1762, %v1754
    %v2179 = vpack.c.b16 %v1763, %v1755
    %v2180 = vpack.c.b16 %v1764, %v1756
    %v2181 = vpack.c.b16 %v1765, %v1757
    %v2182 = vpack.c.b16 %v1766, %v1758
    %v2183 = vpack.c.b16 %v1767, %v1759
    %v2184 = vpack.c.b16 %v1768, %v1760
    %v2185 = vpack.c.b16 %v1777, %v1769
    %v2186 = vpack.c.b16 %v1778, %v1770
    %v2187 = vpack.c.b16 %v1779, %v1771
    %v2188 = vpack.c.b16 %v1780, %v1772
    %v2189 = vpack.c.b16 %v1781, %v1773
    %v2190 = vpack.c.b16 %v1782, %v1774
    %v2191 = vpack.c.b16 %v1783, %v1775
    %v2192 = vpack.c.b16 %v1784, %v1776
    %v2193 = vpack.c.b16 %v1793, %v1785
    %v2194 = vpack.c.b16 %v1794, %v1786
    %v2195 = vpack.c.b16 %v1795, %v1787
    %v2196 = vpack.c.b16 %v1796, %v1788
    %v2197 = vpack.c.b16 %v1797, %v1789
    %v2198 = vpack.c.b16 %v1798, %v1790
    %v2199 = vpack.c.b16 %v1799, %v1791
    %v2200 = vpack.c.b16 %v1800, %v1792
    %v2201 = vpack.c.b16 %v1809, %v1801
    %v2202 = vpack.c.b16 %v1810, %v1802
    %v2203 = vpack.c.b16 %v1811, %v1803
    %v2204 = vpack.c.b16 %v1812, %v1804
    %v2205 = vpack.c.b16 %v1813, %v1805
    %v2206 = vpack.c.b16 %v1814, %v1806
    %v2207 = vpack.c.b16 %v1815, %v1807
    %v2208 = vpack.c.b16 %v1816, %v1808
    %v2209 = vpack.c.b16 %v1825, %v1817
    %v2210 = vpack.c.b16 %v1826, %v1818
    %v2211 = vpack.c.b16 %v1827, %v1819
    %v2212 = vpack.c.b16 %v1828, %v1820
    %v2213 = vpack.c.b16 %v1829, %v1821
    %v2214 = vpack.c.b16 %v1830, %v1822
    %v2215 = vpack.c.b16 %v1831, %v1823
    %v2216 = vpack.c.b16 %v1832, %v1824
    %v2217 = vpack.c.b16 %v1841, %v1833
    %v2218 = vpack.c.b16 %v1842, %v1834
    %v2219 = vpack.c.b16 %v1843, %v1835
    %v2220 = vpack.c.b16 %v1844, %v1836
    %v2221 = vpack.c.b16 %v1845, %v1837
    %v2222 = vpack.c.b16 %v1846, %v1838
    %v2223 = vpack.c.b16 %v1847, %v1839
    %v2224 = vpack.c.b16 %v1848, %v1840
    %v2225 = vpack.c.b16 %v1857, %v1849
    %v2226 = vpack.c.b16 %v1858, %v1850
    %v2227 = vpack.c.b16 %v1859, %v1851
    %v2228 = vpack.c.b16 %v1860, %v1852
    %v2229 = vpack.c.b16 %v1861, %v1853
    %v2230 = vpack.c.b16 %v1862, %v1854
    %v2231 = vpack.c.b16 %v1863, %v1855
    %v2232 = vpack.c.b16 %v1864, %v1856
    %v2233 = vpack.c.b16 %v1873, %v1865
    %v2234 = vpack.c.b16 %v1874, %v1866
    %v2235 = vpack.c.b16 %v1875, %v1867
    %v2236 = vpack.c.b16 %v1876, %v1868
    %v2237 = vpack.c.b16 %v1877, %v1869
    %v2238 = vpack.c.b16 %v1878, %v1870
    %v2239 = vpack.c.b16 %v1879, %v1871
    %v2240 = vpack.c.b16 %v1880, %v1872
    %v2241 = vpack.c.b16 %v1889, %v1881
    %v2242 = vpack.c.b16 %v1890, %v1882
    %v2243 = vpack.c.b16 %v1891, %v1883
    %v2244 = vpack.c.b16 %v1892, %v1884
    %v2245 = vpack.c.b16 %v1893, %v1885
    %v2246 = vpack.c.b16 %v1894, %v1886
    %v2247 = vpack.c.b16 %v1895, %v1887
    %v2248 = vpack.c.b16 %v1896, %v1888
    %v2249 = vpack.c.b16 %v1905, %v1897
    %v2250 = vpack.c.b16 %v1906, %v1898
    %v2251 = vpack.c.b16 %v1907, %v1899
    %v2252 = vpack.c.b16 %v1908, %v1900
    %v2253 = vpack.c.b16 %v1909, %v1901
    %v2254 = vpack.c.b16 %v1910, %v1902
    %v2255 = vpack.c.b16 %v1911, %v1903
    %v2256 = vpack.c.b16 %v1912, %v1904
    %v2257 = vpack.c.b16 %v1921, %v1913
    %v2258 = vpack.c.b16 %v1922, %v1914
    %v2259 = vpack.c.b16 %v1923, %v1915
    %v2260 = vpack.c.b16 %v1924, %v1916
    %v2261 = vpack.c.b16 %v1925, %v1917
    %v2262 = vpack.c.b16 %v1926, %v1918
    %v2263 = vpack.c.b16 %v1927, %v1919
    %v2264 = vpack.c.b16 %v1928, %v1920
    %v2265 = vpack.c.b16 %v1937, %v1929
    %v2266 = vpack.c.b16 %v1938, %v1930
    %v2267 = vpack.c.b16 %v1939, %v1931
    %v2268 = vpack.c.b16 %v1940, %v1932
    %v2269 = vpack.c.b16 %v1941, %v1933
    %v2270 = vpack.c.b16 %v1942, %v1934
    %v2271 = vpack.c.b16 %v1943, %v1935
    %v2272 = vpack.c.b16 %v1944, %v1936
    %v2273 = vpack.c.b16 %v1953, %v1945
    %v2274 = vpack.c.b16 %v1954, %v1946
    %v2275 = vpack.c.b16 %v1955, %v1947
    %v2276 = vpack.c.b16 %v1956, %v1948
    %v2277 = vpack.c.b16 %v1957, %v1949
    %v2278 = vpack.c.b16 %v1958, %v1950
    %v2279 = vpack.c.b16 %v1959, %v1951
    %v2280 = vpack.c.b16 %v1960, %v1952
    %v2281 = vpack.c.b16 %v1969, %v1961
    %v2282 = vpack.c.b16 %v1970, %v1962
    %v2283 = vpack.c.b16 %v1971, %v1963
    %v2284 = vpack.c.b16 %v1972, %v1964
    %v2285 = vpack.c.b16 %v1973, %v1965
    %v2286 = vpack.c.b16 %v1974, %v1966
    %v2287 = vpack.c.b16 %v1975, %v1967
    %v2288 = vpack.c.b16 %v1976, %v1968
    %v2289 = vpack.c.b16 %v1985, %v1977
    %v2290 = vpack.c.b16 %v1986, %v1978
    %v2291 = vpack.c.b16 %v1987, %v1979
    %v2292 = vpack.c.b16 %v1988, %v1980
    %v2293 = vpack.c.b16 %v1989, %v1981
    %v2294 = vpack.c.b16 %v1990, %v1982
    %v2295 = vpack.c.b16 %v1991, %v1983
    %v2296 = vpack.c.b16 %v1992, %v1984
    %v2297 = vpack.c.b16 %v2001, %v1993
    %v2298 = vpack.c.b16 %v2002, %v1994
    %v2299 = vpack.c.b16 %v2003, %v1995
    %v2300 = vpack.c.b16 %v2004, %v1996
    %v2301 = vpack.c.b16 %v2005, %v1997
    %v2302 = vpack.c.b16 %v2006, %v1998
    %v2303 = vpack.c.b16 %v2007, %v1999
    %v2304 = vpack.c.b16 %v2008, %v2000
    %v2305 = vpack.c.b16 %v2017, %v2009
    %v2306 = vpack.c.b16 %v2018, %v2010
    %v2307 = vpack.c.b16 %v2019, %v2011
    %v2308 = vpack.c.b16 %v2020, %v2012
    %v2309 = vpack.c.b16 %v2021, %v2013
    %v2310 = vpack.c.b16 %v2022, %v2014
    %v2311 = vpack.c.b16 %v2023, %v2015
    %v2312 = vpack.c.b16 %v2024, %v2016
    %v2313 = vpack.c.b16 %v2033, %v2025
    %v2314 = vpack.c.b16 %v2034, %v2026
    %v2315 = vpack.c.b16 %v2035, %v2027
    %v2316 = vpack.c.b16 %v2036, %v2028
    %v2317 = vpack.c.b16 %v2037, %v2029
    %v2318 = vpack.c.b16 %v2038, %v2030
    %v2319 = vpack.c.b16 %v2039, %v2031
    %v2320 = vpack.c.b16 %v2040, %v2032
    %v2321 = vpack.c.b16 %v2049, %v2041
    %v2322 = vpack.c.b16 %v2050, %v2042
    %v2323 = vpack.c.b16 %v2051, %v2043
    %v2324 = vpack.c.b16 %v2052, %v2044
    %v2325 = vpack.c.b16 %v2053, %v2045
    %v2326 = vpack.c.b16 %v2054, %v2046
    %v2327 = vpack.c.b16 %v2055, %v2047
    %v2328 = vpack.c.b16 %v2056, %v2048
    %v2329 = vpack.c.b16 %v2065, %v2057
    %v2330 = vpack.c.b16 %v2066, %v2058
    %v2331 = vpack.c.b16 %v2067, %v2059
    %v2332 = vpack.c.b16 %v2068, %v2060
    %v2333 = vpack.c.b16 %v2069, %v2061
    %v2334 = vpack.c.b16 %v2070, %v2062
    %v2335 = vpack.c.b16 %v2071, %v2063
    %v2336 = vpack.c.b16 %v2072, %v2064
    %v2337 = vpack.c.b16 %v2081, %v2073
    %v2338 = vpack.c.b16 %v2082, %v2074
    %v2339 = vpack.c.b16 %v2083, %v2075
    %v2340 = vpack.c.b16 %v2084, %v2076
    %v2341 = vpack.c.b16 %v2085, %v2077
    %v2342 = vpack.c.b16 %v2086, %v2078
    %v2343 = vpack.c.b16 %v2087, %v2079
    %v2344 = vpack.c.b16 %v2088, %v2080
    %2601 = vmatpush.bf16.msra.mxu0 %v2145
    %2602 = vmatpush.bf16.msra.mxu0 %v2137
    %2603 = vmatpush.bf16.msra.mxu0 %v2129
    %2604 = vmatpush.bf16.msra.mxu0 %v2121
    %2605 = vmatpush.bf16.msra.mxu0 %v2113
    %2606 = vmatpush.bf16.msra.mxu0 %v2105
    %2607 = vmatpush.bf16.msra.mxu0 %v2097
    %2608 = vmatpush.bf16.msra.mxu0 %v2089
    %2609 = vmatmul.bf16.gmra.mxu0 %v1044
    %v2610 = vpop.f32.mrf.mxu0
    %v2611 = vadd.f32 %v1305, %v2610
    %v2612 = vpop.f32.mrf.mxu0
    %2613 = vdwg.mxu0
    %2614 = vmatpush.bf16.msra.mxu0 %v2209
    %2615 = vmatpush.bf16.msra.mxu0 %v2201
    %2616 = vmatpush.bf16.msra.mxu0 %v2193
    %2617 = vmatpush.bf16.msra.mxu0 %v2185
    %2618 = vmatpush.bf16.msra.mxu0 %v2177
    %2619 = vmatpush.bf16.msra.mxu0 %v2169
    %2620 = vmatpush.bf16.msra.mxu0 %v2161
    %2621 = vmatpush.bf16.msra.mxu0 %v2153
    %2622 = vmatmul.bf16.gmra.mxu0 %v1045
    %v2623 = vpop.f32.mrf.mxu0
    %v2624 = vadd.f32 %v2611, %v2623
    %v2625 = vpop.f32.mrf.mxu0
    %2626 = vdwg.mxu0
    %2627 = vmatpush.bf16.msra.mxu0 %v2273
    %2628 = vmatpush.bf16.msra.mxu0 %v2265
    %2629 = vmatpush.bf16.msra.mxu0 %v2257
    %2630 = vmatpush.bf16.msra.mxu0 %v2249
    %2631 = vmatpush.bf16.msra.mxu0 %v2241
    %2632 = vmatpush.bf16.msra.mxu0 %v2233
    %2633 = vmatpush.bf16.msra.mxu0 %v2225
    %2634 = vmatpush.bf16.msra.mxu0 %v2217
    %2635 = vmatmul.bf16.gmra.mxu0 %v1046
    %v2636 = vpop.f32.mrf.mxu0
    %v2637 = vadd.f32 %v2624, %v2636
    %v2638 = vpop.f32.mrf.mxu0
    %2639 = vdwg.mxu0
    %2640 = vmatpush.bf16.msra.mxu0 %v2337
    %2641 = vmatpush.bf16.msra.mxu0 %v2329
    %2642 = vmatpush.bf16.msra.mxu0 %v2321
    %2643 = vmatpush.bf16.msra.mxu0 %v2313
    %2644 = vmatpush.bf16.msra.mxu0 %v2305
    %2645 = vmatpush.bf16.msra.mxu0 %v2297
    %2646 = vmatpush.bf16.msra.mxu0 %v2289
    %2647 = vmatpush.bf16.msra.mxu0 %v2281
    %2648 = vmatmul.bf16.gmra.mxu0 %v1047
    %v2649 = vpop.f32.mrf.mxu0
    %v2650 = vadd.f32 %v2637, %v2649
    %v2651 = vpop.f32.mrf.mxu0
    %2652 = vdwg.mxu0
    %2653 = vmatpush.bf16.msra.mxu0 %v2146
    %2654 = vmatpush.bf16.msra.mxu0 %v2138
    %2655 = vmatpush.bf16.msra.mxu0 %v2130
    %2656 = vmatpush.bf16.msra.mxu0 %v2122
    %2657 = vmatpush.bf16.msra.mxu0 %v2114
    %2658 = vmatpush.bf16.msra.mxu0 %v2106
    %2659 = vmatpush.bf16.msra.mxu0 %v2098
    %2660 = vmatpush.bf16.msra.mxu0 %v2090
    %2661 = vmatmul.bf16.gmra.mxu0 %v1044
    %v2662 = vpop.f32.mrf.mxu0
    %v2663 = vadd.f32 %v1306, %v2662
    %v2664 = vpop.f32.mrf.mxu0
    %2665 = vdwg.mxu0
    %2666 = vmatpush.bf16.msra.mxu0 %v2210
    %2667 = vmatpush.bf16.msra.mxu0 %v2202
    %2668 = vmatpush.bf16.msra.mxu0 %v2194
    %2669 = vmatpush.bf16.msra.mxu0 %v2186
    %2670 = vmatpush.bf16.msra.mxu0 %v2178
    %2671 = vmatpush.bf16.msra.mxu0 %v2170
    %2672 = vmatpush.bf16.msra.mxu0 %v2162
    %2673 = vmatpush.bf16.msra.mxu0 %v2154
    %2674 = vmatmul.bf16.gmra.mxu0 %v1045
    %v2675 = vpop.f32.mrf.mxu0
    %v2676 = vadd.f32 %v2663, %v2675
    %v2677 = vpop.f32.mrf.mxu0
    %2678 = vdwg.mxu0
    %2679 = vmatpush.bf16.msra.mxu0 %v2274
    %2680 = vmatpush.bf16.msra.mxu0 %v2266
    %2681 = vmatpush.bf16.msra.mxu0 %v2258
    %2682 = vmatpush.bf16.msra.mxu0 %v2250
    %2683 = vmatpush.bf16.msra.mxu0 %v2242
    %2684 = vmatpush.bf16.msra.mxu0 %v2234
    %2685 = vmatpush.bf16.msra.mxu0 %v2226
    %2686 = vmatpush.bf16.msra.mxu0 %v2218
    %2687 = vmatmul.bf16.gmra.mxu0 %v1046
    %v2688 = vpop.f32.mrf.mxu0
    %v2689 = vadd.f32 %v2676, %v2688
    %v2690 = vpop.f32.mrf.mxu0
    %2691 = vdwg.mxu0
    %2692 = vmatpush.bf16.msra.mxu0 %v2338
    %2693 = vmatpush.bf16.msra.mxu0 %v2330
    %2694 = vmatpush.bf16.msra.mxu0 %v2322
    %2695 = vmatpush.bf16.msra.mxu0 %v2314
    %2696 = vmatpush.bf16.msra.mxu0 %v2306
    %2697 = vmatpush.bf16.msra.mxu0 %v2298
    %2698 = vmatpush.bf16.msra.mxu0 %v2290
    %2699 = vmatpush.bf16.msra.mxu0 %v2282
    %2700 = vmatmul.bf16.gmra.mxu0 %v1047
    %v2701 = vpop.f32.mrf.mxu0
    %v2702 = vadd.f32 %v2689, %v2701
    %v2703 = vpop.f32.mrf.mxu0
    %2704 = vdwg.mxu0
    %2705 = vmatpush.bf16.msra.mxu0 %v2147
    %2706 = vmatpush.bf16.msra.mxu0 %v2139
    %2707 = vmatpush.bf16.msra.mxu0 %v2131
    %2708 = vmatpush.bf16.msra.mxu0 %v2123
    %2709 = vmatpush.bf16.msra.mxu0 %v2115
    %2710 = vmatpush.bf16.msra.mxu0 %v2107
    %2711 = vmatpush.bf16.msra.mxu0 %v2099
    %2712 = vmatpush.bf16.msra.mxu0 %v2091
    %2713 = vmatmul.bf16.gmra.mxu0 %v1044
    %v2714 = vpop.f32.mrf.mxu0
    %v2715 = vadd.f32 %v1307, %v2714
    %v2716 = vpop.f32.mrf.mxu0
    %2717 = vdwg.mxu0
    %2718 = vmatpush.bf16.msra.mxu0 %v2211
    %2719 = vmatpush.bf16.msra.mxu0 %v2203
    %2720 = vmatpush.bf16.msra.mxu0 %v2195
    %2721 = vmatpush.bf16.msra.mxu0 %v2187
    %2722 = vmatpush.bf16.msra.mxu0 %v2179
    %2723 = vmatpush.bf16.msra.mxu0 %v2171
    %2724 = vmatpush.bf16.msra.mxu0 %v2163
    %2725 = vmatpush.bf16.msra.mxu0 %v2155
    %2726 = vmatmul.bf16.gmra.mxu0 %v1045
    %v2727 = vpop.f32.mrf.mxu0
    %v2728 = vadd.f32 %v2715, %v2727
    %v2729 = vpop.f32.mrf.mxu0
    %2730 = vdwg.mxu0
    %2731 = vmatpush.bf16.msra.mxu0 %v2275
    %2732 = vmatpush.bf16.msra.mxu0 %v2267
    %2733 = vmatpush.bf16.msra.mxu0 %v2259
    %2734 = vmatpush.bf16.msra.mxu0 %v2251
    %2735 = vmatpush.bf16.msra.mxu0 %v2243
    %2736 = vmatpush.bf16.msra.mxu0 %v2235
    %2737 = vmatpush.bf16.msra.mxu0 %v2227
    %2738 = vmatpush.bf16.msra.mxu0 %v2219
    %2739 = vmatmul.bf16.gmra.mxu0 %v1046
    %v2740 = vpop.f32.mrf.mxu0
    %v2741 = vadd.f32 %v2728, %v2740
    %v2742 = vpop.f32.mrf.mxu0
    %2743 = vdwg.mxu0
    %2744 = vmatpush.bf16.msra.mxu0 %v2339
    %2745 = vmatpush.bf16.msra.mxu0 %v2331
    %2746 = vmatpush.bf16.msra.mxu0 %v2323
    %2747 = vmatpush.bf16.msra.mxu0 %v2315
    %2748 = vmatpush.bf16.msra.mxu0 %v2307
    %2749 = vmatpush.bf16.msra.mxu0 %v2299
    %2750 = vmatpush.bf16.msra.mxu0 %v2291
    %2751 = vmatpush.bf16.msra.mxu0 %v2283
    %2752 = vmatmul.bf16.gmra.mxu0 %v1047
    %v2753 = vpop.f32.mrf.mxu0
    %v2754 = vadd.f32 %v2741, %v2753
    %v2755 = vpop.f32.mrf.mxu0
    %2756 = vdwg.mxu0
    %2757 = vmatpush.bf16.msra.mxu0 %v2148
    %2758 = vmatpush.bf16.msra.mxu0 %v2140
    %2759 = vmatpush.bf16.msra.mxu0 %v2132
    %2760 = vmatpush.bf16.msra.mxu0 %v2124
    %2761 = vmatpush.bf16.msra.mxu0 %v2116
    %2762 = vmatpush.bf16.msra.mxu0 %v2108
    %2763 = vmatpush.bf16.msra.mxu0 %v2100
    %2764 = vmatpush.bf16.msra.mxu0 %v2092
    %2765 = vmatmul.bf16.gmra.mxu0 %v1044
    %v2766 = vpop.f32.mrf.mxu0
    %v2767 = vadd.f32 %v1308, %v2766
    %v2768 = vpop.f32.mrf.mxu0
    %2769 = vdwg.mxu0
    %2770 = vmatpush.bf16.msra.mxu0 %v2212
    %2771 = vmatpush.bf16.msra.mxu0 %v2204
    %2772 = vmatpush.bf16.msra.mxu0 %v2196
    %2773 = vmatpush.bf16.msra.mxu0 %v2188
    %2774 = vmatpush.bf16.msra.mxu0 %v2180
    %2775 = vmatpush.bf16.msra.mxu0 %v2172
    %2776 = vmatpush.bf16.msra.mxu0 %v2164
    %2777 = vmatpush.bf16.msra.mxu0 %v2156
    %2778 = vmatmul.bf16.gmra.mxu0 %v1045
    %v2779 = vpop.f32.mrf.mxu0
    %v2780 = vadd.f32 %v2767, %v2779
    %v2781 = vpop.f32.mrf.mxu0
    %2782 = vdwg.mxu0
    %2783 = vmatpush.bf16.msra.mxu0 %v2276
    %2784 = vmatpush.bf16.msra.mxu0 %v2268
    %2785 = vmatpush.bf16.msra.mxu0 %v2260
    %2786 = vmatpush.bf16.msra.mxu0 %v2252
    %2787 = vmatpush.bf16.msra.mxu0 %v2244
    %2788 = vmatpush.bf16.msra.mxu0 %v2236
    %2789 = vmatpush.bf16.msra.mxu0 %v2228
    %2790 = vmatpush.bf16.msra.mxu0 %v2220
    %2791 = vmatmul.bf16.gmra.mxu0 %v1046
    %v2792 = vpop.f32.mrf.mxu0
    %v2793 = vadd.f32 %v2780, %v2792
    %v2794 = vpop.f32.mrf.mxu0
    %2795 = vdwg.mxu0
    %2796 = vmatpush.bf16.msra.mxu0 %v2340
    %2797 = vmatpush.bf16.msra.mxu0 %v2332
    %2798 = vmatpush.bf16.msra.mxu0 %v2324
    %2799 = vmatpush.bf16.msra.mxu0 %v2316
    %2800 = vmatpush.bf16.msra.mxu0 %v2308
    %2801 = vmatpush.bf16.msra.mxu0 %v2300
    %2802 = vmatpush.bf16.msra.mxu0 %v2292
    %2803 = vmatpush.bf16.msra.mxu0 %v2284
    %2804 = vmatmul.bf16.gmra.mxu0 %v1047
    %v2805 = vpop.f32.mrf.mxu0
    %v2806 = vadd.f32 %v2793, %v2805
    %v2807 = vpop.f32.mrf.mxu0
    %2808 = vdwg.mxu0
    %2809 = vmatpush.bf16.msra.mxu0 %v2149
    %2810 = vmatpush.bf16.msra.mxu0 %v2141
    %2811 = vmatpush.bf16.msra.mxu0 %v2133
    %2812 = vmatpush.bf16.msra.mxu0 %v2125
    %2813 = vmatpush.bf16.msra.mxu0 %v2117
    %2814 = vmatpush.bf16.msra.mxu0 %v2109
    %2815 = vmatpush.bf16.msra.mxu0 %v2101
    %2816 = vmatpush.bf16.msra.mxu0 %v2093
    %2817 = vmatmul.bf16.gmra.mxu0 %v1044
    %v2818 = vpop.f32.mrf.mxu0
    %v2819 = vadd.f32 %v1309, %v2818
    %v2820 = vpop.f32.mrf.mxu0
    %2821 = vdwg.mxu0
    %2822 = vmatpush.bf16.msra.mxu0 %v2213
    %2823 = vmatpush.bf16.msra.mxu0 %v2205
    %2824 = vmatpush.bf16.msra.mxu0 %v2197
    %2825 = vmatpush.bf16.msra.mxu0 %v2189
    %2826 = vmatpush.bf16.msra.mxu0 %v2181
    %2827 = vmatpush.bf16.msra.mxu0 %v2173
    %2828 = vmatpush.bf16.msra.mxu0 %v2165
    %2829 = vmatpush.bf16.msra.mxu0 %v2157
    %2830 = vmatmul.bf16.gmra.mxu0 %v1045
    %v2831 = vpop.f32.mrf.mxu0
    %v2832 = vadd.f32 %v2819, %v2831
    %v2833 = vpop.f32.mrf.mxu0
    %2834 = vdwg.mxu0
    %2835 = vmatpush.bf16.msra.mxu0 %v2277
    %2836 = vmatpush.bf16.msra.mxu0 %v2269
    %2837 = vmatpush.bf16.msra.mxu0 %v2261
    %2838 = vmatpush.bf16.msra.mxu0 %v2253
    %2839 = vmatpush.bf16.msra.mxu0 %v2245
    %2840 = vmatpush.bf16.msra.mxu0 %v2237
    %2841 = vmatpush.bf16.msra.mxu0 %v2229
    %2842 = vmatpush.bf16.msra.mxu0 %v2221
    %2843 = vmatmul.bf16.gmra.mxu0 %v1046
    %v2844 = vpop.f32.mrf.mxu0
    %v2845 = vadd.f32 %v2832, %v2844
    %v2846 = vpop.f32.mrf.mxu0
    %2847 = vdwg.mxu0
    %2848 = vmatpush.bf16.msra.mxu0 %v2341
    %2849 = vmatpush.bf16.msra.mxu0 %v2333
    %2850 = vmatpush.bf16.msra.mxu0 %v2325
    %2851 = vmatpush.bf16.msra.mxu0 %v2317
    %2852 = vmatpush.bf16.msra.mxu0 %v2309
    %2853 = vmatpush.bf16.msra.mxu0 %v2301
    %2854 = vmatpush.bf16.msra.mxu0 %v2293
    %2855 = vmatpush.bf16.msra.mxu0 %v2285
    %2856 = vmatmul.bf16.gmra.mxu0 %v1047
    %v2857 = vpop.f32.mrf.mxu0
    %v2858 = vadd.f32 %v2845, %v2857
    %v2859 = vpop.f32.mrf.mxu0
    %2860 = vdwg.mxu0
    %2861 = vmatpush.bf16.msra.mxu0 %v2150
    %2862 = vmatpush.bf16.msra.mxu0 %v2142
    %2863 = vmatpush.bf16.msra.mxu0 %v2134
    %2864 = vmatpush.bf16.msra.mxu0 %v2126
    %2865 = vmatpush.bf16.msra.mxu0 %v2118
    %2866 = vmatpush.bf16.msra.mxu0 %v2110
    %2867 = vmatpush.bf16.msra.mxu0 %v2102
    %2868 = vmatpush.bf16.msra.mxu0 %v2094
    %2869 = vmatmul.bf16.gmra.mxu0 %v1044
    %v2870 = vpop.f32.mrf.mxu0
    %v2871 = vadd.f32 %v1310, %v2870
    %v2872 = vpop.f32.mrf.mxu0
    %2873 = vdwg.mxu0
    %2874 = vmatpush.bf16.msra.mxu0 %v2214
    %2875 = vmatpush.bf16.msra.mxu0 %v2206
    %2876 = vmatpush.bf16.msra.mxu0 %v2198
    %2877 = vmatpush.bf16.msra.mxu0 %v2190
    %2878 = vmatpush.bf16.msra.mxu0 %v2182
    %2879 = vmatpush.bf16.msra.mxu0 %v2174
    %2880 = vmatpush.bf16.msra.mxu0 %v2166
    %2881 = vmatpush.bf16.msra.mxu0 %v2158
    %2882 = vmatmul.bf16.gmra.mxu0 %v1045
    %v2883 = vpop.f32.mrf.mxu0
    %v2884 = vadd.f32 %v2871, %v2883
    %v2885 = vpop.f32.mrf.mxu0
    %2886 = vdwg.mxu0
    %2887 = vmatpush.bf16.msra.mxu0 %v2278
    %2888 = vmatpush.bf16.msra.mxu0 %v2270
    %2889 = vmatpush.bf16.msra.mxu0 %v2262
    %2890 = vmatpush.bf16.msra.mxu0 %v2254
    %2891 = vmatpush.bf16.msra.mxu0 %v2246
    %2892 = vmatpush.bf16.msra.mxu0 %v2238
    %2893 = vmatpush.bf16.msra.mxu0 %v2230
    %2894 = vmatpush.bf16.msra.mxu0 %v2222
    %2895 = vmatmul.bf16.gmra.mxu0 %v1046
    %v2896 = vpop.f32.mrf.mxu0
    %v2897 = vadd.f32 %v2884, %v2896
    %v2898 = vpop.f32.mrf.mxu0
    %2899 = vdwg.mxu0
    %2900 = vmatpush.bf16.msra.mxu0 %v2342
    %2901 = vmatpush.bf16.msra.mxu0 %v2334
    %2902 = vmatpush.bf16.msra.mxu0 %v2326
    %2903 = vmatpush.bf16.msra.mxu0 %v2318
    %2904 = vmatpush.bf16.msra.mxu0 %v2310
    %2905 = vmatpush.bf16.msra.mxu0 %v2302
    %2906 = vmatpush.bf16.msra.mxu0 %v2294
    %2907 = vmatpush.bf16.msra.mxu0 %v2286
    %2908 = vmatmul.bf16.gmra.mxu0 %v1047
    %v2909 = vpop.f32.mrf.mxu0
    %v2910 = vadd.f32 %v2897, %v2909
    %v2911 = vpop.f32.mrf.mxu0
    %2912 = vdwg.mxu0
    %2913 = vmatpush.bf16.msra.mxu0 %v2151
    %2914 = vmatpush.bf16.msra.mxu0 %v2143
    %2915 = vmatpush.bf16.msra.mxu0 %v2135
    %2916 = vmatpush.bf16.msra.mxu0 %v2127
    %2917 = vmatpush.bf16.msra.mxu0 %v2119
    %2918 = vmatpush.bf16.msra.mxu0 %v2111
    %2919 = vmatpush.bf16.msra.mxu0 %v2103
    %2920 = vmatpush.bf16.msra.mxu0 %v2095
    %2921 = vmatmul.bf16.gmra.mxu0 %v1044
    %v2922 = vpop.f32.mrf.mxu0
    %v2923 = vadd.f32 %v1311, %v2922
    %v2924 = vpop.f32.mrf.mxu0
    %2925 = vdwg.mxu0
    %2926 = vmatpush.bf16.msra.mxu0 %v2215
    %2927 = vmatpush.bf16.msra.mxu0 %v2207
    %2928 = vmatpush.bf16.msra.mxu0 %v2199
    %2929 = vmatpush.bf16.msra.mxu0 %v2191
    %2930 = vmatpush.bf16.msra.mxu0 %v2183
    %2931 = vmatpush.bf16.msra.mxu0 %v2175
    %2932 = vmatpush.bf16.msra.mxu0 %v2167
    %2933 = vmatpush.bf16.msra.mxu0 %v2159
    %2934 = vmatmul.bf16.gmra.mxu0 %v1045
    %v2935 = vpop.f32.mrf.mxu0
    %v2936 = vadd.f32 %v2923, %v2935
    %v2937 = vpop.f32.mrf.mxu0
    %2938 = vdwg.mxu0
    %2939 = vmatpush.bf16.msra.mxu0 %v2279
    %2940 = vmatpush.bf16.msra.mxu0 %v2271
    %2941 = vmatpush.bf16.msra.mxu0 %v2263
    %2942 = vmatpush.bf16.msra.mxu0 %v2255
    %2943 = vmatpush.bf16.msra.mxu0 %v2247
    %2944 = vmatpush.bf16.msra.mxu0 %v2239
    %2945 = vmatpush.bf16.msra.mxu0 %v2231
    %2946 = vmatpush.bf16.msra.mxu0 %v2223
    %2947 = vmatmul.bf16.gmra.mxu0 %v1046
    %v2948 = vpop.f32.mrf.mxu0
    %v2949 = vadd.f32 %v2936, %v2948
    %v2950 = vpop.f32.mrf.mxu0
    %2951 = vdwg.mxu0
    %2952 = vmatpush.bf16.msra.mxu0 %v2343
    %2953 = vmatpush.bf16.msra.mxu0 %v2335
    %2954 = vmatpush.bf16.msra.mxu0 %v2327
    %2955 = vmatpush.bf16.msra.mxu0 %v2319
    %2956 = vmatpush.bf16.msra.mxu0 %v2311
    %2957 = vmatpush.bf16.msra.mxu0 %v2303
    %2958 = vmatpush.bf16.msra.mxu0 %v2295
    %2959 = vmatpush.bf16.msra.mxu0 %v2287
    %2960 = vmatmul.bf16.gmra.mxu0 %v1047
    %v2961 = vpop.f32.mrf.mxu0
    %v2962 = vadd.f32 %v2949, %v2961
    %v2963 = vpop.f32.mrf.mxu0
    %2964 = vdwg.mxu0
    %2965 = vmatpush.bf16.msra.mxu0 %v2152
    %2966 = vmatpush.bf16.msra.mxu0 %v2144
    %2967 = vmatpush.bf16.msra.mxu0 %v2136
    %2968 = vmatpush.bf16.msra.mxu0 %v2128
    %2969 = vmatpush.bf16.msra.mxu0 %v2120
    %2970 = vmatpush.bf16.msra.mxu0 %v2112
    %2971 = vmatpush.bf16.msra.mxu0 %v2104
    %2972 = vmatpush.bf16.msra.mxu0 %v2096
    %2973 = vmatmul.bf16.gmra.mxu0 %v1044
    %v2974 = vpop.f32.mrf.mxu0
    %v2975 = vadd.f32 %v1312, %v2974
    %v2976 = vpop.f32.mrf.mxu0
    %2977 = vdwg.mxu0
    %2978 = vmatpush.bf16.msra.mxu0 %v2216
    %2979 = vmatpush.bf16.msra.mxu0 %v2208
    %2980 = vmatpush.bf16.msra.mxu0 %v2200
    %2981 = vmatpush.bf16.msra.mxu0 %v2192
    %2982 = vmatpush.bf16.msra.mxu0 %v2184
    %2983 = vmatpush.bf16.msra.mxu0 %v2176
    %2984 = vmatpush.bf16.msra.mxu0 %v2168
    %2985 = vmatpush.bf16.msra.mxu0 %v2160
    %2986 = vmatmul.bf16.gmra.mxu0 %v1045
    %v2987 = vpop.f32.mrf.mxu0
    %v2988 = vadd.f32 %v2975, %v2987
    %v2989 = vpop.f32.mrf.mxu0
    %2990 = vdwg.mxu0
    %2991 = vmatpush.bf16.msra.mxu0 %v2280
    %2992 = vmatpush.bf16.msra.mxu0 %v2272
    %2993 = vmatpush.bf16.msra.mxu0 %v2264
    %2994 = vmatpush.bf16.msra.mxu0 %v2256
    %2995 = vmatpush.bf16.msra.mxu0 %v2248
    %2996 = vmatpush.bf16.msra.mxu0 %v2240
    %2997 = vmatpush.bf16.msra.mxu0 %v2232
    %2998 = vmatpush.bf16.msra.mxu0 %v2224
    %2999 = vmatmul.bf16.gmra.mxu0 %v1046
    %v3000 = vpop.f32.mrf.mxu0
    %v3001 = vadd.f32 %v2988, %v3000
    %v3002 = vpop.f32.mrf.mxu0
    %3003 = vdwg.mxu0
    %3004 = vmatpush.bf16.msra.mxu0 %v2344
    %3005 = vmatpush.bf16.msra.mxu0 %v2336
    %3006 = vmatpush.bf16.msra.mxu0 %v2328
    %3007 = vmatpush.bf16.msra.mxu0 %v2320
    %3008 = vmatpush.bf16.msra.mxu0 %v2312
    %3009 = vmatpush.bf16.msra.mxu0 %v2304
    %3010 = vmatpush.bf16.msra.mxu0 %v2296
    %3011 = vmatpush.bf16.msra.mxu0 %v2288
    %3012 = vmatmul.bf16.gmra.mxu0 %v1047
    %v3013 = vpop.f32.mrf.mxu0
    %v3014 = vadd.f32 %v3001, %v3013
    %v3015 = vpop.f32.mrf.mxu0
    %3016 = vdwg.mxu0
    %v3017 = vrot.slane %v2650, 4
    %v3018 = vadd.f32 %v2650, %v3017
    %v3019 = vrot.slane %v3018, 2
    %v3020 = vadd.f32 %v3018, %v3019
    %v3021 = vrot.slane %v3020, 1
    %v3022 = vadd.f32 %v3020, %v3021
    %v3023 = vrot.slane %v2702, 4
    %v3024 = vadd.f32 %v2702, %v3023
    %v3025 = vrot.slane %v3024, 2
    %v3026 = vadd.f32 %v3024, %v3025
    %v3027 = vrot.slane %v3026, 1
    %v3028 = vadd.f32 %v3026, %v3027
    %v3029 = vrot.slane %v2754, 4
    %v3030 = vadd.f32 %v2754, %v3029
    %v3031 = vrot.slane %v3030, 2
    %v3032 = vadd.f32 %v3030, %v3031
    %v3033 = vrot.slane %v3032, 1
    %v3034 = vadd.f32 %v3032, %v3033
    %v3035 = vrot.slane %v2806, 4
    %v3036 = vadd.f32 %v2806, %v3035
    %v3037 = vrot.slane %v3036, 2
    %v3038 = vadd.f32 %v3036, %v3037
    %v3039 = vrot.slane %v3038, 1
    %v3040 = vadd.f32 %v3038, %v3039
    %v3041 = vrot.slane %v2858, 4
    %v3042 = vadd.f32 %v2858, %v3041
    %v3043 = vrot.slane %v3042, 2
    %v3044 = vadd.f32 %v3042, %v3043
    %v3045 = vrot.slane %v3044, 1
    %v3046 = vadd.f32 %v3044, %v3045
    %v3047 = vrot.slane %v2910, 4
    %v3048 = vadd.f32 %v2910, %v3047
    %v3049 = vrot.slane %v3048, 2
    %v3050 = vadd.f32 %v3048, %v3049
    %v3051 = vrot.slane %v3050, 1
    %v3052 = vadd.f32 %v3050, %v3051
    %v3053 = vrot.slane %v2962, 4
    %v3054 = vadd.f32 %v2962, %v3053
    %v3055 = vrot.slane %v3054, 2
    %v3056 = vadd.f32 %v3054, %v3055
    %v3057 = vrot.slane %v3056, 1
    %v3058 = vadd.f32 %v3056, %v3057
    %v3059 = vrot.slane %v3014, 4
    %v3060 = vadd.f32 %v3014, %v3059
    %v3061 = vrot.slane %v3060, 2
    %v3062 = vadd.f32 %v3060, %v3061
    %v3063 = vrot.slane %v3062, 1
    %v3064 = vadd.f32 %v3062, %v3063
    %v3065 = vmul.f32 %v3022, %v324
    %v3066 = vmul.f32 %v3028, %v324
    %v3067 = vmul.f32 %v3034, %v324
    %v3068 = vmul.f32 %v3040, %v324
    %v3069 = vmul.f32 %v3046, %v324
    %v3070 = vmul.f32 %v3052, %v324
    %v3071 = vmul.f32 %v3058, %v324
    %v3072 = vmul.f32 %v3064, %v324
    %v3073 = vsub.f32 %v2650, %v3065
    %v3074 = vsub.f32 %v2702, %v3066
    %v3075 = vsub.f32 %v2754, %v3067
    %v3076 = vsub.f32 %v2806, %v3068
    %v3077 = vsub.f32 %v2858, %v3069
    %v3078 = vsub.f32 %v2910, %v3070
    %v3079 = vsub.f32 %v2962, %v3071
    %v3080 = vsub.f32 %v3014, %v3072
    %v3081 = vmul.f32 %v3073, %v3073
    %v3082 = vmul.f32 %v3074, %v3074
    %v3083 = vmul.f32 %v3075, %v3075
    %v3084 = vmul.f32 %v3076, %v3076
    %v3085 = vmul.f32 %v3077, %v3077
    %v3086 = vmul.f32 %v3078, %v3078
    %v3087 = vmul.f32 %v3079, %v3079
    %v3088 = vmul.f32 %v3080, %v3080
    %v3089 = vrot.slane %v3081, 4
    %v3090 = vadd.f32 %v3081, %v3089
    %v3091 = vrot.slane %v3090, 2
    %v3092 = vadd.f32 %v3090, %v3091
    %v3093 = vrot.slane %v3092, 1
    %v3094 = vadd.f32 %v3092, %v3093
    %v3095 = vrot.slane %v3082, 4
    %v3096 = vadd.f32 %v3082, %v3095
    %v3097 = vrot.slane %v3096, 2
    %v3098 = vadd.f32 %v3096, %v3097
    %v3099 = vrot.slane %v3098, 1
    %v3100 = vadd.f32 %v3098, %v3099
    %v3101 = vrot.slane %v3083, 4
    %v3102 = vadd.f32 %v3083, %v3101
    %v3103 = vrot.slane %v3102, 2
    %v3104 = vadd.f32 %v3102, %v3103
    %v3105 = vrot.slane %v3104, 1
    %v3106 = vadd.f32 %v3104, %v3105
    %v3107 = vrot.slane %v3084, 4
    %v3108 = vadd.f32 %v3084, %v3107
    %v3109 = vrot.slane %v3108, 2
    %v3110 = vadd.f32 %v3108, %v3109
    %v3111 = vrot.slane %v3110, 1
    %v3112 = vadd.f32 %v3110, %v3111
    %v3113 = vrot.slane %v3085, 4
    %v3114 = vadd.f32 %v3085, %v3113
    %v3115 = vrot.slane %v3114, 2
    %v3116 = vadd.f32 %v3114, %v3115
    %v3117 = vrot.slane %v3116, 1
    %v3118 = vadd.f32 %v3116, %v3117
    %v3119 = vrot.slane %v3086, 4
    %v3120 = vadd.f32 %v3086, %v3119
    %v3121 = vrot.slane %v3120, 2
    %v3122 = vadd.f32 %v3120, %v3121
    %v3123 = vrot.slane %v3122, 1
    %v3124 = vadd.f32 %v3122, %v3123
    %v3125 = vrot.slane %v3087, 4
    %v3126 = vadd.f32 %v3087, %v3125
    %v3127 = vrot.slane %v3126, 2
    %v3128 = vadd.f32 %v3126, %v3127
    %v3129 = vrot.slane %v3128, 1
    %v3130 = vadd.f32 %v3128, %v3129
    %v3131 = vrot.slane %v3088, 4
    %v3132 = vadd.f32 %v3088, %v3131
    %v3133 = vrot.slane %v3132, 2
    %v3134 = vadd.f32 %v3132, %v3133
    %v3135 = vrot.slane %v3134, 1
    %v3136 = vadd.f32 %v3134, %v3135
    %v3137 = vmul.f32 %v3094, %v324
    %v3138 = vmul.f32 %v3100, %v324
    %v3139 = vmul.f32 %v3106, %v324
    %v3140 = vmul.f32 %v3112, %v324
    %v3141 = vmul.f32 %v3118, %v324
    %v3142 = vmul.f32 %v3124, %v324
    %v3143 = vmul.f32 %v3130, %v324
    %v3144 = vmul.f32 %v3136, %v324
    %v3145 = vadd.f32 %v3137, 0.8
    %v3146 = vadd.f32 %v3138, 0.8
    %v3147 = vadd.f32 %v3139, 0.8
    %v3148 = vadd.f32 %v3140, 0.8
    %v3149 = vadd.f32 %v3141, 0.8
    %v3150 = vadd.f32 %v3142, 0.8
    %v3151 = vadd.f32 %v3143, 0.8
    %v3152 = vadd.f32 %v3144, 0.8
    %v3153 = vrsqrt.pop %v3145
    %v3154 = vmul.f32 %v3153, %v3145
    %v3155 = vmul.f32 %v3154, %v3153
    %v3156 = vmul.f32 0.5, %v3155
    %v3157 = vsub.f32 1.5, %v3156
    %v3158 = vmul.f32 %v3153, %v3157
    %vm3159 = vweird.f32 %v3145
    %vm3160 = vweird.f32 %v3153
    %vm3161 = vmor %vm3159, %vm3160
    %v3162 = vsel %vm3161, %v3153, %v3158
    %v3163 = vrsqrt.pop %v3146
    %v3164 = vmul.f32 %v3163, %v3146
    %v3165 = vmul.f32 %v3164, %v3163
    %v3166 = vmul.f32 0.5, %v3165
    %v3167 = vsub.f32 1.5, %v3166
    %v3168 = vmul.f32 %v3163, %v3167
    %vm3169 = vweird.f32 %v3146
    %vm3170 = vweird.f32 %v3163
    %vm3171 = vmor %vm3169, %vm3170
    %v3172 = vsel %vm3171, %v3163, %v3168
    %v3173 = vrsqrt.pop %v3147
    %v3174 = vmul.f32 %v3173, %v3147
    %v3175 = vmul.f32 %v3174, %v3173
    %v3176 = vmul.f32 0.5, %v3175
    %v3177 = vsub.f32 1.5, %v3176
    %v3178 = vmul.f32 %v3173, %v3177
    %vm3179 = vweird.f32 %v3147
    %vm3180 = vweird.f32 %v3173
    %vm3181 = vmor %vm3179, %vm3180
    %v3182 = vsel %vm3181, %v3173, %v3178
    %v3183 = vrsqrt.pop %v3148
    %v3184 = vmul.f32 %v3183, %v3148
    %v3185 = vmul.f32 %v3184, %v3183
    %v3186 = vmul.f32 0.5, %v3185
    %v3187 = vsub.f32 1.5, %v3186
    %v3188 = vmul.f32 %v3183, %v3187
    %vm3189 = vweird.f32 %v3148
    %vm3190 = vweird.f32 %v3183
    %vm3191 = vmor %vm3189, %vm3190
    %v3192 = vsel %vm3191, %v3183, %v3188
    %v3193 = vrsqrt.pop %v3149
    %v3194 = vmul.f32 %v3193, %v3149
    %v3195 = vmul.f32 %v3194, %v3193
    %v3196 = vmul.f32 0.5, %v3195
    %v3197 = vsub.f32 1.5, %v3196
    %v3198 = vmul.f32 %v3193, %v3197
    %vm3199 = vweird.f32 %v3149
    %vm3200 = vweird.f32 %v3193
    %vm3201 = vmor %vm3199, %vm3200
    %v3202 = vsel %vm3201, %v3193, %v3198
    %v3203 = vrsqrt.pop %v3150
    %v3204 = vmul.f32 %v3203, %v3150
    %v3205 = vmul.f32 %v3204, %v3203
    %v3206 = vmul.f32 0.5, %v3205
    %v3207 = vsub.f32 1.5, %v3206
    %v3208 = vmul.f32 %v3203, %v3207
    %vm3209 = vweird.f32 %v3150
    %vm3210 = vweird.f32 %v3203
    %vm3211 = vmor %vm3209, %vm3210
    %v3212 = vsel %vm3211, %v3203, %v3208
    %v3213 = vrsqrt.pop %v3151
    %v3214 = vmul.f32 %v3213, %v3151
    %v3215 = vmul.f32 %v3214, %v3213
    %v3216 = vmul.f32 0.5, %v3215
    %v3217 = vsub.f32 1.5, %v3216
    %v3218 = vmul.f32 %v3213, %v3217
    %vm3219 = vweird.f32 %v3151
    %vm3220 = vweird.f32 %v3213
    %vm3221 = vmor %vm3219, %vm3220
    %v3222 = vsel %vm3221, %v3213, %v3218
    %v3223 = vrsqrt.pop %v3152
    %v3224 = vmul.f32 %v3223, %v3152
    %v3225 = vmul.f32 %v3224, %v3223
    %v3226 = vmul.f32 0.5, %v3225
    %v3227 = vsub.f32 1.5, %v3226
    %v3228 = vmul.f32 %v3223, %v3227
    %vm3229 = vweird.f32 %v3152
    %vm3230 = vweird.f32 %v3223
    %vm3231 = vmor %vm3229, %vm3230
    %v3232 = vsel %vm3231, %v3223, %v3228
    %v3233 = vmul.f32 %v3073, %v3162
    %v3234 = vmul.f32 %v3074, %v3172
    %v3235 = vmul.f32 %v3075, %v3182
    %v3236 = vmul.f32 %v3076, %v3192
    %v3237 = vmul.f32 %v3077, %v3202
    %v3238 = vmul.f32 %v3078, %v3212
    %v3239 = vmul.f32 %v3079, %v3222
    %v3240 = vmul.f32 %v3080, %v3232
    %v3242 = vperm.slane %v1042, 0
    %v3243 = vperm.slane %v1042, 1
    %v3244 = vperm.slane %v1042, 2
    %v3245 = vperm.slane %v1042, 3
    %v3246 = vperm.slane %v1042, 4
    %v3247 = vperm.slane %v1042, 5
    %v3248 = vperm.slane %v1042, 6
    %v3249 = vperm.slane %v1042, 7
    %v3258 = vmul.f32 %v3233, %v3242
    %v3259 = vmul.f32 %v3234, %v3243
    %v3260 = vmul.f32 %v3235, %v3244
    %v3261 = vmul.f32 %v3236, %v3245
    %v3262 = vmul.f32 %v3237, %v3246
    %v3263 = vmul.f32 %v3238, %v3247
    %v3264 = vmul.f32 %v3239, %v3248
    %v3265 = vmul.f32 %v3240, %v3249
    %v3267 = vperm.slane %v1043, 0
    %v3268 = vperm.slane %v1043, 1
    %v3269 = vperm.slane %v1043, 2
    %v3270 = vperm.slane %v1043, 3
    %v3271 = vperm.slane %v1043, 4
    %v3272 = vperm.slane %v1043, 5
    %v3273 = vperm.slane %v1043, 6
    %v3274 = vperm.slane %v1043, 7
    %v3283 = vadd.f32 %v3258, %v3267
    %v3284 = vadd.f32 %v3259, %v3268
    %v3285 = vadd.f32 %v3260, %v3269
    %v3286 = vadd.f32 %v3261, %v3270
    %v3287 = vadd.f32 %v3262, %v3271
    %v3288 = vadd.f32 %v3263, %v3272
    %v3289 = vadd.f32 %v3264, %v3273
    %v3290 = vadd.f32 %v3265, %v3274
    %vm3291 = vcmp.gt.f32.partialorder %v3283, 0.0
    %vm3292 = vcmp.gt.f32.partialorder %v3284, 0.0
    %vm3293 = vcmp.gt.f32.partialorder %v3285, 0.0
    %vm3294 = vcmp.gt.f32.partialorder %v3286, 0.0
    %vm3295 = vcmp.gt.f32.partialorder %v3287, 0.0
    %vm3296 = vcmp.gt.f32.partialorder %v3288, 0.0
    %vm3297 = vcmp.gt.f32.partialorder %v3289, 0.0
    %vm3298 = vcmp.gt.f32.partialorder %v3290, 0.0
    %v3299 = vmul.f32 %v3283, 0.2
    %v3300 = vmul.f32 %v3284, 0.2
    %v3301 = vmul.f32 %v3285, 0.2
    %v3302 = vmul.f32 %v3286, 0.2
    %v3303 = vmul.f32 %v3287, 0.2
    %v3304 = vmul.f32 %v3288, 0.2
    %v3305 = vmul.f32 %v3289, 0.2
    %v3306 = vmul.f32 %v3290, 0.2
    %v3307 = vsel %vm3291, %v3283, %v3299
    %v3308 = vsel %vm3292, %v3284, %v3300
    %v3309 = vsel %vm3293, %v3285, %v3301
    %v3310 = vsel %vm3294, %v3286, %v3302
    %v3311 = vsel %vm3295, %v3287, %v3303
    %v3312 = vsel %vm3296, %v3288, %v3304
    %v3313 = vsel %vm3297, %v3289, %v3305
    %v3314 = vsel %vm3298, %v3290, %v3306
    %v3315 = vld [vmem:[#allocation13 + $0x2b] sm:$0x3]
    %v3316 = vpack.c.bf16 %v3307, %v3307
    %v3317 = vpack.c.bf16 %v3308, %v3308
    %v3318 = vpack.c.bf16 %v3309, %v3309
    %v3319 = vpack.c.bf16 %v3310, %v3310
    %v3320 = vpack.c.bf16 %v3311, %v3311
    %v3321 = vpack.c.bf16 %v3312, %v3312
    %v3322 = vpack.c.bf16 %v3313, %v3313
    %v3323 = vpack.c.bf16 %v3314, %v3314
    %v3324 = vld [vmem:[#allocation11] sm:$0xff]
    %v3325 = vld [vmem:[#allocation11 + $0x8] sm:$0xff]
    %v3326 = vld [vmem:[#allocation11 + $0x10] sm:$0xff]
    %v3327 = vld [vmem:[#allocation11 + $0x18] sm:$0xff]
    %v3328 = vld [vmem:[#allocation11 + $0x20] sm:$0xff]
    %v3329 = vld [vmem:[#allocation11 + $0x28] sm:$0xff]
    %v3330 = vld [vmem:[#allocation11 + $0x30] sm:$0xff]
    %v3331 = vld [vmem:[#allocation11 + $0x38] sm:$0xff]
    %v3332 = vld [vmem:[#allocation11 + $0x40] sm:$0xff]
    %v3333 = vld [vmem:[#allocation11 + $0x48] sm:$0xff]
    %v3334 = vld [vmem:[#allocation11 + $0x50] sm:$0xff]
    %v3335 = vld [vmem:[#allocation11 + $0x58] sm:$0xff]
    %v3336 = vld [vmem:[#allocation11 + $0x60] sm:$0xff]
    %v3337 = vld [vmem:[#allocation11 + $0x68] sm:$0xff]
    %v3338 = vld [vmem:[#allocation11 + $0x70] sm:$0xff]
    %v3339 = vld [vmem:[#allocation11 + $0x78] sm:$0xff]
    %v3340 = vld [vmem:[#allocation11 + $0x80] sm:$0xff]
    %v3341 = vld [vmem:[#allocation11 + $0x88] sm:$0xff]
    %v3342 = vld [vmem:[#allocation11 + $0x90] sm:$0xff]
    %v3343 = vld [vmem:[#allocation11 + $0x98] sm:$0xff]
    %v3344 = vld [vmem:[#allocation11 + $0xa0] sm:$0xff]
    %v3345 = vld [vmem:[#allocation11 + $0xa8] sm:$0xff]
    %v3346 = vld [vmem:[#allocation11 + $0xb0] sm:$0xff]
    %v3347 = vld [vmem:[#allocation11 + $0xb8] sm:$0xff]
    %v3348 = vld [vmem:[#allocation11 + $0xc0] sm:$0xff]
    %v3349 = vld [vmem:[#allocation11 + $0xc8] sm:$0xff]
    %v3350 = vld [vmem:[#allocation11 + $0xd0] sm:$0xff]
    %v3351 = vld [vmem:[#allocation11 + $0xd8] sm:$0xff]
    %v3352 = vld [vmem:[#allocation11 + $0xe0] sm:$0xff]
    %v3353 = vld [vmem:[#allocation11 + $0xe8] sm:$0xff]
    %v3354 = vld [vmem:[#allocation11 + $0xf0] sm:$0xff]
    %v3355 = vld [vmem:[#allocation11 + $0xf8] sm:$0xff]
    %v3356 = vld [vmem:[#allocation11 + $0x100] sm:$0xff]
    %v3357 = vld [vmem:[#allocation11 + $0x108] sm:$0xff]
    %v3358 = vld [vmem:[#allocation11 + $0x110] sm:$0xff]
    %v3359 = vld [vmem:[#allocation11 + $0x118] sm:$0xff]
    %v3360 = vld [vmem:[#allocation11 + $0x120] sm:$0xff]
    %v3361 = vld [vmem:[#allocation11 + $0x128] sm:$0xff]
    %v3362 = vld [vmem:[#allocation11 + $0x130] sm:$0xff]
    %v3363 = vld [vmem:[#allocation11 + $0x138] sm:$0xff]
    %v3364 = vld [vmem:[#allocation11 + $0x140] sm:$0xff]
    %v3365 = vld [vmem:[#allocation11 + $0x148] sm:$0xff]
    %v3366 = vld [vmem:[#allocation11 + $0x150] sm:$0xff]
    %v3367 = vld [vmem:[#allocation11 + $0x158] sm:$0xff]
    %v3368 = vld [vmem:[#allocation11 + $0x160] sm:$0xff]
    %v3369 = vld [vmem:[#allocation11 + $0x168] sm:$0xff]
    %v3370 = vld [vmem:[#allocation11 + $0x170] sm:$0xff]
    %v3371 = vld [vmem:[#allocation11 + $0x178] sm:$0xff]
    %v3372 = vld [vmem:[#allocation11 + $0x180] sm:$0xff]
    %v3373 = vld [vmem:[#allocation11 + $0x188] sm:$0xff]
    %v3374 = vld [vmem:[#allocation11 + $0x190] sm:$0xff]
    %v3375 = vld [vmem:[#allocation11 + $0x198] sm:$0xff]
    %v3376 = vld [vmem:[#allocation11 + $0x1a0] sm:$0xff]
    %v3377 = vld [vmem:[#allocation11 + $0x1a8] sm:$0xff]
    %v3378 = vld [vmem:[#allocation11 + $0x1b0] sm:$0xff]
    %v3379 = vld [vmem:[#allocation11 + $0x1b8] sm:$0xff]
    %v3380 = vld [vmem:[#allocation11 + $0x1c0] sm:$0xff]
    %v3381 = vld [vmem:[#allocation11 + $0x1c8] sm:$0xff]
    %v3382 = vld [vmem:[#allocation11 + $0x1d0] sm:$0xff]
    %v3383 = vld [vmem:[#allocation11 + $0x1d8] sm:$0xff]
    %v3384 = vld [vmem:[#allocation11 + $0x1e0] sm:$0xff]
    %v3385 = vld [vmem:[#allocation11 + $0x1e8] sm:$0xff]
    %v3386 = vld [vmem:[#allocation11 + $0x1f0] sm:$0xff]
    %v3387 = vld [vmem:[#allocation11 + $0x1f8] sm:$0xff]
    %v3388 = vld [vmem:[#allocation11 + $0x200] sm:$0xff]
    %v3389 = vld [vmem:[#allocation11 + $0x208] sm:$0xff]
    %v3390 = vld [vmem:[#allocation11 + $0x210] sm:$0xff]
    %v3391 = vld [vmem:[#allocation11 + $0x218] sm:$0xff]
    %v3392 = vld [vmem:[#allocation11 + $0x220] sm:$0xff]
    %v3393 = vld [vmem:[#allocation11 + $0x228] sm:$0xff]
    %v3394 = vld [vmem:[#allocation11 + $0x230] sm:$0xff]
    %v3395 = vld [vmem:[#allocation11 + $0x238] sm:$0xff]
    %v3396 = vld [vmem:[#allocation11 + $0x240] sm:$0xff]
    %v3397 = vld [vmem:[#allocation11 + $0x248] sm:$0xff]
    %v3398 = vld [vmem:[#allocation11 + $0x250] sm:$0xff]
    %v3399 = vld [vmem:[#allocation11 + $0x258] sm:$0xff]
    %v3400 = vld [vmem:[#allocation11 + $0x260] sm:$0xff]
    %v3401 = vld [vmem:[#allocation11 + $0x268] sm:$0xff]
    %v3402 = vld [vmem:[#allocation11 + $0x270] sm:$0xff]
    %v3403 = vld [vmem:[#allocation11 + $0x278] sm:$0xff]
    %v3404 = vld [vmem:[#allocation11 + $0x280] sm:$0xff]
    %v3405 = vld [vmem:[#allocation11 + $0x288] sm:$0xff]
    %v3406 = vld [vmem:[#allocation11 + $0x290] sm:$0xff]
    %v3407 = vld [vmem:[#allocation11 + $0x298] sm:$0xff]
    %v3408 = vld [vmem:[#allocation11 + $0x2a0] sm:$0xff]
    %v3409 = vld [vmem:[#allocation11 + $0x2a8] sm:$0xff]
    %v3410 = vld [vmem:[#allocation11 + $0x2b0] sm:$0xff]
    %v3411 = vld [vmem:[#allocation11 + $0x2b8] sm:$0xff]
    %v3412 = vld [vmem:[#allocation11 + $0x2c0] sm:$0xff]
    %v3413 = vld [vmem:[#allocation11 + $0x2c8] sm:$0xff]
    %v3414 = vld [vmem:[#allocation11 + $0x2d0] sm:$0xff]
    %v3415 = vld [vmem:[#allocation11 + $0x2d8] sm:$0xff]
    %v3416 = vld [vmem:[#allocation11 + $0x2e0] sm:$0xff]
    %v3417 = vld [vmem:[#allocation11 + $0x2e8] sm:$0xff]
    %v3418 = vld [vmem:[#allocation11 + $0x2f0] sm:$0xff]
    %v3419 = vld [vmem:[#allocation11 + $0x2f8] sm:$0xff]
    %v3420 = vld [vmem:[#allocation11 + $0x300] sm:$0xff]
    %v3421 = vld [vmem:[#allocation11 + $0x308] sm:$0xff]
    %v3422 = vld [vmem:[#allocation11 + $0x310] sm:$0xff]
    %v3423 = vld [vmem:[#allocation11 + $0x318] sm:$0xff]
    %v3424 = vld [vmem:[#allocation11 + $0x320] sm:$0xff]
    %v3425 = vld [vmem:[#allocation11 + $0x328] sm:$0xff]
    %v3426 = vld [vmem:[#allocation11 + $0x330] sm:$0xff]
    %v3427 = vld [vmem:[#allocation11 + $0x338] sm:$0xff]
    %v3428 = vld [vmem:[#allocation11 + $0x340] sm:$0xff]
    %v3429 = vld [vmem:[#allocation11 + $0x348] sm:$0xff]
    %v3430 = vld [vmem:[#allocation11 + $0x350] sm:$0xff]
    %v3431 = vld [vmem:[#allocation11 + $0x358] sm:$0xff]
    %v3432 = vld [vmem:[#allocation11 + $0x360] sm:$0xff]
    %v3433 = vld [vmem:[#allocation11 + $0x368] sm:$0xff]
    %v3434 = vld [vmem:[#allocation11 + $0x370] sm:$0xff]
    %v3435 = vld [vmem:[#allocation11 + $0x378] sm:$0xff]
    %v3436 = vld [vmem:[#allocation11 + $0x380] sm:$0xff]
    %v3437 = vld [vmem:[#allocation11 + $0x388] sm:$0xff]
    %v3438 = vld [vmem:[#allocation11 + $0x390] sm:$0xff]
    %v3439 = vld [vmem:[#allocation11 + $0x398] sm:$0xff]
    %v3440 = vld [vmem:[#allocation11 + $0x3a0] sm:$0xff]
    %v3441 = vld [vmem:[#allocation11 + $0x3a8] sm:$0xff]
    %v3442 = vld [vmem:[#allocation11 + $0x3b0] sm:$0xff]
    %v3443 = vld [vmem:[#allocation11 + $0x3b8] sm:$0xff]
    %v3444 = vld [vmem:[#allocation11 + $0x3c0] sm:$0xff]
    %v3445 = vld [vmem:[#allocation11 + $0x3c8] sm:$0xff]
    %v3446 = vld [vmem:[#allocation11 + $0x3d0] sm:$0xff]
    %v3447 = vld [vmem:[#allocation11 + $0x3d8] sm:$0xff]
    %v3448 = vld [vmem:[#allocation11 + $0x3e0] sm:$0xff]
    %v3449 = vld [vmem:[#allocation11 + $0x3e8] sm:$0xff]
    %v3450 = vld [vmem:[#allocation11 + $0x3f0] sm:$0xff]
    %v3451 = vld [vmem:[#allocation11 + $0x3f8] sm:$0xff]
    %v3453 = vperm.slane %v3315, 0
    %v3454 = vperm.slane %v3315, 1
    %v3585 = vunpack.c.l.b16 %v3324
    %v3586 = vunpack.c.h.b16 %v3324
    %v3587 = vunpack.c.l.b16 %v3325
    %v3588 = vunpack.c.h.b16 %v3325
    %v3589 = vunpack.c.l.b16 %v3326
    %v3590 = vunpack.c.h.b16 %v3326
    %v3591 = vunpack.c.l.b16 %v3327
    %v3592 = vunpack.c.h.b16 %v3327
    %v3593 = vunpack.c.l.b16 %v3328
    %v3594 = vunpack.c.h.b16 %v3328
    %v3595 = vunpack.c.l.b16 %v3329
    %v3596 = vunpack.c.h.b16 %v3329
    %v3597 = vunpack.c.l.b16 %v3330
    %v3598 = vunpack.c.h.b16 %v3330
    %v3599 = vunpack.c.l.b16 %v3331
    %v3600 = vunpack.c.h.b16 %v3331
    %v3601 = vunpack.c.l.b16 %v3332
    %v3602 = vunpack.c.h.b16 %v3332
    %v3603 = vunpack.c.l.b16 %v3333
    %v3604 = vunpack.c.h.b16 %v3333
    %v3605 = vunpack.c.l.b16 %v3334
    %v3606 = vunpack.c.h.b16 %v3334
    %v3607 = vunpack.c.l.b16 %v3335
    %v3608 = vunpack.c.h.b16 %v3335
    %v3609 = vunpack.c.l.b16 %v3336
    %v3610 = vunpack.c.h.b16 %v3336
    %v3611 = vunpack.c.l.b16 %v3337
    %v3612 = vunpack.c.h.b16 %v3337
    %v3613 = vunpack.c.l.b16 %v3338
    %v3614 = vunpack.c.h.b16 %v3338
    %v3615 = vunpack.c.l.b16 %v3339
    %v3616 = vunpack.c.h.b16 %v3339
    %v3617 = vunpack.c.l.b16 %v3340
    %v3618 = vunpack.c.h.b16 %v3340
    %v3619 = vunpack.c.l.b16 %v3341
    %v3620 = vunpack.c.h.b16 %v3341
    %v3621 = vunpack.c.l.b16 %v3342
    %v3622 = vunpack.c.h.b16 %v3342
    %v3623 = vunpack.c.l.b16 %v3343
    %v3624 = vunpack.c.h.b16 %v3343
    %v3625 = vunpack.c.l.b16 %v3344
    %v3626 = vunpack.c.h.b16 %v3344
    %v3627 = vunpack.c.l.b16 %v3345
    %v3628 = vunpack.c.h.b16 %v3345
    %v3629 = vunpack.c.l.b16 %v3346
    %v3630 = vunpack.c.h.b16 %v3346
    %v3631 = vunpack.c.l.b16 %v3347
    %v3632 = vunpack.c.h.b16 %v3347
    %v3633 = vunpack.c.l.b16 %v3348
    %v3634 = vunpack.c.h.b16 %v3348
    %v3635 = vunpack.c.l.b16 %v3349
    %v3636 = vunpack.c.h.b16 %v3349
    %v3637 = vunpack.c.l.b16 %v3350
    %v3638 = vunpack.c.h.b16 %v3350
    %v3639 = vunpack.c.l.b16 %v3351
    %v3640 = vunpack.c.h.b16 %v3351
    %v3641 = vunpack.c.l.b16 %v3352
    %v3642 = vunpack.c.h.b16 %v3352
    %v3643 = vunpack.c.l.b16 %v3353
    %v3644 = vunpack.c.h.b16 %v3353
    %v3645 = vunpack.c.l.b16 %v3354
    %v3646 = vunpack.c.h.b16 %v3354
    %v3647 = vunpack.c.l.b16 %v3355
    %v3648 = vunpack.c.h.b16 %v3355
    %v3649 = vunpack.c.l.b16 %v3356
    %v3650 = vunpack.c.h.b16 %v3356
    %v3651 = vunpack.c.l.b16 %v3357
    %v3652 = vunpack.c.h.b16 %v3357
    %v3653 = vunpack.c.l.b16 %v3358
    %v3654 = vunpack.c.h.b16 %v3358
    %v3655 = vunpack.c.l.b16 %v3359
    %v3656 = vunpack.c.h.b16 %v3359
    %v3657 = vunpack.c.l.b16 %v3360
    %v3658 = vunpack.c.h.b16 %v3360
    %v3659 = vunpack.c.l.b16 %v3361
    %v3660 = vunpack.c.h.b16 %v3361
    %v3661 = vunpack.c.l.b16 %v3362
    %v3662 = vunpack.c.h.b16 %v3362
    %v3663 = vunpack.c.l.b16 %v3363
    %v3664 = vunpack.c.h.b16 %v3363
    %v3665 = vunpack.c.l.b16 %v3364
    %v3666 = vunpack.c.h.b16 %v3364
    %v3667 = vunpack.c.l.b16 %v3365
    %v3668 = vunpack.c.h.b16 %v3365
    %v3669 = vunpack.c.l.b16 %v3366
    %v3670 = vunpack.c.h.b16 %v3366
    %v3671 = vunpack.c.l.b16 %v3367
    %v3672 = vunpack.c.h.b16 %v3367
    %v3673 = vunpack.c.l.b16 %v3368
    %v3674 = vunpack.c.h.b16 %v3368
    %v3675 = vunpack.c.l.b16 %v3369
    %v3676 = vunpack.c.h.b16 %v3369
    %v3677 = vunpack.c.l.b16 %v3370
    %v3678 = vunpack.c.h.b16 %v3370
    %v3679 = vunpack.c.l.b16 %v3371
    %v3680 = vunpack.c.h.b16 %v3371
    %v3681 = vunpack.c.l.b16 %v3372
    %v3682 = vunpack.c.h.b16 %v3372
    %v3683 = vunpack.c.l.b16 %v3373
    %v3684 = vunpack.c.h.b16 %v3373
    %v3685 = vunpack.c.l.b16 %v3374
    %v3686 = vunpack.c.h.b16 %v3374
    %v3687 = vunpack.c.l.b16 %v3375
    %v3688 = vunpack.c.h.b16 %v3375
    %v3689 = vunpack.c.l.b16 %v3376
    %v3690 = vunpack.c.h.b16 %v3376
    %v3691 = vunpack.c.l.b16 %v3377
    %v3692 = vunpack.c.h.b16 %v3377
    %v3693 = vunpack.c.l.b16 %v3378
    %v3694 = vunpack.c.h.b16 %v3378
    %v3695 = vunpack.c.l.b16 %v3379
    %v3696 = vunpack.c.h.b16 %v3379
    %v3697 = vunpack.c.l.b16 %v3380
    %v3698 = vunpack.c.h.b16 %v3380
    %v3699 = vunpack.c.l.b16 %v3381
    %v3700 = vunpack.c.h.b16 %v3381
    %v3701 = vunpack.c.l.b16 %v3382
    %v3702 = vunpack.c.h.b16 %v3382
    %v3703 = vunpack.c.l.b16 %v3383
    %v3704 = vunpack.c.h.b16 %v3383
    %v3705 = vunpack.c.l.b16 %v3384
    %v3706 = vunpack.c.h.b16 %v3384
    %v3707 = vunpack.c.l.b16 %v3385
    %v3708 = vunpack.c.h.b16 %v3385
    %v3709 = vunpack.c.l.b16 %v3386
    %v3710 = vunpack.c.h.b16 %v3386
    %v3711 = vunpack.c.l.b16 %v3387
    %v3712 = vunpack.c.h.b16 %v3387
    %v3713 = vunpack.c.l.b16 %v3388
    %v3714 = vunpack.c.h.b16 %v3388
    %v3715 = vunpack.c.l.b16 %v3389
    %v3716 = vunpack.c.h.b16 %v3389
    %v3717 = vunpack.c.l.b16 %v3390
    %v3718 = vunpack.c.h.b16 %v3390
    %v3719 = vunpack.c.l.b16 %v3391
    %v3720 = vunpack.c.h.b16 %v3391
    %v3721 = vunpack.c.l.b16 %v3392
    %v3722 = vunpack.c.h.b16 %v3392
    %v3723 = vunpack.c.l.b16 %v3393
    %v3724 = vunpack.c.h.b16 %v3393
    %v3725 = vunpack.c.l.b16 %v3394
    %v3726 = vunpack.c.h.b16 %v3394
    %v3727 = vunpack.c.l.b16 %v3395
    %v3728 = vunpack.c.h.b16 %v3395
    %v3729 = vunpack.c.l.b16 %v3396
    %v3730 = vunpack.c.h.b16 %v3396
    %v3731 = vunpack.c.l.b16 %v3397
    %v3732 = vunpack.c.h.b16 %v3397
    %v3733 = vunpack.c.l.b16 %v3398
    %v3734 = vunpack.c.h.b16 %v3398
    %v3735 = vunpack.c.l.b16 %v3399
    %v3736 = vunpack.c.h.b16 %v3399
    %v3737 = vunpack.c.l.b16 %v3400
    %v3738 = vunpack.c.h.b16 %v3400
    %v3739 = vunpack.c.l.b16 %v3401
    %v3740 = vunpack.c.h.b16 %v3401
    %v3741 = vunpack.c.l.b16 %v3402
    %v3742 = vunpack.c.h.b16 %v3402
    %v3743 = vunpack.c.l.b16 %v3403
    %v3744 = vunpack.c.h.b16 %v3403
    %v3745 = vunpack.c.l.b16 %v3404
    %v3746 = vunpack.c.h.b16 %v3404
    %v3747 = vunpack.c.l.b16 %v3405
    %v3748 = vunpack.c.h.b16 %v3405
    %v3749 = vunpack.c.l.b16 %v3406
    %v3750 = vunpack.c.h.b16 %v3406
    %v3751 = vunpack.c.l.b16 %v3407
    %v3752 = vunpack.c.h.b16 %v3407
    %v3753 = vunpack.c.l.b16 %v3408
    %v3754 = vunpack.c.h.b16 %v3408
    %v3755 = vunpack.c.l.b16 %v3409
    %v3756 = vunpack.c.h.b16 %v3409
    %v3757 = vunpack.c.l.b16 %v3410
    %v3758 = vunpack.c.h.b16 %v3410
    %v3759 = vunpack.c.l.b16 %v3411
    %v3760 = vunpack.c.h.b16 %v3411
    %v3761 = vunpack.c.l.b16 %v3412
    %v3762 = vunpack.c.h.b16 %v3412
    %v3763 = vunpack.c.l.b16 %v3413
    %v3764 = vunpack.c.h.b16 %v3413
    %v3765 = vunpack.c.l.b16 %v3414
    %v3766 = vunpack.c.h.b16 %v3414
    %v3767 = vunpack.c.l.b16 %v3415
    %v3768 = vunpack.c.h.b16 %v3415
    %v3769 = vunpack.c.l.b16 %v3416
    %v3770 = vunpack.c.h.b16 %v3416
    %v3771 = vunpack.c.l.b16 %v3417
    %v3772 = vunpack.c.h.b16 %v3417
    %v3773 = vunpack.c.l.b16 %v3418
    %v3774 = vunpack.c.h.b16 %v3418
    %v3775 = vunpack.c.l.b16 %v3419
    %v3776 = vunpack.c.h.b16 %v3419
    %v3777 = vunpack.c.l.b16 %v3420
    %v3778 = vunpack.c.h.b16 %v3420
    %v3779 = vunpack.c.l.b16 %v3421
    %v3780 = vunpack.c.h.b16 %v3421
    %v3781 = vunpack.c.l.b16 %v3422
    %v3782 = vunpack.c.h.b16 %v3422
    %v3783 = vunpack.c.l.b16 %v3423
    %v3784 = vunpack.c.h.b16 %v3423
    %v3785 = vunpack.c.l.b16 %v3424
    %v3786 = vunpack.c.h.b16 %v3424
    %v3787 = vunpack.c.l.b16 %v3425
    %v3788 = vunpack.c.h.b16 %v3425
    %v3789 = vunpack.c.l.b16 %v3426
    %v3790 = vunpack.c.h.b16 %v3426
    %v3791 = vunpack.c.l.b16 %v3427
    %v3792 = vunpack.c.h.b16 %v3427
    %v3793 = vunpack.c.l.b16 %v3428
    %v3794 = vunpack.c.h.b16 %v3428
    %v3795 = vunpack.c.l.b16 %v3429
    %v3796 = vunpack.c.h.b16 %v3429
    %v3797 = vunpack.c.l.b16 %v3430
    %v3798 = vunpack.c.h.b16 %v3430
    %v3799 = vunpack.c.l.b16 %v3431
    %v3800 = vunpack.c.h.b16 %v3431
    %v3801 = vunpack.c.l.b16 %v3432
    %v3802 = vunpack.c.h.b16 %v3432
    %v3803 = vunpack.c.l.b16 %v3433
    %v3804 = vunpack.c.h.b16 %v3433
    %v3805 = vunpack.c.l.b16 %v3434
    %v3806 = vunpack.c.h.b16 %v3434
    %v3807 = vunpack.c.l.b16 %v3435
    %v3808 = vunpack.c.h.b16 %v3435
    %v3809 = vunpack.c.l.b16 %v3436
    %v3810 = vunpack.c.h.b16 %v3436
    %v3811 = vunpack.c.l.b16 %v3437
    %v3812 = vunpack.c.h.b16 %v3437
    %v3813 = vunpack.c.l.b16 %v3438
    %v3814 = vunpack.c.h.b16 %v3438
    %v3815 = vunpack.c.l.b16 %v3439
    %v3816 = vunpack.c.h.b16 %v3439
    %v3817 = vunpack.c.l.b16 %v3440
    %v3818 = vunpack.c.h.b16 %v3440
    %v3819 = vunpack.c.l.b16 %v3441
    %v3820 = vunpack.c.h.b16 %v3441
    %v3821 = vunpack.c.l.b16 %v3442
    %v3822 = vunpack.c.h.b16 %v3442
    %v3823 = vunpack.c.l.b16 %v3443
    %v3824 = vunpack.c.h.b16 %v3443
    %v3825 = vunpack.c.l.b16 %v3444
    %v3826 = vunpack.c.h.b16 %v3444
    %v3827 = vunpack.c.l.b16 %v3445
    %v3828 = vunpack.c.h.b16 %v3445
    %v3829 = vunpack.c.l.b16 %v3446
    %v3830 = vunpack.c.h.b16 %v3446
    %v3831 = vunpack.c.l.b16 %v3447
    %v3832 = vunpack.c.h.b16 %v3447
    %v3833 = vunpack.c.l.b16 %v3448
    %v3834 = vunpack.c.h.b16 %v3448
    %v3835 = vunpack.c.l.b16 %v3449
    %v3836 = vunpack.c.h.b16 %v3449
    %v3837 = vunpack.c.l.b16 %v3450
    %v3838 = vunpack.c.h.b16 %v3450
    %v3839 = vunpack.c.l.b16 %v3451
    %v3840 = vunpack.c.h.b16 %v3451
    %v3841 = vpack.c.b16 %v3587, %v3585
    %v3842 = vpack.c.b16 %v3588, %v3586
    %v3843 = vpack.c.b16 %v3591, %v3589
    %v3844 = vpack.c.b16 %v3592, %v3590
    %v3845 = vpack.c.b16 %v3595, %v3593
    %v3846 = vpack.c.b16 %v3596, %v3594
    %v3847 = vpack.c.b16 %v3599, %v3597
    %v3848 = vpack.c.b16 %v3600, %v3598
    %v3849 = vpack.c.b16 %v3603, %v3601
    %v3850 = vpack.c.b16 %v3604, %v3602
    %v3851 = vpack.c.b16 %v3607, %v3605
    %v3852 = vpack.c.b16 %v3608, %v3606
    %v3853 = vpack.c.b16 %v3611, %v3609
    %v3854 = vpack.c.b16 %v3612, %v3610
    %v3855 = vpack.c.b16 %v3615, %v3613
    %v3856 = vpack.c.b16 %v3616, %v3614
    %v3857 = vpack.c.b16 %v3619, %v3617
    %v3858 = vpack.c.b16 %v3620, %v3618
    %v3859 = vpack.c.b16 %v3623, %v3621
    %v3860 = vpack.c.b16 %v3624, %v3622
    %v3861 = vpack.c.b16 %v3627, %v3625
    %v3862 = vpack.c.b16 %v3628, %v3626
    %v3863 = vpack.c.b16 %v3631, %v3629
    %v3864 = vpack.c.b16 %v3632, %v3630
    %v3865 = vpack.c.b16 %v3635, %v3633
    %v3866 = vpack.c.b16 %v3636, %v3634
    %v3867 = vpack.c.b16 %v3639, %v3637
    %v3868 = vpack.c.b16 %v3640, %v3638
    %v3869 = vpack.c.b16 %v3643, %v3641
    %v3870 = vpack.c.b16 %v3644, %v3642
    %v3871 = vpack.c.b16 %v3647, %v3645
    %v3872 = vpack.c.b16 %v3648, %v3646
    %v3873 = vpack.c.b16 %v3651, %v3649
    %v3874 = vpack.c.b16 %v3652, %v3650
    %v3875 = vpack.c.b16 %v3655, %v3653
    %v3876 = vpack.c.b16 %v3656, %v3654
    %v3877 = vpack.c.b16 %v3659, %v3657
    %v3878 = vpack.c.b16 %v3660, %v3658
    %v3879 = vpack.c.b16 %v3663, %v3661
    %v3880 = vpack.c.b16 %v3664, %v3662
    %v3881 = vpack.c.b16 %v3667, %v3665
    %v3882 = vpack.c.b16 %v3668, %v3666
    %v3883 = vpack.c.b16 %v3671, %v3669
    %v3884 = vpack.c.b16 %v3672, %v3670
    %v3885 = vpack.c.b16 %v3675, %v3673
    %v3886 = vpack.c.b16 %v3676, %v3674
    %v3887 = vpack.c.b16 %v3679, %v3677
    %v3888 = vpack.c.b16 %v3680, %v3678
    %v3889 = vpack.c.b16 %v3683, %v3681
    %v3890 = vpack.c.b16 %v3684, %v3682
    %v3891 = vpack.c.b16 %v3687, %v3685
    %v3892 = vpack.c.b16 %v3688, %v3686
    %v3893 = vpack.c.b16 %v3691, %v3689
    %v3894 = vpack.c.b16 %v3692, %v3690
    %v3895 = vpack.c.b16 %v3695, %v3693
    %v3896 = vpack.c.b16 %v3696, %v3694
    %v3897 = vpack.c.b16 %v3699, %v3697
    %v3898 = vpack.c.b16 %v3700, %v3698
    %v3899 = vpack.c.b16 %v3703, %v3701
    %v3900 = vpack.c.b16 %v3704, %v3702
    %v3901 = vpack.c.b16 %v3707, %v3705
    %v3902 = vpack.c.b16 %v3708, %v3706
    %v3903 = vpack.c.b16 %v3711, %v3709
    %v3904 = vpack.c.b16 %v3712, %v3710
    %v3905 = vpack.c.b16 %v3715, %v3713
    %v3906 = vpack.c.b16 %v3716, %v3714
    %v3907 = vpack.c.b16 %v3719, %v3717
    %v3908 = vpack.c.b16 %v3720, %v3718
    %v3909 = vpack.c.b16 %v3723, %v3721
    %v3910 = vpack.c.b16 %v3724, %v3722
    %v3911 = vpack.c.b16 %v3727, %v3725
    %v3912 = vpack.c.b16 %v3728, %v3726
    %v3913 = vpack.c.b16 %v3731, %v3729
    %v3914 = vpack.c.b16 %v3732, %v3730
    %v3915 = vpack.c.b16 %v3735, %v3733
    %v3916 = vpack.c.b16 %v3736, %v3734
    %v3917 = vpack.c.b16 %v3739, %v3737
    %v3918 = vpack.c.b16 %v3740, %v3738
    %v3919 = vpack.c.b16 %v3743, %v3741
    %v3920 = vpack.c.b16 %v3744, %v3742
    %v3921 = vpack.c.b16 %v3747, %v3745
    %v3922 = vpack.c.b16 %v3748, %v3746
    %v3923 = vpack.c.b16 %v3751, %v3749
    %v3924 = vpack.c.b16 %v3752, %v3750
    %v3925 = vpack.c.b16 %v3755, %v3753
    %v3926 = vpack.c.b16 %v3756, %v3754
    %v3927 = vpack.c.b16 %v3759, %v3757
    %v3928 = vpack.c.b16 %v3760, %v3758
    %v3929 = vpack.c.b16 %v3763, %v3761
    %v3930 = vpack.c.b16 %v3764, %v3762
    %v3931 = vpack.c.b16 %v3767, %v3765
    %v3932 = vpack.c.b16 %v3768, %v3766
    %v3933 = vpack.c.b16 %v3771, %v3769
    %v3934 = vpack.c.b16 %v3772, %v3770
    %v3935 = vpack.c.b16 %v3775, %v3773
    %v3936 = vpack.c.b16 %v3776, %v3774
    %v3937 = vpack.c.b16 %v3779, %v3777
    %v3938 = vpack.c.b16 %v3780, %v3778
    %v3939 = vpack.c.b16 %v3783, %v3781
    %v3940 = vpack.c.b16 %v3784, %v3782
    %v3941 = vpack.c.b16 %v3787, %v3785
    %v3942 = vpack.c.b16 %v3788, %v3786
    %v3943 = vpack.c.b16 %v3791, %v3789
    %v3944 = vpack.c.b16 %v3792, %v3790
    %v3945 = vpack.c.b16 %v3795, %v3793
    %v3946 = vpack.c.b16 %v3796, %v3794
    %v3947 = vpack.c.b16 %v3799, %v3797
    %v3948 = vpack.c.b16 %v3800, %v3798
    %v3949 = vpack.c.b16 %v3803, %v3801
    %v3950 = vpack.c.b16 %v3804, %v3802
    %v3951 = vpack.c.b16 %v3807, %v3805
    %v3952 = vpack.c.b16 %v3808, %v3806
    %v3953 = vpack.c.b16 %v3811, %v3809
    %v3954 = vpack.c.b16 %v3812, %v3810
    %v3955 = vpack.c.b16 %v3815, %v3813
    %v3956 = vpack.c.b16 %v3816, %v3814
    %v3957 = vpack.c.b16 %v3819, %v3817
    %v3958 = vpack.c.b16 %v3820, %v3818
    %v3959 = vpack.c.b16 %v3823, %v3821
    %v3960 = vpack.c.b16 %v3824, %v3822
    %v3961 = vpack.c.b16 %v3827, %v3825
    %v3962 = vpack.c.b16 %v3828, %v3826
    %v3963 = vpack.c.b16 %v3831, %v3829
    %v3964 = vpack.c.b16 %v3832, %v3830
    %v3965 = vpack.c.b16 %v3835, %v3833
    %v3966 = vpack.c.b16 %v3836, %v3834
    %v3967 = vpack.c.b16 %v3839, %v3837
    %v3968 = vpack.c.b16 %v3840, %v3838
    %4097 = vmatpush.bf16.msra.mxu0 %v3855
    %4098 = vmatpush.bf16.msra.mxu0 %v3853
    %4099 = vmatpush.bf16.msra.mxu0 %v3851
    %4100 = vmatpush.bf16.msra.mxu0 %v3849
    %4101 = vmatpush.bf16.msra.mxu0 %v3847
    %4102 = vmatpush.bf16.msra.mxu0 %v3845
    %4103 = vmatpush.bf16.msra.mxu0 %v3843
    %4104 = vmatpush.bf16.msra.mxu0 %v3841
    %4105 = vmatmul.bf16.gmra.mxu0 %v3316
    %v4106 = vpop.f32.mrf.mxu0
    %v4107 = vadd.f32 %v3453, %v4106
    %v4108 = vpop.f32.mrf.mxu0
    %4109 = vdwg.mxu0
    %4110 = vmatpush.bf16.msra.mxu0 %v3871
    %4111 = vmatpush.bf16.msra.mxu0 %v3869
    %4112 = vmatpush.bf16.msra.mxu0 %v3867
    %4113 = vmatpush.bf16.msra.mxu0 %v3865
    %4114 = vmatpush.bf16.msra.mxu0 %v3863
    %4115 = vmatpush.bf16.msra.mxu0 %v3861
    %4116 = vmatpush.bf16.msra.mxu0 %v3859
    %4117 = vmatpush.bf16.msra.mxu0 %v3857
    %4118 = vmatmul.bf16.gmra.mxu0 %v3317
    %v4119 = vpop.f32.mrf.mxu0
    %v4120 = vadd.f32 %v4107, %v4119
    %v4121 = vpop.f32.mrf.mxu0
    %4122 = vdwg.mxu0
    %4123 = vmatpush.bf16.msra.mxu0 %v3887
    %4124 = vmatpush.bf16.msra.mxu0 %v3885
    %4125 = vmatpush.bf16.msra.mxu0 %v3883
    %4126 = vmatpush.bf16.msra.mxu0 %v3881
    %4127 = vmatpush.bf16.msra.mxu0 %v3879
    %4128 = vmatpush.bf16.msra.mxu0 %v3877
    %4129 = vmatpush.bf16.msra.mxu0 %v3875
    %4130 = vmatpush.bf16.msra.mxu0 %v3873
    %4131 = vmatmul.bf16.gmra.mxu0 %v3318
    %v4132 = vpop.f32.mrf.mxu0
    %v4133 = vadd.f32 %v4120, %v4132
    %v4134 = vpop.f32.mrf.mxu0
    %4135 = vdwg.mxu0
    %4136 = vmatpush.bf16.msra.mxu0 %v3903
    %4137 = vmatpush.bf16.msra.mxu0 %v3901
    %4138 = vmatpush.bf16.msra.mxu0 %v3899
    %4139 = vmatpush.bf16.msra.mxu0 %v3897
    %4140 = vmatpush.bf16.msra.mxu0 %v3895
    %4141 = vmatpush.bf16.msra.mxu0 %v3893
    %4142 = vmatpush.bf16.msra.mxu0 %v3891
    %4143 = vmatpush.bf16.msra.mxu0 %v3889
    %4144 = vmatmul.bf16.gmra.mxu0 %v3319
    %v4145 = vpop.f32.mrf.mxu0
    %v4146 = vadd.f32 %v4133, %v4145
    %v4147 = vpop.f32.mrf.mxu0
    %4148 = vdwg.mxu0
    %4149 = vmatpush.bf16.msra.mxu0 %v3919
    %4150 = vmatpush.bf16.msra.mxu0 %v3917
    %4151 = vmatpush.bf16.msra.mxu0 %v3915
    %4152 = vmatpush.bf16.msra.mxu0 %v3913
    %4153 = vmatpush.bf16.msra.mxu0 %v3911
    %4154 = vmatpush.bf16.msra.mxu0 %v3909
    %4155 = vmatpush.bf16.msra.mxu0 %v3907
    %4156 = vmatpush.bf16.msra.mxu0 %v3905
    %4157 = vmatmul.bf16.gmra.mxu0 %v3320
    %v4158 = vpop.f32.mrf.mxu0
    %v4159 = vadd.f32 %v4146, %v4158
    %v4160 = vpop.f32.mrf.mxu0
    %4161 = vdwg.mxu0
    %4162 = vmatpush.bf16.msra.mxu0 %v3935
    %4163 = vmatpush.bf16.msra.mxu0 %v3933
    %4164 = vmatpush.bf16.msra.mxu0 %v3931
    %4165 = vmatpush.bf16.msra.mxu0 %v3929
    %4166 = vmatpush.bf16.msra.mxu0 %v3927
    %4167 = vmatpush.bf16.msra.mxu0 %v3925
    %4168 = vmatpush.bf16.msra.mxu0 %v3923
    %4169 = vmatpush.bf16.msra.mxu0 %v3921
    %4170 = vmatmul.bf16.gmra.mxu0 %v3321
    %v4171 = vpop.f32.mrf.mxu0
    %v4172 = vadd.f32 %v4159, %v4171
    %v4173 = vpop.f32.mrf.mxu0
    %4174 = vdwg.mxu0
    %4175 = vmatpush.bf16.msra.mxu0 %v3951
    %4176 = vmatpush.bf16.msra.mxu0 %v3949
    %4177 = vmatpush.bf16.msra.mxu0 %v3947
    %4178 = vmatpush.bf16.msra.mxu0 %v3945
    %4179 = vmatpush.bf16.msra.mxu0 %v3943
    %4180 = vmatpush.bf16.msra.mxu0 %v3941
    %4181 = vmatpush.bf16.msra.mxu0 %v3939
    %4182 = vmatpush.bf16.msra.mxu0 %v3937
    %4183 = vmatmul.bf16.gmra.mxu0 %v3322
    %v4184 = vpop.f32.mrf.mxu0
    %v4185 = vadd.f32 %v4172, %v4184
    %v4186 = vpop.f32.mrf.mxu0
    %4187 = vdwg.mxu0
    %4188 = vmatpush.bf16.msra.mxu0 %v3967
    %4189 = vmatpush.bf16.msra.mxu0 %v3965
    %4190 = vmatpush.bf16.msra.mxu0 %v3963
    %4191 = vmatpush.bf16.msra.mxu0 %v3961
    %4192 = vmatpush.bf16.msra.mxu0 %v3959
    %4193 = vmatpush.bf16.msra.mxu0 %v3957
    %4194 = vmatpush.bf16.msra.mxu0 %v3955
    %4195 = vmatpush.bf16.msra.mxu0 %v3953
    %4196 = vmatmul.bf16.gmra.mxu0 %v3323
    %v4197 = vpop.f32.mrf.mxu0
    %v4198 = vadd.f32 %v4185, %v4197
    %v4199 = vpop.f32.mrf.mxu0
    %4200 = vdwg.mxu0
    %4201 = vmatpush.bf16.msra.mxu0 %v3856
    %4202 = vmatpush.bf16.msra.mxu0 %v3854
    %4203 = vmatpush.bf16.msra.mxu0 %v3852
    %4204 = vmatpush.bf16.msra.mxu0 %v3850
    %4205 = vmatpush.bf16.msra.mxu0 %v3848
    %4206 = vmatpush.bf16.msra.mxu0 %v3846
    %4207 = vmatpush.bf16.msra.mxu0 %v3844
    %4208 = vmatpush.bf16.msra.mxu0 %v3842
    %4209 = vmatmul.bf16.gmra.mxu0 %v3316
    %v4210 = vpop.f32.mrf.mxu0
    %v4211 = vadd.f32 %v3454, %v4210
    %v4212 = vpop.f32.mrf.mxu0
    %4213 = vdwg.mxu0
    %4214 = vmatpush.bf16.msra.mxu0 %v3872
    %4215 = vmatpush.bf16.msra.mxu0 %v3870
    %4216 = vmatpush.bf16.msra.mxu0 %v3868
    %4217 = vmatpush.bf16.msra.mxu0 %v3866
    %4218 = vmatpush.bf16.msra.mxu0 %v3864
    %4219 = vmatpush.bf16.msra.mxu0 %v3862
    %4220 = vmatpush.bf16.msra.mxu0 %v3860
    %4221 = vmatpush.bf16.msra.mxu0 %v3858
    %4222 = vmatmul.bf16.gmra.mxu0 %v3317
    %v4223 = vpop.f32.mrf.mxu0
    %v4224 = vadd.f32 %v4211, %v4223
    %v4225 = vpop.f32.mrf.mxu0
    %4226 = vdwg.mxu0
    %4227 = vmatpush.bf16.msra.mxu0 %v3888
    %4228 = vmatpush.bf16.msra.mxu0 %v3886
    %4229 = vmatpush.bf16.msra.mxu0 %v3884
    %4230 = vmatpush.bf16.msra.mxu0 %v3882
    %4231 = vmatpush.bf16.msra.mxu0 %v3880
    %4232 = vmatpush.bf16.msra.mxu0 %v3878
    %4233 = vmatpush.bf16.msra.mxu0 %v3876
    %4234 = vmatpush.bf16.msra.mxu0 %v3874
    %4235 = vmatmul.bf16.gmra.mxu0 %v3318
    %v4236 = vpop.f32.mrf.mxu0
    %v4237 = vadd.f32 %v4224, %v4236
    %v4238 = vpop.f32.mrf.mxu0
    %4239 = vdwg.mxu0
    %4240 = vmatpush.bf16.msra.mxu0 %v3904
    %4241 = vmatpush.bf16.msra.mxu0 %v3902
    %4242 = vmatpush.bf16.msra.mxu0 %v3900
    %4243 = vmatpush.bf16.msra.mxu0 %v3898
    %4244 = vmatpush.bf16.msra.mxu0 %v3896
    %4245 = vmatpush.bf16.msra.mxu0 %v3894
    %4246 = vmatpush.bf16.msra.mxu0 %v3892
    %4247 = vmatpush.bf16.msra.mxu0 %v3890
    %4248 = vmatmul.bf16.gmra.mxu0 %v3319
    %v4249 = vpop.f32.mrf.mxu0
    %v4250 = vadd.f32 %v4237, %v4249
    %v4251 = vpop.f32.mrf.mxu0
    %4252 = vdwg.mxu0
    %4253 = vmatpush.bf16.msra.mxu0 %v3920
    %4254 = vmatpush.bf16.msra.mxu0 %v3918
    %4255 = vmatpush.bf16.msra.mxu0 %v3916
    %4256 = vmatpush.bf16.msra.mxu0 %v3914
    %4257 = vmatpush.bf16.msra.mxu0 %v3912
    %4258 = vmatpush.bf16.msra.mxu0 %v3910
    %4259 = vmatpush.bf16.msra.mxu0 %v3908
    %4260 = vmatpush.bf16.msra.mxu0 %v3906
    %4261 = vmatmul.bf16.gmra.mxu0 %v3320
    %v4262 = vpop.f32.mrf.mxu0
    %v4263 = vadd.f32 %v4250, %v4262
    %v4264 = vpop.f32.mrf.mxu0
    %4265 = vdwg.mxu0
    %4266 = vmatpush.bf16.msra.mxu0 %v3936
    %4267 = vmatpush.bf16.msra.mxu0 %v3934
    %4268 = vmatpush.bf16.msra.mxu0 %v3932
    %4269 = vmatpush.bf16.msra.mxu0 %v3930
    %4270 = vmatpush.bf16.msra.mxu0 %v3928
    %4271 = vmatpush.bf16.msra.mxu0 %v3926
    %4272 = vmatpush.bf16.msra.mxu0 %v3924
    %4273 = vmatpush.bf16.msra.mxu0 %v3922
    %4274 = vmatmul.bf16.gmra.mxu0 %v3321
    %v4275 = vpop.f32.mrf.mxu0
    %v4276 = vadd.f32 %v4263, %v4275
    %v4277 = vpop.f32.mrf.mxu0
    %4278 = vdwg.mxu0
    %4279 = vmatpush.bf16.msra.mxu0 %v3952
    %4280 = vmatpush.bf16.msra.mxu0 %v3950
    %4281 = vmatpush.bf16.msra.mxu0 %v3948
    %4282 = vmatpush.bf16.msra.mxu0 %v3946
    %4283 = vmatpush.bf16.msra.mxu0 %v3944
    %4284 = vmatpush.bf16.msra.mxu0 %v3942
    %4285 = vmatpush.bf16.msra.mxu0 %v3940
    %4286 = vmatpush.bf16.msra.mxu0 %v3938
    %4287 = vmatmul.bf16.gmra.mxu0 %v3322
    %v4288 = vpop.f32.mrf.mxu0
    %v4289 = vadd.f32 %v4276, %v4288
    %v4290 = vpop.f32.mrf.mxu0
    %4291 = vdwg.mxu0
    %4292 = vmatpush.bf16.msra.mxu0 %v3968
    %4293 = vmatpush.bf16.msra.mxu0 %v3966
    %4294 = vmatpush.bf16.msra.mxu0 %v3964
    %4295 = vmatpush.bf16.msra.mxu0 %v3962
    %4296 = vmatpush.bf16.msra.mxu0 %v3960
    %4297 = vmatpush.bf16.msra.mxu0 %v3958
    %4298 = vmatpush.bf16.msra.mxu0 %v3956
    %4299 = vmatpush.bf16.msra.mxu0 %v3954
    %4300 = vmatmul.bf16.gmra.mxu0 %v3323
    %v4301 = vpop.f32.mrf.mxu0
    %v4302 = vadd.f32 %v4289, %v4301
    %v4303 = vpop.f32.mrf.mxu0
    %4304 = vdwg.mxu0
    %v4305 = vtanh.pop %v4198
    %v4306 = vtanh.pop %v4302
    %4307 = vst [vmem:[#allocation14] sm:$0xff] %v4305
    %4308 = vst [vmem:[#allocation14 + $0x8] sm:$0xff] %v4306
    // Predicated region
    $region58: #{tpu_custom_call.1} parent=1 // pred_check
      _
    $region59: #{tpu_custom_call.1} parent=1 // pred_check_branch
      %4310 = sbr.rel (0) target = $region61
    $region60: #{tpu_custom_call.1} parent=1 // pred_region
      %4312 = vsyncadd [#allocation4], 0
      %s4314 = sshll.u32 [#allocation14], 4
      %s4315 = int_to_ptr.vmem [resolvable:$true] %s4314
      %s4316 = sshll.u32 %s7, 4
      %s4317 = int_to_ptr.hbm [resolvable:$true] %s4316
      %4319 = dma.vmem_to_hbm [thread:$0]  %s4315, 256, %s4317, [#allocation4]
    $region61: #{tpu_custom_call.1} parent=1 // pred_fallthru
      _
    // Predicated region
    $region62: #{tpu_custom_call.1} parent=1 // pred_check
      _
    $region63: #{tpu_custom_call.1} parent=1 // pred_check_branch
      %4321 = sbr.rel (0) target = $region65
    $region64: #{tpu_custom_call.1} parent=1 // pred_region
      %4323 = dma.done [#allocation4], 256
    $region65: #{tpu_custom_call.1} parent=1 // pred_fallthru
      _
    %4324 = vsyncpa [#allocation3], 1
    %4325 = vsyncpa [#allocation6], 1
    %4326 = vsyncpa [#allocation9], 1
    %4327 = vsyncpa [#allocation12], 1
    %4328 = vsyncpa [#allocation4], 1

</llo_original>
